<compile_context>
chip_gen: v7x
topology: tpu7x:2x2x1
jax: 0.10.0
libtpu: 0.0.40
codegen_flags: <defaults>
</compile_context>

<pallas_src>
import functools

import jax
import jax.numpy as jnp
from jax.experimental import pallas as pl
from jax.experimental.pallas import tpu as pltpu


# ----------------------------------------------------------------------------
# Fused kernel: 2-layer bidirectional GRU + attention head, single invocation.
# ----------------------------------------------------------------------------
def _gru0_fused_kernel(x_ref, wih0_ref, whh0_ref, b0_ref, bn0_ref,
                       wih1_ref, whh1_ref, b1_ref, bn1_ref,
                       aw_ref, ab_ref,
                       wl_ref, wa_ref, wavg_ref, wmax_ref, bl_ref,
                       gamma_ref, beta_ref, rmean_ref, rvar_ref,
                       out_ref, h0_scr, h1_scr, *, T, Bp, H):
    G = 2 * H  # combined (fwd|bwd) width; gate column layout is [r(2H) z(2H) n(2H)]

    # -- fused bidirectional recurrence: one block-diag matmul per time step --
    def run_bidir(gi_all, whh_ref_, bhn_ref_, store_fn):
        whh = whh_ref_[...]                       # (2H, 6H) bf16, block-diagonal
        bhn = bhn_ref_[...]                       # (1, 2H)  f32  (b_hh for n gate)
        h = jnp.zeros((Bp, G), jnp.float32)       # [h_fwd | h_bwd]
        for s in range(T):                        # fully unrolled (T small, static)
            gi = gi_all[s * Bp:(s + 1) * Bp, :]   # (Bp, 6H)
            gh = jnp.dot(h.astype(jnp.bfloat16), whh,
                         preferred_element_type=jnp.float32)
            rz = jax.nn.sigmoid(gi[:, 0:2 * G] + gh[:, 0:2 * G])   # one full vreg
            r = rz[:, 0:G]
            z = rz[:, G:2 * G]
            n = jnp.tanh(gi[:, 2 * G:3 * G] + r * (gh[:, 2 * G:3 * G] + bhn))
            h = (1.0 - z) * n + z * h
            store_fn(s, h)                        # stored in-step: vst slot is idle

    # ---- layer 0: hoisted, merged input projection (one wide MXU matmul) ----
    gi0 = (jnp.dot(x_ref[...], wih0_ref[...],
                   preferred_element_type=jnp.float32) + b0_ref[...])

    def store0(s, h):
        # fwd state (time s)      -> lanes 0:2H  of row-block s
        # bwd state (time T-1-s)  -> lanes 2H:4H of row-block T-1-s
        h0_scr[s * Bp:(s + 1) * Bp, 0:G] = h
        h0_scr[(T - 1 - s) * Bp:(T - s) * Bp, G:2 * G] = h

    run_bidir(gi0, whh0_ref, bn0_ref, store0)

    # TODO(synk): nn.GRU inter-layer dropout (p=0.1) omitted — eval-mode semantics.

    # ---- layer 1: hoisted projection straight off the augmented scratch ----
    gi1 = (jnp.dot(h0_scr[...].astype(jnp.bfloat16), wih1_ref[...],
                   preferred_element_type=jnp.float32) + b1_ref[...])

    def store1(s, h):
        # de-interleave back to time-aligned rows: block t = [h1_fwd(t) | h1_bwd(t)]
        h1_scr[s * Bp:(s + 1) * Bp, 0:H] = h[:, 0:H]
        h1_scr[(T - 1 - s) * Bp:(T - s) * Bp, H:2 * H] = h[:, H:2 * H]

    run_bidir(gi1, whh1_ref, bn1_ref, store1)

    # ---- head: attention + pooling + split Linear + ReLU + BatchNorm(eval) ----
    aw = aw_ref[...]                                               # (1, 2H)
    blocks = [h1_scr[t * Bp:(t + 1) * Bp, :] for t in range(T)]    # (Bp, 2H) each

    scores = jnp.concatenate(
        [jnp.sum(blocks[t] * aw, axis=1, keepdims=True) for t in range(T)],
        axis=1)                                                    # (Bp, T)
    eij = jnp.tanh(scores + ab_ref[...])
    a = jnp.exp(eij)
    a = a * pl.reciprocal(jnp.sum(a, axis=1, keepdims=True), approx=True) + 1e-10
    xsum = jnp.concatenate(
        [jnp.sum(blocks[t], axis=1, keepdims=True) for t in range(T)], axis=1)
    attn = jnp.sum(a * xsum, axis=1, keepdims=True)                # (Bp, 1)

    ssum = blocks[0]
    smax = blocks[0]
    for t in range(1, T):
        ssum = ssum + blocks[t]
        smax = jnp.maximum(smax, blocks[t])
    avg_pool = ssum * (1.0 / T)
    last = blocks[T - 1]

    # split Linear: avoids materializing the (Bp, 6H+1) feature concat
    y = (jnp.dot(last, wl_ref[...], preferred_element_type=jnp.float32)
         + attn * wa_ref[...]
         + jnp.dot(avg_pool, wavg_ref[...], preferred_element_type=jnp.float32)
         + jnp.dot(smax, wmax_ref[...], preferred_element_type=jnp.float32)
         + bl_ref[...])
    y = jnp.maximum(y, 0.0)

    inv = jax.lax.rsqrt(rvar_ref[...] + 1e-5)
    out_ref[...] = (y - rmean_ref[...]) * inv * gamma_ref[...] + beta_ref[...]


# ----------------------------------------------------------------------------
# Wrapper-side weight packing (block-diag / augmented layouts, bias folding)
# ----------------------------------------------------------------------------
def _place_gates(w, slot, H):
    """Place (K, 3H) gate cols [r|z|n] into fwd (slot 0) or bwd (slot 1) halves
    of a (K, 6H) matrix with interleaved column layout [r_f r_b z_f z_b n_f n_b]."""
    K = w.shape[0]
    zero = jnp.zeros((K, H), w.dtype)
    cols = []
    for g in range(3):
        blk = w[:, g * H:(g + 1) * H]
        cols.extend([blk, zero] if slot == 0 else [zero, blk])
    return jnp.concatenate(cols, axis=1)


def _pack_bias(bih_f, bhh_f, bih_b, bhh_b, H):
    def g(b, i):
        return b[:, i * H:(i + 1) * H]
    # fold b_ih + b_hh for r,z; keep b_ih only for n (b_hh_n sits inside r*(...))
    bias6 = jnp.concatenate(
        [g(bih_f, 0) + g(bhh_f, 0), g(bih_b, 0) + g(bhh_b, 0),
         g(bih_f, 1) + g(bhh_f, 1), g(bih_b, 1) + g(bhh_b, 1),
         g(bih_f, 2), g(bih_b, 2)], axis=1)                        # (1, 6H)
    bhn = jnp.concatenate([g(bhh_f, 2), g(bhh_b, 2)], axis=1)      # (1, 2H)
    return bias6, bhn


def gru0_forward(x, p):
    T, B, Din = x.shape
    H = p['whh_0_fwd'].shape[0]
    H2 = p['r2o_w'].shape[1]
    F = 2 * H
    Bp = ((B + 7) // 8) * 8                       # pad batch to f32 sublane count

    # augmented input [x(t) | x(T-1-t)]: lets one matmul produce the interleaved
    # fwd/bwd gate pre-activations needed by the fused recurrence.
    xp = jnp.pad(x, ((0, 0), (0, Bp - B), (0, 0)))
    x_aug = jnp.concatenate([xp, xp[::-1]], axis=-1).reshape(T * Bp, 2 * Din)
    x_aug = x_aug.astype(jnp.bfloat16)

    # layer-0 weights
    wih0 = jnp.concatenate([_place_gates(p['wih_0_fwd'], 0, H),
                            _place_gates(p['wih_0_bwd'], 1, H)], axis=0)
    whh0 = jnp.concatenate([_place_gates(p['whh_0_fwd'], 0, H),
                            _place_gates(p['whh_0_bwd'], 1, H)], axis=0)
    b0, bn0 = _pack_bias(p['bih_0_fwd'], p['bhh_0_fwd'],
                         p['bih_0_bwd'], p['bhh_0_bwd'], H)

    # layer-1 weights: rows match the layer-0 scratch layout
    # [h0_f(s), h0_b(T-1-s), h0_f(T-1-s), h0_b(s)]
    w1f, w1b = p['wih_1_fwd'], p['wih_1_bwd']
    wih1 = jnp.concatenate([_place_gates(w1f[0:H], 0, H),
                            _place_gates(w1b[H:2 * H], 1, H),
                            _place_gates(w1b[0:H], 1, H),
                            _place_gates(w1f[H:2 * H], 0, H)], axis=0)
    whh1 = jnp.concatenate([_place_gates(p['whh_1_fwd'], 0, H),
                            _place_gates(p['whh_1_bwd'], 1, H)], axis=0)
    b1, bn1 = _pack_bias(p['bih_1_fwd'], p['bhh_1_fwd'],
                         p['bih_1_bwd'], p['bhh_1_bwd'], H)

    # bf16 MXU operands (f32 accumulation inside the kernel)
    wih0, whh0, wih1, whh1 = [w.astype(jnp.bfloat16)
                              for w in (wih0, whh0, wih1, whh1)]

    # head params: split r2o Linear rows -> no (B, 3F+1) concat in the kernel
    r2o_w = p['r2o_w']
    wl = r2o_w[0:F]
    wa = r2o_w[F:F + 1]
    wavg = r2o_w[F + 1:2 * F + 1]
    wmax = r2o_w[2 * F + 1:3 * F + 1]
    aw_row = p['attn_w'].T                         # (1, 2H)

    kernel = functools.partial(_gru0_fused_kernel, T=T, Bp=Bp, H=H)
    out = pl.pallas_call(
        kernel,
        out_shape=jax.ShapeDtypeStruct((Bp, H2), jnp.float32),
        scratch_shapes=[pltpu.VMEM((T * Bp, 4 * H), jnp.float32),  # layer-0 aug states
                        pltpu.VMEM((T * Bp, 2 * H), jnp.float32)], # layer-1 states
    )(x_aug, wih0, whh0, b0, bn0, wih1, whh1, b1, bn1,
      aw_row, p['attn_b'], wl, wa, wavg, wmax, p['r2o_b'],
      p['bn_gamma'], p['bn_beta'], p['bn_rmean'], p['bn_rvar'])
    return out[:B]


# ----------------------------------------------------------------------------
# Deterministic parameter init (shapes follow the torch module; values synthetic)
# ----------------------------------------------------------------------------
def init_params(key, input_size, h1, h2, T):
    ks = jax.random.split(key, 16)

    def u(k, shape, scale):
        return jax.random.uniform(k, shape, jnp.float32, -scale, scale)

    p = {}
    dims = [input_size, 2 * h1]
    i = 0
    for layer in range(2):
        for d in ('fwd', 'bwd'):
            din = dims[layer]
            p[f'wih_{layer}_{d}'] = u(ks[i], (din, 3 * h1), (6.0 / (din + 3 * h1)) ** 0.5); i += 1
            p[f'whh_{layer}_{d}'] = u(ks[i], (h1, 3 * h1), (6.0 / (h1 + 3 * h1)) ** 0.5); i += 1
            p[f'bih_{layer}_{d}'] = jnp.zeros((1, 3 * h1), jnp.float32)
            p[f'bhh_{layer}_{d}'] = jnp.zeros((1, 3 * h1), jnp.float32)
    F = 2 * h1
    p['attn_w'] = u(ks[i], (F, 1), (6.0 / (F + 1)) ** 0.5); i += 1
    p['attn_b'] = jnp.zeros((1, T), jnp.float32)
    fan_in = 3 * F + 1
    p['r2o_w'] = u(ks[i], (fan_in, h2), 1.0 / fan_in ** 0.5); i += 1
    p['r2o_b'] = u(ks[i], (1, h2), 1.0 / fan_in ** 0.5); i += 1
    p['bn_gamma'] = jnp.ones((1, h2), jnp.float32)
    p['bn_beta'] = jnp.zeros((1, h2), jnp.float32)
    p['bn_rmean'] = jnp.zeros((1, h2), jnp.float32)
    p['bn_rvar'] = jnp.ones((1, h2), jnp.float32)
    return p


# ----------------------------------------------------------------------------
# Pure-JAX reference (for numerical sanity check)
# ----------------------------------------------------------------------------
def _gru_dir_ref(x, wih, whh, bih, bhh, reverse):
    B = x.shape[1]
    H = whh.shape[0]
    if reverse:
        x = x[::-1]

    def step(h, xt):
        gi = xt @ wih + bih
        gh = h @ whh + bhh
        r = jax.nn.sigmoid(gi[:, :H] + gh[:, :H])
        z = jax.nn.sigmoid(gi[:, H:2 * H] + gh[:, H:2 * H])
        n = jnp.tanh(gi[:, 2 * H:] + r * gh[:, 2 * H:])
        h_new = (1.0 - z) * n + z * h
        return h_new, h_new

    _, hs = jax.lax.scan(step, jnp.zeros((B, H), jnp.float32), x)
    if reverse:
        hs = hs[::-1]
    return hs


def reference_forward(x, p):
    h0f = _gru_dir_ref(x, p['wih_0_fwd'], p['whh_0_fwd'], p['bih_0_fwd'], p['bhh_0_fwd'], False)
    h0b = _gru_dir_ref(x, p['wih_0_bwd'], p['whh_0_bwd'], p['bih_0_bwd'], p['bhh_0_bwd'], True)
    h0 = jnp.concatenate([h0f, h0b], axis=-1)
    h1f = _gru_dir_ref(h0, p['wih_1_fwd'], p['whh_1_fwd'], p['bih_1_fwd'], p['bhh_1_fwd'], False)
    h1b = _gru_dir_ref(h0, p['wih_1_bwd'], p['whh_1_bwd'], p['bih_1_bwd'], p['bhh_1_bwd'], True)
    hid = jnp.concatenate([h1f, h1b], axis=-1)
    T, B, F = hid.shape
    scores = (hid.reshape(T * B, F) @ p['attn_w']).reshape(T, B).T
    eij = jnp.tanh(scores + p['attn_b'])
    a = jnp.exp(eij)
    a = a / jnp.sum(a, axis=1, keepdims=True) + 1e-10
    attn = jnp.sum(a * jnp.sum(hid, axis=2).T, axis=1, keepdims=True)
    avg = jnp.mean(hid, axis=0)
    mx = jnp.max(hid, axis=0)
    last = hid[-1]
    feat = jnp.concatenate([last, attn, avg, mx], axis=1)
    y = jnp.maximum(feat @ p['r2o_w'] + p['r2o_b'], 0.0)
    inv = jax.lax.rsqrt(p['bn_rvar'] + 1e-5)
    return (y - p['bn_rmean']) * inv * p['bn_gamma'] + p['bn_beta']


if __name__ == "__main__":
    INPUT_SIZE = 256          # -> T = 2048 // 256 = 8
    H1, H2 = 32, 16
    T = 2048 // INPUT_SIZE
    B = 4

    key = jax.random.PRNGKey(0)
    kx, kp = jax.random.split(key)
    x = jax.random.normal(kx, (T, B, INPUT_SIZE), jnp.float32)
    params = init_params(kp, INPUT_SIZE, H1, H2, T)

    out = jax.jit(gru0_forward)(x, params)
    out = jax.block_until_ready(out)

    assert out.shape == (B, H2)
    assert bool(jnp.all(jnp.isfinite(out)))

    ref = reference_forward(x, params)
    rel_err = float(jnp.max(jnp.abs(out - ref) / (1.0 + jnp.abs(ref))))
    assert rel_err < 5e-2, f"mismatch vs reference: {rel_err}"

    print("KERNEL_OK")
</pallas_src>

<mosaic_0001>
module attributes {stable_mosaic.version = 11 : i64} {
  func.func @_gru0_fused_kernel(%arg0: memref<64x512xbf16, #tpu.memory_space<vmem>>, %arg1: memref<512x192xbf16, #tpu.memory_space<vmem>>, %arg2: memref<64x192xbf16, #tpu.memory_space<vmem>>, %arg3: memref<1x192xf32, #tpu.memory_space<vmem>>, %arg4: memref<1x64xf32, #tpu.memory_space<vmem>>, %arg5: memref<128x192xbf16, #tpu.memory_space<vmem>>, %arg6: memref<64x192xbf16, #tpu.memory_space<vmem>>, %arg7: memref<1x192xf32, #tpu.memory_space<vmem>>, %arg8: memref<1x64xf32, #tpu.memory_space<vmem>>, %arg9: memref<1x64xf32, #tpu.memory_space<vmem>>, %arg10: memref<1x8xf32, #tpu.memory_space<vmem>>, %arg11: memref<64x16xf32, #tpu.memory_space<vmem>>, %arg12: memref<1x16xf32, #tpu.memory_space<vmem>>, %arg13: memref<64x16xf32, #tpu.memory_space<vmem>>, %arg14: memref<64x16xf32, #tpu.memory_space<vmem>>, %arg15: memref<1x16xf32, #tpu.memory_space<vmem>>, %arg16: memref<1x16xf32, #tpu.memory_space<vmem>>, %arg17: memref<1x16xf32, #tpu.memory_space<vmem>>, %arg18: memref<1x16xf32, #tpu.memory_space<vmem>>, %arg19: memref<1x16xf32, #tpu.memory_space<vmem>>, %arg20: memref<8x16xf32, #tpu.memory_space<vmem>>, %arg21: memref<64x128xf32, #tpu.memory_space<vmem>>, %arg22: memref<64x64xf32, #tpu.memory_space<vmem>>) attributes {dimension_semantics = [], scalar_prefetch = 0 : i64, scratch_operands = 2 : i64, tpu.core_type = #tpu.core_type<tc>} {
    %c0 = arith.constant 0 : index
    %c0_0 = arith.constant 0 : index
    %0 = vector.load %arg0[%c0, %c0_0] : memref<64x512xbf16, #tpu.memory_space<vmem>>, vector<64x512xbf16>
    %c0_1 = arith.constant 0 : index
    %c0_2 = arith.constant 0 : index
    %1 = vector.load %arg1[%c0_1, %c0_2] : memref<512x192xbf16, #tpu.memory_space<vmem>>, vector<512x192xbf16>
    %cst = arith.constant dense<0.000000e+00> : vector<64x192xf32>
    %2 = tpu.matmul %0, %1, %cst {dimension_numbers = #tpu.dot_dimension_numbers<[1], [0], [0], [1], [0, 0, 1, 1], [], []>} : vector<64x512xbf16>, vector<512x192xbf16>, vector<64x192xf32> -> vector<64x192xf32>
    %c0_3 = arith.constant 0 : index
    %c0_4 = arith.constant 0 : index
    %3 = vector.load %arg3[%c0_3, %c0_4] : memref<1x192xf32, #tpu.memory_space<vmem>>, vector<1x192xf32>
    %4 = vector.broadcast %3 : vector<1x192xf32> to vector<64x192xf32>
    %5 = arith.addf %2, %4 : vector<64x192xf32>
    %c0_5 = arith.constant 0 : index
    %c0_6 = arith.constant 0 : index
    %6 = vector.load %arg2[%c0_5, %c0_6] : memref<64x192xbf16, #tpu.memory_space<vmem>>, vector<64x192xbf16>
    %c0_7 = arith.constant 0 : index
    %c0_8 = arith.constant 0 : index
    %7 = vector.load %arg4[%c0_7, %c0_8] : memref<1x64xf32, #tpu.memory_space<vmem>>, vector<1x64xf32>
    %cst_9 = arith.constant 0.000000e+00 : f32
    %8 = vector.broadcast %cst_9 : f32 to vector<8x64xf32>
    %9 = vector.extract_strided_slice %5 {offsets = [0, 0], sizes = [8, 192], strides = [1, 1]} : vector<64x192xf32> to vector<8x192xf32>
    %10 = arith.truncf %8 : vector<8x64xf32> to vector<8x64xbf16>
    %cst_10 = arith.constant dense<0.000000e+00> : vector<8x192xf32>
    %11 = tpu.matmul %10, %6, %cst_10 {dimension_numbers = #tpu.dot_dimension_numbers<[1], [0], [0], [1], [0, 0, 1, 1], [], []>} : vector<8x64xbf16>, vector<64x192xbf16>, vector<8x192xf32> -> vector<8x192xf32>
    %12 = vector.extract_strided_slice %9 {offsets = [0, 0], sizes = [8, 128], strides = [1, 1]} : vector<8x192xf32> to vector<8x128xf32>
    %13 = vector.extract_strided_slice %11 {offsets = [0, 0], sizes = [8, 128], strides = [1, 1]} : vector<8x192xf32> to vector<8x128xf32>
    %14 = arith.addf %12, %13 : vector<8x128xf32>
    %15 = arith.negf %14 : vector<8x128xf32>
    %16 = math.exp %15 : vector<8x128xf32>
    %cst_11 = arith.constant 1.000000e+00 : f32
    %17 = vector.broadcast %cst_11 : f32 to vector<8x128xf32>
    %18 = arith.addf %17, %16 : vector<8x128xf32>
    %19 = arith.divf %17, %18 : vector<8x128xf32>
    %20 = vector.extract_strided_slice %19 {offsets = [0, 0], sizes = [8, 64], strides = [1, 1]} : vector<8x128xf32> to vector<8x64xf32>
    %21 = vector.extract_strided_slice %19 {offsets = [0, 64], sizes = [8, 64], strides = [1, 1]} : vector<8x128xf32> to vector<8x64xf32>
    %22 = vector.extract_strided_slice %9 {offsets = [0, 128], sizes = [8, 64], strides = [1, 1]} : vector<8x192xf32> to vector<8x64xf32>
    %23 = vector.extract_strided_slice %11 {offsets = [0, 128], sizes = [8, 64], strides = [1, 1]} : vector<8x192xf32> to vector<8x64xf32>
    %24 = vector.broadcast %7 : vector<1x64xf32> to vector<8x64xf32>
    %25 = arith.addf %23, %24 : vector<8x64xf32>
    %26 = arith.mulf %20, %25 : vector<8x64xf32>
    %27 = arith.addf %22, %26 : vector<8x64xf32>
    %28 = math.tanh %27 : vector<8x64xf32>
    %cst_12 = arith.constant 1.000000e+00 : f32
    %29 = vector.broadcast %cst_12 : f32 to vector<8x64xf32>
    %30 = arith.subf %29, %21 : vector<8x64xf32>
    %31 = arith.mulf %30, %28 : vector<8x64xf32>
    %32 = arith.mulf %21, %8 : vector<8x64xf32>
    %33 = arith.addf %31, %32 : vector<8x64xf32>
    %c0_13 = arith.constant 0 : index
    %c0_14 = arith.constant 0 : index
    %34 = vector.load %arg21[%c0_13, %c0_14] : memref<64x128xf32, #tpu.memory_space<vmem>>, vector<8x64xf32>
    tpu.vector_store %arg21[%c0_13, %c0_14], %33 {strides = array<i32>} : memref<64x128xf32, #tpu.memory_space<vmem>>, vector<8x64xf32>,
    %c56 = arith.constant 56 : index
    %c64 = arith.constant 64 : index
    %35 = vector.load %arg21[%c56, %c64] : memref<64x128xf32, #tpu.memory_space<vmem>>, vector<8x64xf32>
    tpu.vector_store %arg21[%c56, %c64], %33 {strides = array<i32>} : memref<64x128xf32, #tpu.memory_space<vmem>>, vector<8x64xf32>,
    %36 = vector.extract_strided_slice %5 {offsets = [8, 0], sizes = [8, 192], strides = [1, 1]} : vector<64x192xf32> to vector<8x192xf32>
    %37 = arith.truncf %33 : vector<8x64xf32> to vector<8x64xbf16>
    %cst_15 = arith.constant dense<0.000000e+00> : vector<8x192xf32>
    %38 = tpu.matmul %37, %6, %cst_15 {dimension_numbers = #tpu.dot_dimension_numbers<[1], [0], [0], [1], [0, 0, 1, 1], [], []>} : vector<8x64xbf16>, vector<64x192xbf16>, vector<8x192xf32> -> vector<8x192xf32>
    %39 = vector.extract_strided_slice %36 {offsets = [0, 0], sizes = [8, 128], strides = [1, 1]} : vector<8x192xf32> to vector<8x128xf32>
    %40 = vector.extract_strided_slice %38 {offsets = [0, 0], sizes = [8, 128], strides = [1, 1]} : vector<8x192xf32> to vector<8x128xf32>
    %41 = arith.addf %39, %40 : vector<8x128xf32>
    %42 = arith.negf %41 : vector<8x128xf32>
    %43 = math.exp %42 : vector<8x128xf32>
    %cst_16 = arith.constant 1.000000e+00 : f32
    %44 = vector.broadcast %cst_16 : f32 to vector<8x128xf32>
    %45 = arith.addf %44, %43 : vector<8x128xf32>
    %46 = arith.divf %44, %45 : vector<8x128xf32>
    %47 = vector.extract_strided_slice %46 {offsets = [0, 0], sizes = [8, 64], strides = [1, 1]} : vector<8x128xf32> to vector<8x64xf32>
    %48 = vector.extract_strided_slice %46 {offsets = [0, 64], sizes = [8, 64], strides = [1, 1]} : vector<8x128xf32> to vector<8x64xf32>
    %49 = vector.extract_strided_slice %36 {offsets = [0, 128], sizes = [8, 64], strides = [1, 1]} : vector<8x192xf32> to vector<8x64xf32>
    %50 = vector.extract_strided_slice %38 {offsets = [0, 128], sizes = [8, 64], strides = [1, 1]} : vector<8x192xf32> to vector<8x64xf32>
    %51 = vector.broadcast %7 : vector<1x64xf32> to vector<8x64xf32>
    %52 = arith.addf %50, %51 : vector<8x64xf32>
    %53 = arith.mulf %47, %52 : vector<8x64xf32>
    %54 = arith.addf %49, %53 : vector<8x64xf32>
    %55 = math.tanh %54 : vector<8x64xf32>
    %cst_17 = arith.constant 1.000000e+00 : f32
    %56 = vector.broadcast %cst_17 : f32 to vector<8x64xf32>
    %57 = arith.subf %56, %48 : vector<8x64xf32>
    %58 = arith.mulf %57, %55 : vector<8x64xf32>
    %59 = arith.mulf %48, %33 : vector<8x64xf32>
    %60 = arith.addf %58, %59 : vector<8x64xf32>
    %c8 = arith.constant 8 : index
    %c0_18 = arith.constant 0 : index
    %61 = vector.load %arg21[%c8, %c0_18] : memref<64x128xf32, #tpu.memory_space<vmem>>, vector<8x64xf32>
    tpu.vector_store %arg21[%c8, %c0_18], %60 {strides = array<i32>} : memref<64x128xf32, #tpu.memory_space<vmem>>, vector<8x64xf32>,
    %c48 = arith.constant 48 : index
    %c64_19 = arith.constant 64 : index
    %62 = vector.load %arg21[%c48, %c64_19] : memref<64x128xf32, #tpu.memory_space<vmem>>, vector<8x64xf32>
    tpu.vector_store %arg21[%c48, %c64_19], %60 {strides = array<i32>} : memref<64x128xf32, #tpu.memory_space<vmem>>, vector<8x64xf32>,
    %63 = vector.extract_strided_slice %5 {offsets = [16, 0], sizes = [8, 192], strides = [1, 1]} : vector<64x192xf32> to vector<8x192xf32>
    %64 = arith.truncf %60 : vector<8x64xf32> to vector<8x64xbf16>
    %cst_20 = arith.constant dense<0.000000e+00> : vector<8x192xf32>
    %65 = tpu.matmul %64, %6, %cst_20 {dimension_numbers = #tpu.dot_dimension_numbers<[1], [0], [0], [1], [0, 0, 1, 1], [], []>} : vector<8x64xbf16>, vector<64x192xbf16>, vector<8x192xf32> -> vector<8x192xf32>
    %66 = vector.extract_strided_slice %63 {offsets = [0, 0], sizes = [8, 128], strides = [1, 1]} : vector<8x192xf32> to vector<8x128xf32>
    %67 = vector.extract_strided_slice %65 {offsets = [0, 0], sizes = [8, 128], strides = [1, 1]} : vector<8x192xf32> to vector<8x128xf32>
    %68 = arith.addf %66, %67 : vector<8x128xf32>
    %69 = arith.negf %68 : vector<8x128xf32>
    %70 = math.exp %69 : vector<8x128xf32>
    %cst_21 = arith.constant 1.000000e+00 : f32
    %71 = vector.broadcast %cst_21 : f32 to vector<8x128xf32>
    %72 = arith.addf %71, %70 : vector<8x128xf32>
    %73 = arith.divf %71, %72 : vector<8x128xf32>
    %74 = vector.extract_strided_slice %73 {offsets = [0, 0], sizes = [8, 64], strides = [1, 1]} : vector<8x128xf32> to vector<8x64xf32>
    %75 = vector.extract_strided_slice %73 {offsets = [0, 64], sizes = [8, 64], strides = [1, 1]} : vector<8x128xf32> to vector<8x64xf32>
    %76 = vector.extract_strided_slice %63 {offsets = [0, 128], sizes = [8, 64], strides = [1, 1]} : vector<8x192xf32> to vector<8x64xf32>
    %77 = vector.extract_strided_slice %65 {offsets = [0, 128], sizes = [8, 64], strides = [1, 1]} : vector<8x192xf32> to vector<8x64xf32>
    %78 = vector.broadcast %7 : vector<1x64xf32> to vector<8x64xf32>
    %79 = arith.addf %77, %78 : vector<8x64xf32>
    %80 = arith.mulf %74, %79 : vector<8x64xf32>
    %81 = arith.addf %76, %80 : vector<8x64xf32>
    %82 = math.tanh %81 : vector<8x64xf32>
    %cst_22 = arith.constant 1.000000e+00 : f32
    %83 = vector.broadcast %cst_22 : f32 to vector<8x64xf32>
    %84 = arith.subf %83, %75 : vector<8x64xf32>
    %85 = arith.mulf %84, %82 : vector<8x64xf32>
    %86 = arith.mulf %75, %60 : vector<8x64xf32>
    %87 = arith.addf %85, %86 : vector<8x64xf32>
    %c16 = arith.constant 16 : index
    %c0_23 = arith.constant 0 : index
    %88 = vector.load %arg21[%c16, %c0_23] : memref<64x128xf32, #tpu.memory_space<vmem>>, vector<8x64xf32>
    tpu.vector_store %arg21[%c16, %c0_23], %87 {strides = array<i32>} : memref<64x128xf32, #tpu.memory_space<vmem>>, vector<8x64xf32>,
    %c40 = arith.constant 40 : index
    %c64_24 = arith.constant 64 : index
    %89 = vector.load %arg21[%c40, %c64_24] : memref<64x128xf32, #tpu.memory_space<vmem>>, vector<8x64xf32>
    tpu.vector_store %arg21[%c40, %c64_24], %87 {strides = array<i32>} : memref<64x128xf32, #tpu.memory_space<vmem>>, vector<8x64xf32>,
    %90 = vector.extract_strided_slice %5 {offsets = [24, 0], sizes = [8, 192], strides = [1, 1]} : vector<64x192xf32> to vector<8x192xf32>
    %91 = arith.truncf %87 : vector<8x64xf32> to vector<8x64xbf16>
    %cst_25 = arith.constant dense<0.000000e+00> : vector<8x192xf32>
    %92 = tpu.matmul %91, %6, %cst_25 {dimension_numbers = #tpu.dot_dimension_numbers<[1], [0], [0], [1], [0, 0, 1, 1], [], []>} : vector<8x64xbf16>, vector<64x192xbf16>, vector<8x192xf32> -> vector<8x192xf32>
    %93 = vector.extract_strided_slice %90 {offsets = [0, 0], sizes = [8, 128], strides = [1, 1]} : vector<8x192xf32> to vector<8x128xf32>
    %94 = vector.extract_strided_slice %92 {offsets = [0, 0], sizes = [8, 128], strides = [1, 1]} : vector<8x192xf32> to vector<8x128xf32>
    %95 = arith.addf %93, %94 : vector<8x128xf32>
    %96 = arith.negf %95 : vector<8x128xf32>
    %97 = math.exp %96 : vector<8x128xf32>
    %cst_26 = arith.constant 1.000000e+00 : f32
    %98 = vector.broadcast %cst_26 : f32 to vector<8x128xf32>
    %99 = arith.addf %98, %97 : vector<8x128xf32>
    %100 = arith.divf %98, %99 : vector<8x128xf32>
    %101 = vector.extract_strided_slice %100 {offsets = [0, 0], sizes = [8, 64], strides = [1, 1]} : vector<8x128xf32> to vector<8x64xf32>
    %102 = vector.extract_strided_slice %100 {offsets = [0, 64], sizes = [8, 64], strides = [1, 1]} : vector<8x128xf32> to vector<8x64xf32>
    %103 = vector.extract_strided_slice %90 {offsets = [0, 128], sizes = [8, 64], strides = [1, 1]} : vector<8x192xf32> to vector<8x64xf32>
    %104 = vector.extract_strided_slice %92 {offsets = [0, 128], sizes = [8, 64], strides = [1, 1]} : vector<8x192xf32> to vector<8x64xf32>
    %105 = vector.broadcast %7 : vector<1x64xf32> to vector<8x64xf32>
    %106 = arith.addf %104, %105 : vector<8x64xf32>
    %107 = arith.mulf %101, %106 : vector<8x64xf32>
    %108 = arith.addf %103, %107 : vector<8x64xf32>
    %109 = math.tanh %108 : vector<8x64xf32>
    %cst_27 = arith.constant 1.000000e+00 : f32
    %110 = vector.broadcast %cst_27 : f32 to vector<8x64xf32>
    %111 = arith.subf %110, %102 : vector<8x64xf32>
    %112 = arith.mulf %111, %109 : vector<8x64xf32>
    %113 = arith.mulf %102, %87 : vector<8x64xf32>
    %114 = arith.addf %112, %113 : vector<8x64xf32>
    %c24 = arith.constant 24 : index
    %c0_28 = arith.constant 0 : index
    %115 = vector.load %arg21[%c24, %c0_28] : memref<64x128xf32, #tpu.memory_space<vmem>>, vector<8x64xf32>
    tpu.vector_store %arg21[%c24, %c0_28], %114 {strides = array<i32>} : memref<64x128xf32, #tpu.memory_space<vmem>>, vector<8x64xf32>,
    %c32 = arith.constant 32 : index
    %c64_29 = arith.constant 64 : index
    %116 = vector.load %arg21[%c32, %c64_29] : memref<64x128xf32, #tpu.memory_space<vmem>>, vector<8x64xf32>
    tpu.vector_store %arg21[%c32, %c64_29], %114 {strides = array<i32>} : memref<64x128xf32, #tpu.memory_space<vmem>>, vector<8x64xf32>,
    %117 = vector.extract_strided_slice %5 {offsets = [32, 0], sizes = [8, 192], strides = [1, 1]} : vector<64x192xf32> to vector<8x192xf32>
    %118 = arith.truncf %114 : vector<8x64xf32> to vector<8x64xbf16>
    %cst_30 = arith.constant dense<0.000000e+00> : vector<8x192xf32>
    %119 = tpu.matmul %118, %6, %cst_30 {dimension_numbers = #tpu.dot_dimension_numbers<[1], [0], [0], [1], [0, 0, 1, 1], [], []>} : vector<8x64xbf16>, vector<64x192xbf16>, vector<8x192xf32> -> vector<8x192xf32>
    %120 = vector.extract_strided_slice %117 {offsets = [0, 0], sizes = [8, 128], strides = [1, 1]} : vector<8x192xf32> to vector<8x128xf32>
    %121 = vector.extract_strided_slice %119 {offsets = [0, 0], sizes = [8, 128], strides = [1, 1]} : vector<8x192xf32> to vector<8x128xf32>
    %122 = arith.addf %120, %121 : vector<8x128xf32>
    %123 = arith.negf %122 : vector<8x128xf32>
    %124 = math.exp %123 : vector<8x128xf32>
    %cst_31 = arith.constant 1.000000e+00 : f32
    %125 = vector.broadcast %cst_31 : f32 to vector<8x128xf32>
    %126 = arith.addf %125, %124 : vector<8x128xf32>
    %127 = arith.divf %125, %126 : vector<8x128xf32>
    %128 = vector.extract_strided_slice %127 {offsets = [0, 0], sizes = [8, 64], strides = [1, 1]} : vector<8x128xf32> to vector<8x64xf32>
    %129 = vector.extract_strided_slice %127 {offsets = [0, 64], sizes = [8, 64], strides = [1, 1]} : vector<8x128xf32> to vector<8x64xf32>
    %130 = vector.extract_strided_slice %117 {offsets = [0, 128], sizes = [8, 64], strides = [1, 1]} : vector<8x192xf32> to vector<8x64xf32>
    %131 = vector.extract_strided_slice %119 {offsets = [0, 128], sizes = [8, 64], strides = [1, 1]} : vector<8x192xf32> to vector<8x64xf32>
    %132 = vector.broadcast %7 : vector<1x64xf32> to vector<8x64xf32>
    %133 = arith.addf %131, %132 : vector<8x64xf32>
    %134 = arith.mulf %128, %133 : vector<8x64xf32>
    %135 = arith.addf %130, %134 : vector<8x64xf32>
    %136 = math.tanh %135 : vector<8x64xf32>
    %cst_32 = arith.constant 1.000000e+00 : f32
    %137 = vector.broadcast %cst_32 : f32 to vector<8x64xf32>
    %138 = arith.subf %137, %129 : vector<8x64xf32>
    %139 = arith.mulf %138, %136 : vector<8x64xf32>
    %140 = arith.mulf %129, %114 : vector<8x64xf32>
    %141 = arith.addf %139, %140 : vector<8x64xf32>
    %c32_33 = arith.constant 32 : index
    %c0_34 = arith.constant 0 : index
    %142 = vector.load %arg21[%c32_33, %c0_34] : memref<64x128xf32, #tpu.memory_space<vmem>>, vector<8x64xf32>
    tpu.vector_store %arg21[%c32_33, %c0_34], %141 {strides = array<i32>} : memref<64x128xf32, #tpu.memory_space<vmem>>, vector<8x64xf32>,
    %c24_35 = arith.constant 24 : index
    %c64_36 = arith.constant 64 : index
    %143 = vector.load %arg21[%c24_35, %c64_36] : memref<64x128xf32, #tpu.memory_space<vmem>>, vector<8x64xf32>
    tpu.vector_store %arg21[%c24_35, %c64_36], %141 {strides = array<i32>} : memref<64x128xf32, #tpu.memory_space<vmem>>, vector<8x64xf32>,
    %144 = vector.extract_strided_slice %5 {offsets = [40, 0], sizes = [8, 192], strides = [1, 1]} : vector<64x192xf32> to vector<8x192xf32>
    %145 = arith.truncf %141 : vector<8x64xf32> to vector<8x64xbf16>
    %cst_37 = arith.constant dense<0.000000e+00> : vector<8x192xf32>
    %146 = tpu.matmul %145, %6, %cst_37 {dimension_numbers = #tpu.dot_dimension_numbers<[1], [0], [0], [1], [0, 0, 1, 1], [], []>} : vector<8x64xbf16>, vector<64x192xbf16>, vector<8x192xf32> -> vector<8x192xf32>
    %147 = vector.extract_strided_slice %144 {offsets = [0, 0], sizes = [8, 128], strides = [1, 1]} : vector<8x192xf32> to vector<8x128xf32>
    %148 = vector.extract_strided_slice %146 {offsets = [0, 0], sizes = [8, 128], strides = [1, 1]} : vector<8x192xf32> to vector<8x128xf32>
    %149 = arith.addf %147, %148 : vector<8x128xf32>
    %150 = arith.negf %149 : vector<8x128xf32>
    %151 = math.exp %150 : vector<8x128xf32>
    %cst_38 = arith.constant 1.000000e+00 : f32
    %152 = vector.broadcast %cst_38 : f32 to vector<8x128xf32>
    %153 = arith.addf %152, %151 : vector<8x128xf32>
    %154 = arith.divf %152, %153 : vector<8x128xf32>
    %155 = vector.extract_strided_slice %154 {offsets = [0, 0], sizes = [8, 64], strides = [1, 1]} : vector<8x128xf32> to vector<8x64xf32>
    %156 = vector.extract_strided_slice %154 {offsets = [0, 64], sizes = [8, 64], strides = [1, 1]} : vector<8x128xf32> to vector<8x64xf32>
    %157 = vector.extract_strided_slice %144 {offsets = [0, 128], sizes = [8, 64], strides = [1, 1]} : vector<8x192xf32> to vector<8x64xf32>
    %158 = vector.extract_strided_slice %146 {offsets = [0, 128], sizes = [8, 64], strides = [1, 1]} : vector<8x192xf32> to vector<8x64xf32>
    %159 = vector.broadcast %7 : vector<1x64xf32> to vector<8x64xf32>
    %160 = arith.addf %158, %159 : vector<8x64xf32>
    %161 = arith.mulf %155, %160 : vector<8x64xf32>
    %162 = arith.addf %157, %161 : vector<8x64xf32>
    %163 = math.tanh %162 : vector<8x64xf32>
    %cst_39 = arith.constant 1.000000e+00 : f32
    %164 = vector.broadcast %cst_39 : f32 to vector<8x64xf32>
    %165 = arith.subf %164, %156 : vector<8x64xf32>
    %166 = arith.mulf %165, %163 : vector<8x64xf32>
    %167 = arith.mulf %156, %141 : vector<8x64xf32>
    %168 = arith.addf %166, %167 : vector<8x64xf32>
    %c40_40 = arith.constant 40 : index
    %c0_41 = arith.constant 0 : index
    %169 = vector.load %arg21[%c40_40, %c0_41] : memref<64x128xf32, #tpu.memory_space<vmem>>, vector<8x64xf32>
    tpu.vector_store %arg21[%c40_40, %c0_41], %168 {strides = array<i32>} : memref<64x128xf32, #tpu.memory_space<vmem>>, vector<8x64xf32>,
    %c16_42 = arith.constant 16 : index
    %c64_43 = arith.constant 64 : index
    %170 = vector.load %arg21[%c16_42, %c64_43] : memref<64x128xf32, #tpu.memory_space<vmem>>, vector<8x64xf32>
    tpu.vector_store %arg21[%c16_42, %c64_43], %168 {strides = array<i32>} : memref<64x128xf32, #tpu.memory_space<vmem>>, vector<8x64xf32>,
    %171 = vector.extract_strided_slice %5 {offsets = [48, 0], sizes = [8, 192], strides = [1, 1]} : vector<64x192xf32> to vector<8x192xf32>
    %172 = arith.truncf %168 : vector<8x64xf32> to vector<8x64xbf16>
    %cst_44 = arith.constant dense<0.000000e+00> : vector<8x192xf32>
    %173 = tpu.matmul %172, %6, %cst_44 {dimension_numbers = #tpu.dot_dimension_numbers<[1], [0], [0], [1], [0, 0, 1, 1], [], []>} : vector<8x64xbf16>, vector<64x192xbf16>, vector<8x192xf32> -> vector<8x192xf32>
    %174 = vector.extract_strided_slice %171 {offsets = [0, 0], sizes = [8, 128], strides = [1, 1]} : vector<8x192xf32> to vector<8x128xf32>
    %175 = vector.extract_strided_slice %173 {offsets = [0, 0], sizes = [8, 128], strides = [1, 1]} : vector<8x192xf32> to vector<8x128xf32>
    %176 = arith.addf %174, %175 : vector<8x128xf32>
    %177 = arith.negf %176 : vector<8x128xf32>
    %178 = math.exp %177 : vector<8x128xf32>
    %cst_45 = arith.constant 1.000000e+00 : f32
    %179 = vector.broadcast %cst_45 : f32 to vector<8x128xf32>
    %180 = arith.addf %179, %178 : vector<8x128xf32>
    %181 = arith.divf %179, %180 : vector<8x128xf32>
    %182 = vector.extract_strided_slice %181 {offsets = [0, 0], sizes = [8, 64], strides = [1, 1]} : vector<8x128xf32> to vector<8x64xf32>
    %183 = vector.extract_strided_slice %181 {offsets = [0, 64], sizes = [8, 64], strides = [1, 1]} : vector<8x128xf32> to vector<8x64xf32>
    %184 = vector.extract_strided_slice %171 {offsets = [0, 128], sizes = [8, 64], strides = [1, 1]} : vector<8x192xf32> to vector<8x64xf32>
    %185 = vector.extract_strided_slice %173 {offsets = [0, 128], sizes = [8, 64], strides = [1, 1]} : vector<8x192xf32> to vector<8x64xf32>
    %186 = vector.broadcast %7 : vector<1x64xf32> to vector<8x64xf32>
    %187 = arith.addf %185, %186 : vector<8x64xf32>
    %188 = arith.mulf %182, %187 : vector<8x64xf32>
    %189 = arith.addf %184, %188 : vector<8x64xf32>
    %190 = math.tanh %189 : vector<8x64xf32>
    %cst_46 = arith.constant 1.000000e+00 : f32
    %191 = vector.broadcast %cst_46 : f32 to vector<8x64xf32>
    %192 = arith.subf %191, %183 : vector<8x64xf32>
    %193 = arith.mulf %192, %190 : vector<8x64xf32>
    %194 = arith.mulf %183, %168 : vector<8x64xf32>
    %195 = arith.addf %193, %194 : vector<8x64xf32>
    %c48_47 = arith.constant 48 : index
    %c0_48 = arith.constant 0 : index
    %196 = vector.load %arg21[%c48_47, %c0_48] : memref<64x128xf32, #tpu.memory_space<vmem>>, vector<8x64xf32>
    tpu.vector_store %arg21[%c48_47, %c0_48], %195 {strides = array<i32>} : memref<64x128xf32, #tpu.memory_space<vmem>>, vector<8x64xf32>,
    %c8_49 = arith.constant 8 : index
    %c64_50 = arith.constant 64 : index
    %197 = vector.load %arg21[%c8_49, %c64_50] : memref<64x128xf32, #tpu.memory_space<vmem>>, vector<8x64xf32>
    tpu.vector_store %arg21[%c8_49, %c64_50], %195 {strides = array<i32>} : memref<64x128xf32, #tpu.memory_space<vmem>>, vector<8x64xf32>,
    %198 = vector.extract_strided_slice %5 {offsets = [56, 0], sizes = [8, 192], strides = [1, 1]} : vector<64x192xf32> to vector<8x192xf32>
    %199 = arith.truncf %195 : vector<8x64xf32> to vector<8x64xbf16>
    %cst_51 = arith.constant dense<0.000000e+00> : vector<8x192xf32>
    %200 = tpu.matmul %199, %6, %cst_51 {dimension_numbers = #tpu.dot_dimension_numbers<[1], [0], [0], [1], [0, 0, 1, 1], [], []>} : vector<8x64xbf16>, vector<64x192xbf16>, vector<8x192xf32> -> vector<8x192xf32>
    %201 = vector.extract_strided_slice %198 {offsets = [0, 0], sizes = [8, 128], strides = [1, 1]} : vector<8x192xf32> to vector<8x128xf32>
    %202 = vector.extract_strided_slice %200 {offsets = [0, 0], sizes = [8, 128], strides = [1, 1]} : vector<8x192xf32> to vector<8x128xf32>
    %203 = arith.addf %201, %202 : vector<8x128xf32>
    %204 = arith.negf %203 : vector<8x128xf32>
    %205 = math.exp %204 : vector<8x128xf32>
    %cst_52 = arith.constant 1.000000e+00 : f32
    %206 = vector.broadcast %cst_52 : f32 to vector<8x128xf32>
    %207 = arith.addf %206, %205 : vector<8x128xf32>
    %208 = arith.divf %206, %207 : vector<8x128xf32>
    %209 = vector.extract_strided_slice %208 {offsets = [0, 0], sizes = [8, 64], strides = [1, 1]} : vector<8x128xf32> to vector<8x64xf32>
    %210 = vector.extract_strided_slice %208 {offsets = [0, 64], sizes = [8, 64], strides = [1, 1]} : vector<8x128xf32> to vector<8x64xf32>
    %211 = vector.extract_strided_slice %198 {offsets = [0, 128], sizes = [8, 64], strides = [1, 1]} : vector<8x192xf32> to vector<8x64xf32>
    %212 = vector.extract_strided_slice %200 {offsets = [0, 128], sizes = [8, 64], strides = [1, 1]} : vector<8x192xf32> to vector<8x64xf32>
    %213 = vector.broadcast %7 : vector<1x64xf32> to vector<8x64xf32>
    %214 = arith.addf %212, %213 : vector<8x64xf32>
    %215 = arith.mulf %209, %214 : vector<8x64xf32>
    %216 = arith.addf %211, %215 : vector<8x64xf32>
    %217 = math.tanh %216 : vector<8x64xf32>
    %cst_53 = arith.constant 1.000000e+00 : f32
    %218 = vector.broadcast %cst_53 : f32 to vector<8x64xf32>
    %219 = arith.subf %218, %210 : vector<8x64xf32>
    %220 = arith.mulf %219, %217 : vector<8x64xf32>
    %221 = arith.mulf %210, %195 : vector<8x64xf32>
    %222 = arith.addf %220, %221 : vector<8x64xf32>
    %c56_54 = arith.constant 56 : index
    %c0_55 = arith.constant 0 : index
    %223 = vector.load %arg21[%c56_54, %c0_55] : memref<64x128xf32, #tpu.memory_space<vmem>>, vector<8x64xf32>
    tpu.vector_store %arg21[%c56_54, %c0_55], %222 {strides = array<i32>} : memref<64x128xf32, #tpu.memory_space<vmem>>, vector<8x64xf32>,
    %c0_56 = arith.constant 0 : index
    %c64_57 = arith.constant 64 : index
    %224 = vector.load %arg21[%c0_56, %c64_57] : memref<64x128xf32, #tpu.memory_space<vmem>>, vector<8x64xf32>
    tpu.vector_store %arg21[%c0_56, %c64_57], %222 {strides = array<i32>} : memref<64x128xf32, #tpu.memory_space<vmem>>, vector<8x64xf32>,
    %c0_58 = arith.constant 0 : index
    %c0_59 = arith.constant 0 : index
    %225 = vector.load %arg21[%c0_58, %c0_59] : memref<64x128xf32, #tpu.memory_space<vmem>>, vector<64x128xf32>
    %226 = arith.truncf %225 : vector<64x128xf32> to vector<64x128xbf16>
    %c0_60 = arith.constant 0 : index
    %c0_61 = arith.constant 0 : index
    %227 = vector.load %arg5[%c0_60, %c0_61] : memref<128x192xbf16, #tpu.memory_space<vmem>>, vector<128x192xbf16>
    %cst_62 = arith.constant dense<0.000000e+00> : vector<64x192xf32>
    %228 = tpu.matmul %226, %227, %cst_62 {dimension_numbers = #tpu.dot_dimension_numbers<[1], [0], [0], [1], [0, 0, 1, 1], [], []>} : vector<64x128xbf16>, vector<128x192xbf16>, vector<64x192xf32> -> vector<64x192xf32>
    %c0_63 = arith.constant 0 : index
    %c0_64 = arith.constant 0 : index
    %229 = vector.load %arg7[%c0_63, %c0_64] : memref<1x192xf32, #tpu.memory_space<vmem>>, vector<1x192xf32>
    %230 = vector.broadcast %229 : vector<1x192xf32> to vector<64x192xf32>
    %231 = arith.addf %228, %230 : vector<64x192xf32>
    %c0_65 = arith.constant 0 : index
    %c0_66 = arith.constant 0 : index
    %232 = vector.load %arg6[%c0_65, %c0_66] : memref<64x192xbf16, #tpu.memory_space<vmem>>, vector<64x192xbf16>
    %c0_67 = arith.constant 0 : index
    %c0_68 = arith.constant 0 : index
    %233 = vector.load %arg8[%c0_67, %c0_68] : memref<1x64xf32, #tpu.memory_space<vmem>>, vector<1x64xf32>
    %cst_69 = arith.constant 0.000000e+00 : f32
    %234 = vector.broadcast %cst_69 : f32 to vector<8x64xf32>
    %235 = vector.extract_strided_slice %231 {offsets = [0, 0], sizes = [8, 192], strides = [1, 1]} : vector<64x192xf32> to vector<8x192xf32>
    %236 = arith.truncf %234 : vector<8x64xf32> to vector<8x64xbf16>
    %cst_70 = arith.constant dense<0.000000e+00> : vector<8x192xf32>
    %237 = tpu.matmul %236, %232, %cst_70 {dimension_numbers = #tpu.dot_dimension_numbers<[1], [0], [0], [1], [0, 0, 1, 1], [], []>} : vector<8x64xbf16>, vector<64x192xbf16>, vector<8x192xf32> -> vector<8x192xf32>
    %238 = vector.extract_strided_slice %235 {offsets = [0, 0], sizes = [8, 128], strides = [1, 1]} : vector<8x192xf32> to vector<8x128xf32>
    %239 = vector.extract_strided_slice %237 {offsets = [0, 0], sizes = [8, 128], strides = [1, 1]} : vector<8x192xf32> to vector<8x128xf32>
    %240 = arith.addf %238, %239 : vector<8x128xf32>
    %241 = arith.negf %240 : vector<8x128xf32>
    %242 = math.exp %241 : vector<8x128xf32>
    %cst_71 = arith.constant 1.000000e+00 : f32
    %243 = vector.broadcast %cst_71 : f32 to vector<8x128xf32>
    %244 = arith.addf %243, %242 : vector<8x128xf32>
    %245 = arith.divf %243, %244 : vector<8x128xf32>
    %246 = vector.extract_strided_slice %245 {offsets = [0, 0], sizes = [8, 64], strides = [1, 1]} : vector<8x128xf32> to vector<8x64xf32>
    %247 = vector.extract_strided_slice %245 {offsets = [0, 64], sizes = [8, 64], strides = [1, 1]} : vector<8x128xf32> to vector<8x64xf32>
    %248 = vector.extract_strided_slice %235 {offsets = [0, 128], sizes = [8, 64], strides = [1, 1]} : vector<8x192xf32> to vector<8x64xf32>
    %249 = vector.extract_strided_slice %237 {offsets = [0, 128], sizes = [8, 64], strides = [1, 1]} : vector<8x192xf32> to vector<8x64xf32>
    %250 = vector.broadcast %233 : vector<1x64xf32> to vector<8x64xf32>
    %251 = arith.addf %249, %250 : vector<8x64xf32>
    %252 = arith.mulf %246, %251 : vector<8x64xf32>
    %253 = arith.addf %248, %252 : vector<8x64xf32>
    %254 = math.tanh %253 : vector<8x64xf32>
    %cst_72 = arith.constant 1.000000e+00 : f32
    %255 = vector.broadcast %cst_72 : f32 to vector<8x64xf32>
    %256 = arith.subf %255, %247 : vector<8x64xf32>
    %257 = arith.mulf %256, %254 : vector<8x64xf32>
    %258 = arith.mulf %247, %234 : vector<8x64xf32>
    %259 = arith.addf %257, %258 : vector<8x64xf32>
    %260 = vector.extract_strided_slice %259 {offsets = [0, 0], sizes = [8, 32], strides = [1, 1]} : vector<8x64xf32> to vector<8x32xf32>
    %c0_73 = arith.constant 0 : index
    %c0_74 = arith.constant 0 : index
    %261 = vector.load %arg22[%c0_73, %c0_74] : memref<64x64xf32, #tpu.memory_space<vmem>>, vector<8x32xf32>
    tpu.vector_store %arg22[%c0_73, %c0_74], %260 {strides = array<i32>} : memref<64x64xf32, #tpu.memory_space<vmem>>, vector<8x32xf32>,
    %262 = vector.extract_strided_slice %259 {offsets = [0, 32], sizes = [8, 32], strides = [1, 1]} : vector<8x64xf32> to vector<8x32xf32>
    %c56_75 = arith.constant 56 : index
    %c32_76 = arith.constant 32 : index
    %263 = vector.load %arg22[%c56_75, %c32_76] : memref<64x64xf32, #tpu.memory_space<vmem>>, vector<8x32xf32>
    tpu.vector_store %arg22[%c56_75, %c32_76], %262 {strides = array<i32>} : memref<64x64xf32, #tpu.memory_space<vmem>>, vector<8x32xf32>,
    %264 = vector.extract_strided_slice %231 {offsets = [8, 0], sizes = [8, 192], strides = [1, 1]} : vector<64x192xf32> to vector<8x192xf32>
    %265 = arith.truncf %259 : vector<8x64xf32> to vector<8x64xbf16>
    %cst_77 = arith.constant dense<0.000000e+00> : vector<8x192xf32>
    %266 = tpu.matmul %265, %232, %cst_77 {dimension_numbers = #tpu.dot_dimension_numbers<[1], [0], [0], [1], [0, 0, 1, 1], [], []>} : vector<8x64xbf16>, vector<64x192xbf16>, vector<8x192xf32> -> vector<8x192xf32>
    %267 = vector.extract_strided_slice %264 {offsets = [0, 0], sizes = [8, 128], strides = [1, 1]} : vector<8x192xf32> to vector<8x128xf32>
    %268 = vector.extract_strided_slice %266 {offsets = [0, 0], sizes = [8, 128], strides = [1, 1]} : vector<8x192xf32> to vector<8x128xf32>
    %269 = arith.addf %267, %268 : vector<8x128xf32>
    %270 = arith.negf %269 : vector<8x128xf32>
    %271 = math.exp %270 : vector<8x128xf32>
    %cst_78 = arith.constant 1.000000e+00 : f32
    %272 = vector.broadcast %cst_78 : f32 to vector<8x128xf32>
    %273 = arith.addf %272, %271 : vector<8x128xf32>
    %274 = arith.divf %272, %273 : vector<8x128xf32>
    %275 = vector.extract_strided_slice %274 {offsets = [0, 0], sizes = [8, 64], strides = [1, 1]} : vector<8x128xf32> to vector<8x64xf32>
    %276 = vector.extract_strided_slice %274 {offsets = [0, 64], sizes = [8, 64], strides = [1, 1]} : vector<8x128xf32> to vector<8x64xf32>
    %277 = vector.extract_strided_slice %264 {offsets = [0, 128], sizes = [8, 64], strides = [1, 1]} : vector<8x192xf32> to vector<8x64xf32>
    %278 = vector.extract_strided_slice %266 {offsets = [0, 128], sizes = [8, 64], strides = [1, 1]} : vector<8x192xf32> to vector<8x64xf32>
    %279 = vector.broadcast %233 : vector<1x64xf32> to vector<8x64xf32>
    %280 = arith.addf %278, %279 : vector<8x64xf32>
    %281 = arith.mulf %275, %280 : vector<8x64xf32>
    %282 = arith.addf %277, %281 : vector<8x64xf32>
    %283 = math.tanh %282 : vector<8x64xf32>
    %cst_79 = arith.constant 1.000000e+00 : f32
    %284 = vector.broadcast %cst_79 : f32 to vector<8x64xf32>
    %285 = arith.subf %284, %276 : vector<8x64xf32>
    %286 = arith.mulf %285, %283 : vector<8x64xf32>
    %287 = arith.mulf %276, %259 : vector<8x64xf32>
    %288 = arith.addf %286, %287 : vector<8x64xf32>
    %289 = vector.extract_strided_slice %288 {offsets = [0, 0], sizes = [8, 32], strides = [1, 1]} : vector<8x64xf32> to vector<8x32xf32>
    %c8_80 = arith.constant 8 : index
    %c0_81 = arith.constant 0 : index
    %290 = vector.load %arg22[%c8_80, %c0_81] : memref<64x64xf32, #tpu.memory_space<vmem>>, vector<8x32xf32>
    tpu.vector_store %arg22[%c8_80, %c0_81], %289 {strides = array<i32>} : memref<64x64xf32, #tpu.memory_space<vmem>>, vector<8x32xf32>,
    %291 = vector.extract_strided_slice %288 {offsets = [0, 32], sizes = [8, 32], strides = [1, 1]} : vector<8x64xf32> to vector<8x32xf32>
    %c48_82 = arith.constant 48 : index
    %c32_83 = arith.constant 32 : index
    %292 = vector.load %arg22[%c48_82, %c32_83] : memref<64x64xf32, #tpu.memory_space<vmem>>, vector<8x32xf32>
    tpu.vector_store %arg22[%c48_82, %c32_83], %291 {strides = array<i32>} : memref<64x64xf32, #tpu.memory_space<vmem>>, vector<8x32xf32>,
    %293 = vector.extract_strided_slice %231 {offsets = [16, 0], sizes = [8, 192], strides = [1, 1]} : vector<64x192xf32> to vector<8x192xf32>
    %294 = arith.truncf %288 : vector<8x64xf32> to vector<8x64xbf16>
    %cst_84 = arith.constant dense<0.000000e+00> : vector<8x192xf32>
    %295 = tpu.matmul %294, %232, %cst_84 {dimension_numbers = #tpu.dot_dimension_numbers<[1], [0], [0], [1], [0, 0, 1, 1], [], []>} : vector<8x64xbf16>, vector<64x192xbf16>, vector<8x192xf32> -> vector<8x192xf32>
    %296 = vector.extract_strided_slice %293 {offsets = [0, 0], sizes = [8, 128], strides = [1, 1]} : vector<8x192xf32> to vector<8x128xf32>
    %297 = vector.extract_strided_slice %295 {offsets = [0, 0], sizes = [8, 128], strides = [1, 1]} : vector<8x192xf32> to vector<8x128xf32>
    %298 = arith.addf %296, %297 : vector<8x128xf32>
    %299 = arith.negf %298 : vector<8x128xf32>
    %300 = math.exp %299 : vector<8x128xf32>
    %cst_85 = arith.constant 1.000000e+00 : f32
    %301 = vector.broadcast %cst_85 : f32 to vector<8x128xf32>
    %302 = arith.addf %301, %300 : vector<8x128xf32>
    %303 = arith.divf %301, %302 : vector<8x128xf32>
    %304 = vector.extract_strided_slice %303 {offsets = [0, 0], sizes = [8, 64], strides = [1, 1]} : vector<8x128xf32> to vector<8x64xf32>
    %305 = vector.extract_strided_slice %303 {offsets = [0, 64], sizes = [8, 64], strides = [1, 1]} : vector<8x128xf32> to vector<8x64xf32>
    %306 = vector.extract_strided_slice %293 {offsets = [0, 128], sizes = [8, 64], strides = [1, 1]} : vector<8x192xf32> to vector<8x64xf32>
    %307 = vector.extract_strided_slice %295 {offsets = [0, 128], sizes = [8, 64], strides = [1, 1]} : vector<8x192xf32> to vector<8x64xf32>
    %308 = vector.broadcast %233 : vector<1x64xf32> to vector<8x64xf32>
    %309 = arith.addf %307, %308 : vector<8x64xf32>
    %310 = arith.mulf %304, %309 : vector<8x64xf32>
    %311 = arith.addf %306, %310 : vector<8x64xf32>
    %312 = math.tanh %311 : vector<8x64xf32>
    %cst_86 = arith.constant 1.000000e+00 : f32
    %313 = vector.broadcast %cst_86 : f32 to vector<8x64xf32>
    %314 = arith.subf %313, %305 : vector<8x64xf32>
    %315 = arith.mulf %314, %312 : vector<8x64xf32>
    %316 = arith.mulf %305, %288 : vector<8x64xf32>
    %317 = arith.addf %315, %316 : vector<8x64xf32>
    %318 = vector.extract_strided_slice %317 {offsets = [0, 0], sizes = [8, 32], strides = [1, 1]} : vector<8x64xf32> to vector<8x32xf32>
    %c16_87 = arith.constant 16 : index
    %c0_88 = arith.constant 0 : index
    %319 = vector.load %arg22[%c16_87, %c0_88] : memref<64x64xf32, #tpu.memory_space<vmem>>, vector<8x32xf32>
    tpu.vector_store %arg22[%c16_87, %c0_88], %318 {strides = array<i32>} : memref<64x64xf32, #tpu.memory_space<vmem>>, vector<8x32xf32>,
    %320 = vector.extract_strided_slice %317 {offsets = [0, 32], sizes = [8, 32], strides = [1, 1]} : vector<8x64xf32> to vector<8x32xf32>
    %c40_89 = arith.constant 40 : index
    %c32_90 = arith.constant 32 : index
    %321 = vector.load %arg22[%c40_89, %c32_90] : memref<64x64xf32, #tpu.memory_space<vmem>>, vector<8x32xf32>
    tpu.vector_store %arg22[%c40_89, %c32_90], %320 {strides = array<i32>} : memref<64x64xf32, #tpu.memory_space<vmem>>, vector<8x32xf32>,
    %322 = vector.extract_strided_slice %231 {offsets = [24, 0], sizes = [8, 192], strides = [1, 1]} : vector<64x192xf32> to vector<8x192xf32>
    %323 = arith.truncf %317 : vector<8x64xf32> to vector<8x64xbf16>
    %cst_91 = arith.constant dense<0.000000e+00> : vector<8x192xf32>
    %324 = tpu.matmul %323, %232, %cst_91 {dimension_numbers = #tpu.dot_dimension_numbers<[1], [0], [0], [1], [0, 0, 1, 1], [], []>} : vector<8x64xbf16>, vector<64x192xbf16>, vector<8x192xf32> -> vector<8x192xf32>
    %325 = vector.extract_strided_slice %322 {offsets = [0, 0], sizes = [8, 128], strides = [1, 1]} : vector<8x192xf32> to vector<8x128xf32>
    %326 = vector.extract_strided_slice %324 {offsets = [0, 0], sizes = [8, 128], strides = [1, 1]} : vector<8x192xf32> to vector<8x128xf32>
    %327 = arith.addf %325, %326 : vector<8x128xf32>
    %328 = arith.negf %327 : vector<8x128xf32>
    %329 = math.exp %328 : vector<8x128xf32>
    %cst_92 = arith.constant 1.000000e+00 : f32
    %330 = vector.broadcast %cst_92 : f32 to vector<8x128xf32>
    %331 = arith.addf %330, %329 : vector<8x128xf32>
    %332 = arith.divf %330, %331 : vector<8x128xf32>
    %333 = vector.extract_strided_slice %332 {offsets = [0, 0], sizes = [8, 64], strides = [1, 1]} : vector<8x128xf32> to vector<8x64xf32>
    %334 = vector.extract_strided_slice %332 {offsets = [0, 64], sizes = [8, 64], strides = [1, 1]} : vector<8x128xf32> to vector<8x64xf32>
    %335 = vector.extract_strided_slice %322 {offsets = [0, 128], sizes = [8, 64], strides = [1, 1]} : vector<8x192xf32> to vector<8x64xf32>
    %336 = vector.extract_strided_slice %324 {offsets = [0, 128], sizes = [8, 64], strides = [1, 1]} : vector<8x192xf32> to vector<8x64xf32>
    %337 = vector.broadcast %233 : vector<1x64xf32> to vector<8x64xf32>
    %338 = arith.addf %336, %337 : vector<8x64xf32>
    %339 = arith.mulf %333, %338 : vector<8x64xf32>
    %340 = arith.addf %335, %339 : vector<8x64xf32>
    %341 = math.tanh %340 : vector<8x64xf32>
    %cst_93 = arith.constant 1.000000e+00 : f32
    %342 = vector.broadcast %cst_93 : f32 to vector<8x64xf32>
    %343 = arith.subf %342, %334 : vector<8x64xf32>
    %344 = arith.mulf %343, %341 : vector<8x64xf32>
    %345 = arith.mulf %334, %317 : vector<8x64xf32>
    %346 = arith.addf %344, %345 : vector<8x64xf32>
    %347 = vector.extract_strided_slice %346 {offsets = [0, 0], sizes = [8, 32], strides = [1, 1]} : vector<8x64xf32> to vector<8x32xf32>
    %c24_94 = arith.constant 24 : index
    %c0_95 = arith.constant 0 : index
    %348 = vector.load %arg22[%c24_94, %c0_95] : memref<64x64xf32, #tpu.memory_space<vmem>>, vector<8x32xf32>
    tpu.vector_store %arg22[%c24_94, %c0_95], %347 {strides = array<i32>} : memref<64x64xf32, #tpu.memory_space<vmem>>, vector<8x32xf32>,
    %349 = vector.extract_strided_slice %346 {offsets = [0, 32], sizes = [8, 32], strides = [1, 1]} : vector<8x64xf32> to vector<8x32xf32>
    %c32_96 = arith.constant 32 : index
    %c32_97 = arith.constant 32 : index
    %350 = vector.load %arg22[%c32_96, %c32_97] : memref<64x64xf32, #tpu.memory_space<vmem>>, vector<8x32xf32>
    tpu.vector_store %arg22[%c32_96, %c32_97], %349 {strides = array<i32>} : memref<64x64xf32, #tpu.memory_space<vmem>>, vector<8x32xf32>,
    %351 = vector.extract_strided_slice %231 {offsets = [32, 0], sizes = [8, 192], strides = [1, 1]} : vector<64x192xf32> to vector<8x192xf32>
    %352 = arith.truncf %346 : vector<8x64xf32> to vector<8x64xbf16>
    %cst_98 = arith.constant dense<0.000000e+00> : vector<8x192xf32>
    %353 = tpu.matmul %352, %232, %cst_98 {dimension_numbers = #tpu.dot_dimension_numbers<[1], [0], [0], [1], [0, 0, 1, 1], [], []>} : vector<8x64xbf16>, vector<64x192xbf16>, vector<8x192xf32> -> vector<8x192xf32>
    %354 = vector.extract_strided_slice %351 {offsets = [0, 0], sizes = [8, 128], strides = [1, 1]} : vector<8x192xf32> to vector<8x128xf32>
    %355 = vector.extract_strided_slice %353 {offsets = [0, 0], sizes = [8, 128], strides = [1, 1]} : vector<8x192xf32> to vector<8x128xf32>
    %356 = arith.addf %354, %355 : vector<8x128xf32>
    %357 = arith.negf %356 : vector<8x128xf32>
    %358 = math.exp %357 : vector<8x128xf32>
    %cst_99 = arith.constant 1.000000e+00 : f32
    %359 = vector.broadcast %cst_99 : f32 to vector<8x128xf32>
    %360 = arith.addf %359, %358 : vector<8x128xf32>
    %361 = arith.divf %359, %360 : vector<8x128xf32>
    %362 = vector.extract_strided_slice %361 {offsets = [0, 0], sizes = [8, 64], strides = [1, 1]} : vector<8x128xf32> to vector<8x64xf32>
    %363 = vector.extract_strided_slice %361 {offsets = [0, 64], sizes = [8, 64], strides = [1, 1]} : vector<8x128xf32> to vector<8x64xf32>
    %364 = vector.extract_strided_slice %351 {offsets = [0, 128], sizes = [8, 64], strides = [1, 1]} : vector<8x192xf32> to vector<8x64xf32>
    %365 = vector.extract_strided_slice %353 {offsets = [0, 128], sizes = [8, 64], strides = [1, 1]} : vector<8x192xf32> to vector<8x64xf32>
    %366 = vector.broadcast %233 : vector<1x64xf32> to vector<8x64xf32>
    %367 = arith.addf %365, %366 : vector<8x64xf32>
    %368 = arith.mulf %362, %367 : vector<8x64xf32>
    %369 = arith.addf %364, %368 : vector<8x64xf32>
    %370 = math.tanh %369 : vector<8x64xf32>
    %cst_100 = arith.constant 1.000000e+00 : f32
    %371 = vector.broadcast %cst_100 : f32 to vector<8x64xf32>
    %372 = arith.subf %371, %363 : vector<8x64xf32>
    %373 = arith.mulf %372, %370 : vector<8x64xf32>
    %374 = arith.mulf %363, %346 : vector<8x64xf32>
    %375 = arith.addf %373, %374 : vector<8x64xf32>
    %376 = vector.extract_strided_slice %375 {offsets = [0, 0], sizes = [8, 32], strides = [1, 1]} : vector<8x64xf32> to vector<8x32xf32>
    %c32_101 = arith.constant 32 : index
    %c0_102 = arith.constant 0 : index
    %377 = vector.load %arg22[%c32_101, %c0_102] : memref<64x64xf32, #tpu.memory_space<vmem>>, vector<8x32xf32>
    tpu.vector_store %arg22[%c32_101, %c0_102], %376 {strides = array<i32>} : memref<64x64xf32, #tpu.memory_space<vmem>>, vector<8x32xf32>,
    %378 = vector.extract_strided_slice %375 {offsets = [0, 32], sizes = [8, 32], strides = [1, 1]} : vector<8x64xf32> to vector<8x32xf32>
    %c24_103 = arith.constant 24 : index
    %c32_104 = arith.constant 32 : index
    %379 = vector.load %arg22[%c24_103, %c32_104] : memref<64x64xf32, #tpu.memory_space<vmem>>, vector<8x32xf32>
    tpu.vector_store %arg22[%c24_103, %c32_104], %378 {strides = array<i32>} : memref<64x64xf32, #tpu.memory_space<vmem>>, vector<8x32xf32>,
    %380 = vector.extract_strided_slice %231 {offsets = [40, 0], sizes = [8, 192], strides = [1, 1]} : vector<64x192xf32> to vector<8x192xf32>
    %381 = arith.truncf %375 : vector<8x64xf32> to vector<8x64xbf16>
    %cst_105 = arith.constant dense<0.000000e+00> : vector<8x192xf32>
    %382 = tpu.matmul %381, %232, %cst_105 {dimension_numbers = #tpu.dot_dimension_numbers<[1], [0], [0], [1], [0, 0, 1, 1], [], []>} : vector<8x64xbf16>, vector<64x192xbf16>, vector<8x192xf32> -> vector<8x192xf32>
    %383 = vector.extract_strided_slice %380 {offsets = [0, 0], sizes = [8, 128], strides = [1, 1]} : vector<8x192xf32> to vector<8x128xf32>
    %384 = vector.extract_strided_slice %382 {offsets = [0, 0], sizes = [8, 128], strides = [1, 1]} : vector<8x192xf32> to vector<8x128xf32>
    %385 = arith.addf %383, %384 : vector<8x128xf32>
    %386 = arith.negf %385 : vector<8x128xf32>
    %387 = math.exp %386 : vector<8x128xf32>
    %cst_106 = arith.constant 1.000000e+00 : f32
    %388 = vector.broadcast %cst_106 : f32 to vector<8x128xf32>
    %389 = arith.addf %388, %387 : vector<8x128xf32>
    %390 = arith.divf %388, %389 : vector<8x128xf32>
    %391 = vector.extract_strided_slice %390 {offsets = [0, 0], sizes = [8, 64], strides = [1, 1]} : vector<8x128xf32> to vector<8x64xf32>
    %392 = vector.extract_strided_slice %390 {offsets = [0, 64], sizes = [8, 64], strides = [1, 1]} : vector<8x128xf32> to vector<8x64xf32>
    %393 = vector.extract_strided_slice %380 {offsets = [0, 128], sizes = [8, 64], strides = [1, 1]} : vector<8x192xf32> to vector<8x64xf32>
    %394 = vector.extract_strided_slice %382 {offsets = [0, 128], sizes = [8, 64], strides = [1, 1]} : vector<8x192xf32> to vector<8x64xf32>
    %395 = vector.broadcast %233 : vector<1x64xf32> to vector<8x64xf32>
    %396 = arith.addf %394, %395 : vector<8x64xf32>
    %397 = arith.mulf %391, %396 : vector<8x64xf32>
    %398 = arith.addf %393, %397 : vector<8x64xf32>
    %399 = math.tanh %398 : vector<8x64xf32>
    %cst_107 = arith.constant 1.000000e+00 : f32
    %400 = vector.broadcast %cst_107 : f32 to vector<8x64xf32>
    %401 = arith.subf %400, %392 : vector<8x64xf32>
    %402 = arith.mulf %401, %399 : vector<8x64xf32>
    %403 = arith.mulf %392, %375 : vector<8x64xf32>
    %404 = arith.addf %402, %403 : vector<8x64xf32>
    %405 = vector.extract_strided_slice %404 {offsets = [0, 0], sizes = [8, 32], strides = [1, 1]} : vector<8x64xf32> to vector<8x32xf32>
    %c40_108 = arith.constant 40 : index
    %c0_109 = arith.constant 0 : index
    %406 = vector.load %arg22[%c40_108, %c0_109] : memref<64x64xf32, #tpu.memory_space<vmem>>, vector<8x32xf32>
    tpu.vector_store %arg22[%c40_108, %c0_109], %405 {strides = array<i32>} : memref<64x64xf32, #tpu.memory_space<vmem>>, vector<8x32xf32>,
    %407 = vector.extract_strided_slice %404 {offsets = [0, 32], sizes = [8, 32], strides = [1, 1]} : vector<8x64xf32> to vector<8x32xf32>
    %c16_110 = arith.constant 16 : index
    %c32_111 = arith.constant 32 : index
    %408 = vector.load %arg22[%c16_110, %c32_111] : memref<64x64xf32, #tpu.memory_space<vmem>>, vector<8x32xf32>
    tpu.vector_store %arg22[%c16_110, %c32_111], %407 {strides = array<i32>} : memref<64x64xf32, #tpu.memory_space<vmem>>, vector<8x32xf32>,
    %409 = vector.extract_strided_slice %231 {offsets = [48, 0], sizes = [8, 192], strides = [1, 1]} : vector<64x192xf32> to vector<8x192xf32>
    %410 = arith.truncf %404 : vector<8x64xf32> to vector<8x64xbf16>
    %cst_112 = arith.constant dense<0.000000e+00> : vector<8x192xf32>
    %411 = tpu.matmul %410, %232, %cst_112 {dimension_numbers = #tpu.dot_dimension_numbers<[1], [0], [0], [1], [0, 0, 1, 1], [], []>} : vector<8x64xbf16>, vector<64x192xbf16>, vector<8x192xf32> -> vector<8x192xf32>
    %412 = vector.extract_strided_slice %409 {offsets = [0, 0], sizes = [8, 128], strides = [1, 1]} : vector<8x192xf32> to vector<8x128xf32>
    %413 = vector.extract_strided_slice %411 {offsets = [0, 0], sizes = [8, 128], strides = [1, 1]} : vector<8x192xf32> to vector<8x128xf32>
    %414 = arith.addf %412, %413 : vector<8x128xf32>
    %415 = arith.negf %414 : vector<8x128xf32>
    %416 = math.exp %415 : vector<8x128xf32>
    %cst_113 = arith.constant 1.000000e+00 : f32
    %417 = vector.broadcast %cst_113 : f32 to vector<8x128xf32>
    %418 = arith.addf %417, %416 : vector<8x128xf32>
    %419 = arith.divf %417, %418 : vector<8x128xf32>
    %420 = vector.extract_strided_slice %419 {offsets = [0, 0], sizes = [8, 64], strides = [1, 1]} : vector<8x128xf32> to vector<8x64xf32>
    %421 = vector.extract_strided_slice %419 {offsets = [0, 64], sizes = [8, 64], strides = [1, 1]} : vector<8x128xf32> to vector<8x64xf32>
    %422 = vector.extract_strided_slice %409 {offsets = [0, 128], sizes = [8, 64], strides = [1, 1]} : vector<8x192xf32> to vector<8x64xf32>
    %423 = vector.extract_strided_slice %411 {offsets = [0, 128], sizes = [8, 64], strides = [1, 1]} : vector<8x192xf32> to vector<8x64xf32>
    %424 = vector.broadcast %233 : vector<1x64xf32> to vector<8x64xf32>
    %425 = arith.addf %423, %424 : vector<8x64xf32>
    %426 = arith.mulf %420, %425 : vector<8x64xf32>
    %427 = arith.addf %422, %426 : vector<8x64xf32>
    %428 = math.tanh %427 : vector<8x64xf32>
    %cst_114 = arith.constant 1.000000e+00 : f32
    %429 = vector.broadcast %cst_114 : f32 to vector<8x64xf32>
    %430 = arith.subf %429, %421 : vector<8x64xf32>
    %431 = arith.mulf %430, %428 : vector<8x64xf32>
    %432 = arith.mulf %421, %404 : vector<8x64xf32>
    %433 = arith.addf %431, %432 : vector<8x64xf32>
    %434 = vector.extract_strided_slice %433 {offsets = [0, 0], sizes = [8, 32], strides = [1, 1]} : vector<8x64xf32> to vector<8x32xf32>
    %c48_115 = arith.constant 48 : index
    %c0_116 = arith.constant 0 : index
    %435 = vector.load %arg22[%c48_115, %c0_116] : memref<64x64xf32, #tpu.memory_space<vmem>>, vector<8x32xf32>
    tpu.vector_store %arg22[%c48_115, %c0_116], %434 {strides = array<i32>} : memref<64x64xf32, #tpu.memory_space<vmem>>, vector<8x32xf32>,
    %436 = vector.extract_strided_slice %433 {offsets = [0, 32], sizes = [8, 32], strides = [1, 1]} : vector<8x64xf32> to vector<8x32xf32>
    %c8_117 = arith.constant 8 : index
    %c32_118 = arith.constant 32 : index
    %437 = vector.load %arg22[%c8_117, %c32_118] : memref<64x64xf32, #tpu.memory_space<vmem>>, vector<8x32xf32>
    tpu.vector_store %arg22[%c8_117, %c32_118], %436 {strides = array<i32>} : memref<64x64xf32, #tpu.memory_space<vmem>>, vector<8x32xf32>,
    %438 = vector.extract_strided_slice %231 {offsets = [56, 0], sizes = [8, 192], strides = [1, 1]} : vector<64x192xf32> to vector<8x192xf32>
    %439 = arith.truncf %433 : vector<8x64xf32> to vector<8x64xbf16>
    %cst_119 = arith.constant dense<0.000000e+00> : vector<8x192xf32>
    %440 = tpu.matmul %439, %232, %cst_119 {dimension_numbers = #tpu.dot_dimension_numbers<[1], [0], [0], [1], [0, 0, 1, 1], [], []>} : vector<8x64xbf16>, vector<64x192xbf16>, vector<8x192xf32> -> vector<8x192xf32>
    %441 = vector.extract_strided_slice %438 {offsets = [0, 0], sizes = [8, 128], strides = [1, 1]} : vector<8x192xf32> to vector<8x128xf32>
    %442 = vector.extract_strided_slice %440 {offsets = [0, 0], sizes = [8, 128], strides = [1, 1]} : vector<8x192xf32> to vector<8x128xf32>
    %443 = arith.addf %441, %442 : vector<8x128xf32>
    %444 = arith.negf %443 : vector<8x128xf32>
    %445 = math.exp %444 : vector<8x128xf32>
    %cst_120 = arith.constant 1.000000e+00 : f32
    %446 = vector.broadcast %cst_120 : f32 to vector<8x128xf32>
    %447 = arith.addf %446, %445 : vector<8x128xf32>
    %448 = arith.divf %446, %447 : vector<8x128xf32>
    %449 = vector.extract_strided_slice %448 {offsets = [0, 0], sizes = [8, 64], strides = [1, 1]} : vector<8x128xf32> to vector<8x64xf32>
    %450 = vector.extract_strided_slice %448 {offsets = [0, 64], sizes = [8, 64], strides = [1, 1]} : vector<8x128xf32> to vector<8x64xf32>
    %451 = vector.extract_strided_slice %438 {offsets = [0, 128], sizes = [8, 64], strides = [1, 1]} : vector<8x192xf32> to vector<8x64xf32>
    %452 = vector.extract_strided_slice %440 {offsets = [0, 128], sizes = [8, 64], strides = [1, 1]} : vector<8x192xf32> to vector<8x64xf32>
    %453 = vector.broadcast %233 : vector<1x64xf32> to vector<8x64xf32>
    %454 = arith.addf %452, %453 : vector<8x64xf32>
    %455 = arith.mulf %449, %454 : vector<8x64xf32>
    %456 = arith.addf %451, %455 : vector<8x64xf32>
    %457 = math.tanh %456 : vector<8x64xf32>
    %cst_121 = arith.constant 1.000000e+00 : f32
    %458 = vector.broadcast %cst_121 : f32 to vector<8x64xf32>
    %459 = arith.subf %458, %450 : vector<8x64xf32>
    %460 = arith.mulf %459, %457 : vector<8x64xf32>
    %461 = arith.mulf %450, %433 : vector<8x64xf32>
    %462 = arith.addf %460, %461 : vector<8x64xf32>
    %463 = vector.extract_strided_slice %462 {offsets = [0, 0], sizes = [8, 32], strides = [1, 1]} : vector<8x64xf32> to vector<8x32xf32>
    %c56_122 = arith.constant 56 : index
    %c0_123 = arith.constant 0 : index
    %464 = vector.load %arg22[%c56_122, %c0_123] : memref<64x64xf32, #tpu.memory_space<vmem>>, vector<8x32xf32>
    tpu.vector_store %arg22[%c56_122, %c0_123], %463 {strides = array<i32>} : memref<64x64xf32, #tpu.memory_space<vmem>>, vector<8x32xf32>,
    %465 = vector.extract_strided_slice %462 {offsets = [0, 32], sizes = [8, 32], strides = [1, 1]} : vector<8x64xf32> to vector<8x32xf32>
    %c0_124 = arith.constant 0 : index
    %c32_125 = arith.constant 32 : index
    %466 = vector.load %arg22[%c0_124, %c32_125] : memref<64x64xf32, #tpu.memory_space<vmem>>, vector<8x32xf32>
    tpu.vector_store %arg22[%c0_124, %c32_125], %465 {strides = array<i32>} : memref<64x64xf32, #tpu.memory_space<vmem>>, vector<8x32xf32>,
    %c0_126 = arith.constant 0 : index
    %c0_127 = arith.constant 0 : index
    %467 = vector.load %arg9[%c0_126, %c0_127] : memref<1x64xf32, #tpu.memory_space<vmem>>, vector<1x64xf32>
    %c0_128 = arith.constant 0 : index
    %c0_129 = arith.constant 0 : index
    %468 = vector.load %arg22[%c0_128, %c0_129] : memref<64x64xf32, #tpu.memory_space<vmem>>, vector<8x64xf32>
    %c8_130 = arith.constant 8 : index
    %c0_131 = arith.constant 0 : index
    %469 = vector.load %arg22[%c8_130, %c0_131] : memref<64x64xf32, #tpu.memory_space<vmem>>, vector<8x64xf32>
    %c16_132 = arith.constant 16 : index
    %c0_133 = arith.constant 0 : index
    %470 = vector.load %arg22[%c16_132, %c0_133] : memref<64x64xf32, #tpu.memory_space<vmem>>, vector<8x64xf32>
    %c24_134 = arith.constant 24 : index
    %c0_135 = arith.constant 0 : index
    %471 = vector.load %arg22[%c24_134, %c0_135] : memref<64x64xf32, #tpu.memory_space<vmem>>, vector<8x64xf32>
    %c32_136 = arith.constant 32 : index
    %c0_137 = arith.constant 0 : index
    %472 = vector.load %arg22[%c32_136, %c0_137] : memref<64x64xf32, #tpu.memory_space<vmem>>, vector<8x64xf32>
    %c40_138 = arith.constant 40 : index
    %c0_139 = arith.constant 0 : index
    %473 = vector.load %arg22[%c40_138, %c0_139] : memref<64x64xf32, #tpu.memory_space<vmem>>, vector<8x64xf32>
    %c48_140 = arith.constant 48 : index
    %c0_141 = arith.constant 0 : index
    %474 = vector.load %arg22[%c48_140, %c0_141] : memref<64x64xf32, #tpu.memory_space<vmem>>, vector<8x64xf32>
    %c56_142 = arith.constant 56 : index
    %c0_143 = arith.constant 0 : index
    %475 = vector.load %arg22[%c56_142, %c0_143] : memref<64x64xf32, #tpu.memory_space<vmem>>, vector<8x64xf32>
    %476 = vector.broadcast %467 : vector<1x64xf32> to vector<8x64xf32>
    %477 = arith.mulf %468, %476 : vector<8x64xf32>
    %cst_144 = arith.constant dense<0.000000e+00> : vector<8xf32>
    %478 = vector.multi_reduction <add>, %477, %cst_144 [1] : vector<8x64xf32> to vector<8xf32>
    %479 = vector.shape_cast %478 : vector<8xf32> to vector<8x1xf32>
    %480 = vector.broadcast %467 : vector<1x64xf32> to vector<8x64xf32>
    %481 = arith.mulf %469, %480 : vector<8x64xf32>
    %cst_145 = arith.constant dense<0.000000e+00> : vector<8xf32>
    %482 = vector.multi_reduction <add>, %481, %cst_145 [1] : vector<8x64xf32> to vector<8xf32>
    %483 = vector.shape_cast %482 : vector<8xf32> to vector<8x1xf32>
    %484 = vector.broadcast %467 : vector<1x64xf32> to vector<8x64xf32>
    %485 = arith.mulf %470, %484 : vector<8x64xf32>
    %cst_146 = arith.constant dense<0.000000e+00> : vector<8xf32>
    %486 = vector.multi_reduction <add>, %485, %cst_146 [1] : vector<8x64xf32> to vector<8xf32>
    %487 = vector.shape_cast %486 : vector<8xf32> to vector<8x1xf32>
    %488 = vector.broadcast %467 : vector<1x64xf32> to vector<8x64xf32>
    %489 = arith.mulf %471, %488 : vector<8x64xf32>
    %cst_147 = arith.constant dense<0.000000e+00> : vector<8xf32>
    %490 = vector.multi_reduction <add>, %489, %cst_147 [1] : vector<8x64xf32> to vector<8xf32>
    %491 = vector.shape_cast %490 : vector<8xf32> to vector<8x1xf32>
    %492 = vector.broadcast %467 : vector<1x64xf32> to vector<8x64xf32>
    %493 = arith.mulf %472, %492 : vector<8x64xf32>
    %cst_148 = arith.constant dense<0.000000e+00> : vector<8xf32>
    %494 = vector.multi_reduction <add>, %493, %cst_148 [1] : vector<8x64xf32> to vector<8xf32>
    %495 = vector.shape_cast %494 : vector<8xf32> to vector<8x1xf32>
    %496 = vector.broadcast %467 : vector<1x64xf32> to vector<8x64xf32>
    %497 = arith.mulf %473, %496 : vector<8x64xf32>
    %cst_149 = arith.constant dense<0.000000e+00> : vector<8xf32>
    %498 = vector.multi_reduction <add>, %497, %cst_149 [1] : vector<8x64xf32> to vector<8xf32>
    %499 = vector.shape_cast %498 : vector<8xf32> to vector<8x1xf32>
    %500 = vector.broadcast %467 : vector<1x64xf32> to vector<8x64xf32>
    %501 = arith.mulf %474, %500 : vector<8x64xf32>
    %cst_150 = arith.constant dense<0.000000e+00> : vector<8xf32>
    %502 = vector.multi_reduction <add>, %501, %cst_150 [1] : vector<8x64xf32> to vector<8xf32>
    %503 = vector.shape_cast %502 : vector<8xf32> to vector<8x1xf32>
    %504 = vector.broadcast %467 : vector<1x64xf32> to vector<8x64xf32>
    %505 = arith.mulf %475, %504 : vector<8x64xf32>
    %cst_151 = arith.constant dense<0.000000e+00> : vector<8xf32>
    %506 = vector.multi_reduction <add>, %505, %cst_151 [1] : vector<8x64xf32> to vector<8xf32>
    %507 = vector.shape_cast %506 : vector<8xf32> to vector<8x1xf32>
    %508 = tpu.concatenate %479, %483, %487, %491, %495, %499, %503, %507 in 1 : vector<8x1xf32>, vector<8x1xf32>, vector<8x1xf32>, vector<8x1xf32>, vector<8x1xf32>, vector<8x1xf32>, vector<8x1xf32>, vector<8x1xf32> -> vector<8x8xf32>
    %c0_152 = arith.constant 0 : index
    %c0_153 = arith.constant 0 : index
    %509 = vector.load %arg10[%c0_152, %c0_153] : memref<1x8xf32, #tpu.memory_space<vmem>>, vector<1x8xf32>
    %510 = vector.broadcast %509 : vector<1x8xf32> to vector<8x8xf32>
    %511 = arith.addf %508, %510 : vector<8x8xf32>
    %512 = math.tanh %511 : vector<8x8xf32>
    %513 = math.exp %512 : vector<8x8xf32>
    %cst_154 = arith.constant dense<0.000000e+00> : vector<8xf32>
    %514 = vector.multi_reduction <add>, %513, %cst_154 [1] : vector<8x8xf32> to vector<8xf32>
    %515 = vector.shape_cast %514 : vector<8xf32> to vector<8x1xf32>
    %516 = tpu.reciprocal %515 {approx = true} : vector<8x1xf32> -> vector<8x1xf32>
    %517 = vector.broadcast %516 : vector<8x1xf32> to vector<8x8xf32>
    %518 = arith.mulf %513, %517 : vector<8x8xf32>
    %cst_155 = arith.constant 1.000000e-10 : f32
    %519 = vector.broadcast %cst_155 : f32 to vector<8x8xf32>
    %520 = arith.addf %518, %519 : vector<8x8xf32>
    %cst_156 = arith.constant dense<0.000000e+00> : vector<8xf32>
    %521 = vector.multi_reduction <add>, %468, %cst_156 [1] : vector<8x64xf32> to vector<8xf32>
    %522 = vector.shape_cast %521 : vector<8xf32> to vector<8x1xf32>
    %cst_157 = arith.constant dense<0.000000e+00> : vector<8xf32>
    %523 = vector.multi_reduction <add>, %469, %cst_157 [1] : vector<8x64xf32> to vector<8xf32>
    %524 = vector.shape_cast %523 : vector<8xf32> to vector<8x1xf32>
    %cst_158 = arith.constant dense<0.000000e+00> : vector<8xf32>
    %525 = vector.multi_reduction <add>, %470, %cst_158 [1] : vector<8x64xf32> to vector<8xf32>
    %526 = vector.shape_cast %525 : vector<8xf32> to vector<8x1xf32>
    %cst_159 = arith.constant dense<0.000000e+00> : vector<8xf32>
    %527 = vector.multi_reduction <add>, %471, %cst_159 [1] : vector<8x64xf32> to vector<8xf32>
    %528 = vector.shape_cast %527 : vector<8xf32> to vector<8x1xf32>
    %cst_160 = arith.constant dense<0.000000e+00> : vector<8xf32>
    %529 = vector.multi_reduction <add>, %472, %cst_160 [1] : vector<8x64xf32> to vector<8xf32>
    %530 = vector.shape_cast %529 : vector<8xf32> to vector<8x1xf32>
    %cst_161 = arith.constant dense<0.000000e+00> : vector<8xf32>
    %531 = vector.multi_reduction <add>, %473, %cst_161 [1] : vector<8x64xf32> to vector<8xf32>
    %532 = vector.shape_cast %531 : vector<8xf32> to vector<8x1xf32>
    %cst_162 = arith.constant dense<0.000000e+00> : vector<8xf32>
    %533 = vector.multi_reduction <add>, %474, %cst_162 [1] : vector<8x64xf32> to vector<8xf32>
    %534 = vector.shape_cast %533 : vector<8xf32> to vector<8x1xf32>
    %cst_163 = arith.constant dense<0.000000e+00> : vector<8xf32>
    %535 = vector.multi_reduction <add>, %475, %cst_163 [1] : vector<8x64xf32> to vector<8xf32>
    %536 = vector.shape_cast %535 : vector<8xf32> to vector<8x1xf32>
    %537 = tpu.concatenate %522, %524, %526, %528, %530, %532, %534, %536 in 1 : vector<8x1xf32>, vector<8x1xf32>, vector<8x1xf32>, vector<8x1xf32>, vector<8x1xf32>, vector<8x1xf32>, vector<8x1xf32>, vector<8x1xf32> -> vector<8x8xf32>
    %538 = arith.mulf %520, %537 : vector<8x8xf32>
    %cst_164 = arith.constant dense<0.000000e+00> : vector<8xf32>
    %539 = vector.multi_reduction <add>, %538, %cst_164 [1] : vector<8x8xf32> to vector<8xf32>
    %540 = vector.shape_cast %539 : vector<8xf32> to vector<8x1xf32>
    %541 = arith.addf %468, %469 : vector<8x64xf32>
    %542 = arith.maximumf %468, %469 : vector<8x64xf32>
    %543 = arith.addf %541, %470 : vector<8x64xf32>
    %544 = arith.maximumf %542, %470 : vector<8x64xf32>
    %545 = arith.addf %543, %471 : vector<8x64xf32>
    %546 = arith.maximumf %544, %471 : vector<8x64xf32>
    %547 = arith.addf %545, %472 : vector<8x64xf32>
    %548 = arith.maximumf %546, %472 : vector<8x64xf32>
    %549 = arith.addf %547, %473 : vector<8x64xf32>
    %550 = arith.maximumf %548, %473 : vector<8x64xf32>
    %551 = arith.addf %549, %474 : vector<8x64xf32>
    %552 = arith.maximumf %550, %474 : vector<8x64xf32>
    %553 = arith.addf %551, %475 : vector<8x64xf32>
    %554 = arith.maximumf %552, %475 : vector<8x64xf32>
    %cst_165 = arith.constant 1.250000e-01 : f32
    %555 = vector.broadcast %cst_165 : f32 to vector<8x64xf32>
    %556 = arith.mulf %553, %555 : vector<8x64xf32>
    %c0_166 = arith.constant 0 : index
    %c0_167 = arith.constant 0 : index
    %557 = vector.load %arg11[%c0_166, %c0_167] : memref<64x16xf32, #tpu.memory_space<vmem>>, vector<64x16xf32>
    %cst_168 = arith.constant dense<0.000000e+00> : vector<8x16xf32>
    %558 = tpu.matmul %475, %557, %cst_168 {dimension_numbers = #tpu.dot_dimension_numbers<[1], [0], [0], [1], [0, 0, 1, 1], [], []>} : vector<8x64xf32>, vector<64x16xf32>, vector<8x16xf32> -> vector<8x16xf32>
    %c0_169 = arith.constant 0 : index
    %c0_170 = arith.constant 0 : index
    %559 = vector.load %arg12[%c0_169, %c0_170] : memref<1x16xf32, #tpu.memory_space<vmem>>, vector<1x16xf32>
    %560 = vector.broadcast %540 : vector<8x1xf32> to vector<8x16xf32>
    %561 = vector.broadcast %559 : vector<1x16xf32> to vector<8x16xf32>
    %562 = arith.mulf %560, %561 : vector<8x16xf32>
    %563 = arith.addf %558, %562 : vector<8x16xf32>
    %c0_171 = arith.constant 0 : index
    %c0_172 = arith.constant 0 : index
    %564 = vector.load %arg13[%c0_171, %c0_172] : memref<64x16xf32, #tpu.memory_space<vmem>>, vector<64x16xf32>
    %cst_173 = arith.constant dense<0.000000e+00> : vector<8x16xf32>
    %565 = tpu.matmul %556, %564, %cst_173 {dimension_numbers = #tpu.dot_dimension_numbers<[1], [0], [0], [1], [0, 0, 1, 1], [], []>} : vector<8x64xf32>, vector<64x16xf32>, vector<8x16xf32> -> vector<8x16xf32>
    %566 = arith.addf %563, %565 : vector<8x16xf32>
    %c0_174 = arith.constant 0 : index
    %c0_175 = arith.constant 0 : index
    %567 = vector.load %arg14[%c0_174, %c0_175] : memref<64x16xf32, #tpu.memory_space<vmem>>, vector<64x16xf32>
    %cst_176 = arith.constant dense<0.000000e+00> : vector<8x16xf32>
    %568 = tpu.matmul %554, %567, %cst_176 {dimension_numbers = #tpu.dot_dimension_numbers<[1], [0], [0], [1], [0, 0, 1, 1], [], []>} : vector<8x64xf32>, vector<64x16xf32>, vector<8x16xf32> -> vector<8x16xf32>
    %569 = arith.addf %566, %568 : vector<8x16xf32>
    %c0_177 = arith.constant 0 : index
    %c0_178 = arith.constant 0 : index
    %570 = vector.load %arg15[%c0_177, %c0_178] : memref<1x16xf32, #tpu.memory_space<vmem>>, vector<1x16xf32>
    %571 = vector.broadcast %570 : vector<1x16xf32> to vector<8x16xf32>
    %572 = arith.addf %569, %571 : vector<8x16xf32>
    %cst_179 = arith.constant 0.000000e+00 : f32
    %573 = vector.broadcast %cst_179 : f32 to vector<8x16xf32>
    %574 = arith.maximumf %572, %573 : vector<8x16xf32>
    %c0_180 = arith.constant 0 : index
    %c0_181 = arith.constant 0 : index
    %575 = vector.load %arg19[%c0_180, %c0_181] : memref<1x16xf32, #tpu.memory_space<vmem>>, vector<1x16xf32>
    %cst_182 = arith.constant 9.99999974E-6 : f32
    %576 = vector.broadcast %cst_182 : f32 to vector<1x16xf32>
    %577 = arith.addf %575, %576 : vector<1x16xf32>
    %578 = math.rsqrt %577 : vector<1x16xf32>
    %c0_183 = arith.constant 0 : index
    %c0_184 = arith.constant 0 : index
    %579 = vector.load %arg18[%c0_183, %c0_184] : memref<1x16xf32, #tpu.memory_space<vmem>>, vector<1x16xf32>
    %580 = vector.broadcast %579 : vector<1x16xf32> to vector<8x16xf32>
    %581 = arith.subf %574, %580 : vector<8x16xf32>
    %582 = vector.broadcast %578 : vector<1x16xf32> to vector<8x16xf32>
    %583 = arith.mulf %581, %582 : vector<8x16xf32>
    %c0_185 = arith.constant 0 : index
    %c0_186 = arith.constant 0 : index
    %584 = vector.load %arg16[%c0_185, %c0_186] : memref<1x16xf32, #tpu.memory_space<vmem>>, vector<1x16xf32>
    %585 = vector.broadcast %584 : vector<1x16xf32> to vector<8x16xf32>
    %586 = arith.mulf %583, %585 : vector<8x16xf32>
    %c0_187 = arith.constant 0 : index
    %c0_188 = arith.constant 0 : index
    %587 = vector.load %arg17[%c0_187, %c0_188] : memref<1x16xf32, #tpu.memory_space<vmem>>, vector<1x16xf32>
    %588 = vector.broadcast %587 : vector<1x16xf32> to vector<8x16xf32>
    %589 = arith.addf %586, %588 : vector<8x16xf32>
    %c0_189 = arith.constant 0 : index
    %c0_190 = arith.constant 0 : index
    %590 = vector.load %arg20[%c0_189, %c0_190] : memref<8x16xf32, #tpu.memory_space<vmem>>, vector<8x16xf32>
    tpu.vector_store %arg20[%c0_189, %c0_190], %589 {strides = array<i32>} : memref<8x16xf32, #tpu.memory_space<vmem>>, vector<8x16xf32>,
    return
  }
}

</mosaic_0001>

<llo_original>
// kernel: gru0_forward.1
$region0: #{gru0_forward.1}
  #allocation0 [shape = 'u32[]', space=smem, size = 0x4, offset = 0x4, fixed_abs, tag = 'smem constant byte address 0x4 - core index']
  #allocation1 [shape = 'u32[144,128]{1,0:T(1,128)}', space=vmem, size = 0x12000, scoped, tag = 'internal scratch']
  #allocation2 [shape = 'f32[64,128]{1,0:T(8,128)}', space=vmem, size = 0x8000, scoped, tag = 'scratch operand']
  #allocation3 [shape = 'f32[64,64]{1,0:T(8,128)}', space=vmem, size = 0x8000, scoped, tag = 'scratch operand']
  %s0 = inlined_call_operand.vmem [shape: bf16[64,512], index: 0, kind: input, shape index: {}]
  %s1 = inlined_call_operand.vmem [shape: bf16[512,192], index: 1, kind: input, shape index: {}]
  %s2 = inlined_call_operand.vmem [shape: bf16[64,192], index: 2, kind: input, shape index: {}]
  %s3 = inlined_call_operand.vmem [shape: f32[1,192], index: 3, kind: input, shape index: {}]
  %s4 = inlined_call_operand.vmem [shape: f32[1,64], index: 4, kind: input, shape index: {}]
  %s5 = inlined_call_operand.vmem [shape: bf16[128,192], index: 5, kind: input, shape index: {}]
  %s6 = inlined_call_operand.vmem [shape: bf16[64,192], index: 6, kind: input, shape index: {}]
  %s7 = inlined_call_operand.vmem [shape: f32[1,192], index: 7, kind: input, shape index: {}]
  %s8 = inlined_call_operand.vmem [shape: f32[1,64], index: 8, kind: input, shape index: {}]
  %s9 = inlined_call_operand.vmem [shape: f32[1,64], index: 9, kind: input, shape index: {}]
  %s10 = inlined_call_operand.vmem [shape: f32[1,8], index: 10, kind: input, shape index: {}]
  %s11 = inlined_call_operand.vmem [shape: f32[64,16], index: 11, kind: input, shape index: {}]
  %s12 = inlined_call_operand.vmem [shape: f32[1,16], index: 12, kind: input, shape index: {}]
  %s13 = inlined_call_operand.vmem [shape: f32[64,16], index: 13, kind: input, shape index: {}]
  %s14 = inlined_call_operand.vmem [shape: f32[64,16], index: 14, kind: input, shape index: {}]
  %s15 = inlined_call_operand.vmem [shape: f32[1,16], index: 15, kind: input, shape index: {}]
  %s16 = inlined_call_operand.vmem [shape: f32[1,16], index: 16, kind: input, shape index: {}]
  %s17 = inlined_call_operand.vmem [shape: f32[1,16], index: 17, kind: input, shape index: {}]
  %s18 = inlined_call_operand.vmem [shape: f32[1,16], index: 18, kind: input, shape index: {}]
  %s19 = inlined_call_operand.vmem [shape: f32[1,16], index: 19, kind: input, shape index: {}]
  %s20 = inlined_call_operand.vmem [shape: f32[8,16], index: 20, kind: output, shape index: {}]
  %s21 = sld [smem:[#allocation0]]
  $region90: #{gru0_forward.1} parent=0
    _
  %s23 = ssub.s32 1, %s21
  %s24 = scalar_select 0, %s23, %s21
  // Predicated region
  $region2: #{gru0_forward.1} parent=0 // pred_check
    _
  $region3: #{gru0_forward.1} parent=0 // pred_check_branch
    %26 = sbr.rel (0) target = $region5
  $region4: #{gru0_forward.1} parent=0 // pred_region
    _
  $region5: #{gru0_forward.1} parent=0 // pred_fallthru
    _
  // Predicated region
  $region6: #{gru0_forward.1} parent=0 // pred_check
    _
  $region7: #{gru0_forward.1} parent=0 // pred_check_branch
    %28 = sbr.rel (0) target = $region9
  $region8: #{gru0_forward.1} parent=0 // pred_region
    _
  $region9: #{gru0_forward.1} parent=0 // pred_fallthru
    _
  // Predicated region
  $region10: #{gru0_forward.1} parent=0 // pred_check
    _
  $region11: #{gru0_forward.1} parent=0 // pred_check_branch
    %30 = sbr.rel (0) target = $region13
  $region12: #{gru0_forward.1} parent=0 // pred_region
    _
  $region13: #{gru0_forward.1} parent=0 // pred_fallthru
    _
  // Predicated region
  $region14: #{gru0_forward.1} parent=0 // pred_check
    _
  $region15: #{gru0_forward.1} parent=0 // pred_check_branch
    %32 = sbr.rel (0) target = $region17
  $region16: #{gru0_forward.1} parent=0 // pred_region
    _
  $region17: #{gru0_forward.1} parent=0 // pred_fallthru
    _
  // Predicated region
  $region18: #{gru0_forward.1} parent=0 // pred_check
    _
  $region19: #{gru0_forward.1} parent=0 // pred_check_branch
    %34 = sbr.rel (0) target = $region21
  $region20: #{gru0_forward.1} parent=0 // pred_region
    _
  $region21: #{gru0_forward.1} parent=0 // pred_fallthru
    _
  // Predicated region
  $region22: #{gru0_forward.1} parent=0 // pred_check
    _
  $region23: #{gru0_forward.1} parent=0 // pred_check_branch
    %36 = sbr.rel (0) target = $region25
  $region24: #{gru0_forward.1} parent=0 // pred_region
    _
  $region25: #{gru0_forward.1} parent=0 // pred_fallthru
    _
  // Predicated region
  $region26: #{gru0_forward.1} parent=0 // pred_check
    _
  $region27: #{gru0_forward.1} parent=0 // pred_check_branch
    %38 = sbr.rel (0) target = $region29
  $region28: #{gru0_forward.1} parent=0 // pred_region
    _
  $region29: #{gru0_forward.1} parent=0 // pred_fallthru
    _
  // Predicated region
  $region30: #{gru0_forward.1} parent=0 // pred_check
    _
  $region31: #{gru0_forward.1} parent=0 // pred_check_branch
    %40 = sbr.rel (0) target = $region33
  $region32: #{gru0_forward.1} parent=0 // pred_region
    _
  $region33: #{gru0_forward.1} parent=0 // pred_fallthru
    _
  // Predicated region
  $region34: #{gru0_forward.1} parent=0 // pred_check
    _
  $region35: #{gru0_forward.1} parent=0 // pred_check_branch
    %42 = sbr.rel (0) target = $region37
  $region36: #{gru0_forward.1} parent=0 // pred_region
    _
  $region37: #{gru0_forward.1} parent=0 // pred_fallthru
    _
  // Predicated region
  $region38: #{gru0_forward.1} parent=0 // pred_check
    _
  $region39: #{gru0_forward.1} parent=0 // pred_check_branch
    %44 = sbr.rel (0) target = $region41
  $region40: #{gru0_forward.1} parent=0 // pred_region
    _
  $region41: #{gru0_forward.1} parent=0 // pred_fallthru
    _
  // Predicated region
  $region42: #{gru0_forward.1} parent=0 // pred_check
    _
  $region43: #{gru0_forward.1} parent=0 // pred_check_branch
    %46 = sbr.rel (0) target = $region45
  $region44: #{gru0_forward.1} parent=0 // pred_region
    _
  $region45: #{gru0_forward.1} parent=0 // pred_fallthru
    _
  // Predicated region
  $region46: #{gru0_forward.1} parent=0 // pred_check
    _
  $region47: #{gru0_forward.1} parent=0 // pred_check_branch
    %48 = sbr.rel (0) target = $region49
  $region48: #{gru0_forward.1} parent=0 // pred_region
    _
  $region49: #{gru0_forward.1} parent=0 // pred_fallthru
    _
  // Predicated region
  $region50: #{gru0_forward.1} parent=0 // pred_check
    _
  $region51: #{gru0_forward.1} parent=0 // pred_check_branch
    %50 = sbr.rel (0) target = $region53
  $region52: #{gru0_forward.1} parent=0 // pred_region
    _
  $region53: #{gru0_forward.1} parent=0 // pred_fallthru
    _
  // Predicated region
  $region54: #{gru0_forward.1} parent=0 // pred_check
    _
  $region55: #{gru0_forward.1} parent=0 // pred_check_branch
    %52 = sbr.rel (0) target = $region57
  $region56: #{gru0_forward.1} parent=0 // pred_region
    _
  $region57: #{gru0_forward.1} parent=0 // pred_fallthru
    _
  // Predicated region
  $region58: #{gru0_forward.1} parent=0 // pred_check
    _
  $region59: #{gru0_forward.1} parent=0 // pred_check_branch
    %54 = sbr.rel (0) target = $region61
  $region60: #{gru0_forward.1} parent=0 // pred_region
    _
  $region61: #{gru0_forward.1} parent=0 // pred_fallthru
    _
  // Predicated region
  $region62: #{gru0_forward.1} parent=0 // pred_check
    _
  $region63: #{gru0_forward.1} parent=0 // pred_check_branch
    %56 = sbr.rel (0) target = $region65
  $region64: #{gru0_forward.1} parent=0 // pred_region
    _
  $region65: #{gru0_forward.1} parent=0 // pred_fallthru
    _
  // Predicated region
  $region66: #{gru0_forward.1} parent=0 // pred_check
    _
  $region67: #{gru0_forward.1} parent=0 // pred_check_branch
    %58 = sbr.rel (0) target = $region69
  $region68: #{gru0_forward.1} parent=0 // pred_region
    _
  $region69: #{gru0_forward.1} parent=0 // pred_fallthru
    _
  // Predicated region
  $region70: #{gru0_forward.1} parent=0 // pred_check
    _
  $region71: #{gru0_forward.1} parent=0 // pred_check_branch
    %60 = sbr.rel (0) target = $region73
  $region72: #{gru0_forward.1} parent=0 // pred_region
    _
  $region73: #{gru0_forward.1} parent=0 // pred_fallthru
    _
  // Predicated region
  $region74: #{gru0_forward.1} parent=0 // pred_check
    _
  $region75: #{gru0_forward.1} parent=0 // pred_check_branch
    %62 = sbr.rel (0) target = $region77
  $region76: #{gru0_forward.1} parent=0 // pred_region
    _
  $region77: #{gru0_forward.1} parent=0 // pred_fallthru
    _
  // Predicated region
  $region78: #{gru0_forward.1} parent=0 // pred_check
    _
  $region79: #{gru0_forward.1} parent=0 // pred_check_branch
    %64 = sbr.rel (0) target = $region81
  $region80: #{gru0_forward.1} parent=0 // pred_region
    _
  $region81: #{gru0_forward.1} parent=0 // pred_fallthru
    _
  %v66 = vld [vmem:[%s0] sm:$0xff]
  %v67 = vld [vmem:[%s0 + $0x8] sm:$0xff]
  %v68 = vld [vmem:[%s0 + $0x10] sm:$0xff]
  %v69 = vld [vmem:[%s0 + $0x18] sm:$0xff]
  %v70 = vld [vmem:[%s0 + $0x20] sm:$0xff]
  %v71 = vld [vmem:[%s0 + $0x28] sm:$0xff]
  %v72 = vld [vmem:[%s0 + $0x30] sm:$0xff]
  %v73 = vld [vmem:[%s0 + $0x38] sm:$0xff]
  %v74 = vld [vmem:[%s0 + $0x40] sm:$0xff]
  %v75 = vld [vmem:[%s0 + $0x48] sm:$0xff]
  %v76 = vld [vmem:[%s0 + $0x50] sm:$0xff]
  %v77 = vld [vmem:[%s0 + $0x58] sm:$0xff]
  %v78 = vld [vmem:[%s0 + $0x60] sm:$0xff]
  %v79 = vld [vmem:[%s0 + $0x68] sm:$0xff]
  %v80 = vld [vmem:[%s0 + $0x70] sm:$0xff]
  %v81 = vld [vmem:[%s0 + $0x78] sm:$0xff]
  %v82 = vld [vmem:[%s1] sm:$0xff]
  %v83 = vld [vmem:[%s1 + $0x8] sm:$0xff]
  %v84 = vld [vmem:[%s1 + $0x10] sm:$0xff]
  %v85 = vld [vmem:[%s1 + $0x18] sm:$0xff]
  %v86 = vld [vmem:[%s1 + $0x20] sm:$0xff]
  %v87 = vld [vmem:[%s1 + $0x28] sm:$0xff]
  %v88 = vld [vmem:[%s1 + $0x30] sm:$0xff]
  %v89 = vld [vmem:[%s1 + $0x38] sm:$0xff]
  %v90 = vld [vmem:[%s1 + $0x40] sm:$0xff]
  %v91 = vld [vmem:[%s1 + $0x48] sm:$0xff]
  %v92 = vld [vmem:[%s1 + $0x50] sm:$0xff]
  %v93 = vld [vmem:[%s1 + $0x58] sm:$0xff]
  %v94 = vld [vmem:[%s1 + $0x60] sm:$0xff]
  %v95 = vld [vmem:[%s1 + $0x68] sm:$0xff]
  %v96 = vld [vmem:[%s1 + $0x70] sm:$0xff]
  %v97 = vld [vmem:[%s1 + $0x78] sm:$0xff]
  %v98 = vld [vmem:[%s1 + $0x80] sm:$0xff]
  %v99 = vld [vmem:[%s1 + $0x88] sm:$0xff]
  %v100 = vld [vmem:[%s1 + $0x90] sm:$0xff]
  %v101 = vld [vmem:[%s1 + $0x98] sm:$0xff]
  %v102 = vld [vmem:[%s1 + $0xa0] sm:$0xff]
  %v103 = vld [vmem:[%s1 + $0xa8] sm:$0xff]
  %v104 = vld [vmem:[%s1 + $0xb0] sm:$0xff]
  %v105 = vld [vmem:[%s1 + $0xb8] sm:$0xff]
  %v106 = vld [vmem:[%s1 + $0xc0] sm:$0xff]
  %v107 = vld [vmem:[%s1 + $0xc8] sm:$0xff]
  %v108 = vld [vmem:[%s1 + $0xd0] sm:$0xff]
  %v109 = vld [vmem:[%s1 + $0xd8] sm:$0xff]
  %v110 = vld [vmem:[%s1 + $0xe0] sm:$0xff]
  %v111 = vld [vmem:[%s1 + $0xe8] sm:$0xff]
  %v112 = vld [vmem:[%s1 + $0xf0] sm:$0xff]
  %v113 = vld [vmem:[%s1 + $0xf8] sm:$0xff]
  %v114 = vld [vmem:[%s1 + $0x100] sm:$0xff]
  %v115 = vld [vmem:[%s1 + $0x108] sm:$0xff]
  %v116 = vld [vmem:[%s1 + $0x110] sm:$0xff]
  %v117 = vld [vmem:[%s1 + $0x118] sm:$0xff]
  %v118 = vld [vmem:[%s1 + $0x120] sm:$0xff]
  %v119 = vld [vmem:[%s1 + $0x128] sm:$0xff]
  %v120 = vld [vmem:[%s1 + $0x130] sm:$0xff]
  %v121 = vld [vmem:[%s1 + $0x138] sm:$0xff]
  %v122 = vld [vmem:[%s1 + $0x140] sm:$0xff]
  %v123 = vld [vmem:[%s1 + $0x148] sm:$0xff]
  %v124 = vld [vmem:[%s1 + $0x150] sm:$0xff]
  %v125 = vld [vmem:[%s1 + $0x158] sm:$0xff]
  %v126 = vld [vmem:[%s1 + $0x160] sm:$0xff]
  %v127 = vld [vmem:[%s1 + $0x168] sm:$0xff]
  %v128 = vld [vmem:[%s1 + $0x170] sm:$0xff]
  %v129 = vld [vmem:[%s1 + $0x178] sm:$0xff]
  %v130 = vld [vmem:[%s1 + $0x180] sm:$0xff]
  %v131 = vld [vmem:[%s1 + $0x188] sm:$0xff]
  %v132 = vld [vmem:[%s1 + $0x190] sm:$0xff]
  %v133 = vld [vmem:[%s1 + $0x198] sm:$0xff]
  %v134 = vld [vmem:[%s1 + $0x1a0] sm:$0xff]
  %v135 = vld [vmem:[%s1 + $0x1a8] sm:$0xff]
  %v136 = vld [vmem:[%s1 + $0x1b0] sm:$0xff]
  %v137 = vld [vmem:[%s1 + $0x1b8] sm:$0xff]
  %v138 = vld [vmem:[%s1 + $0x1c0] sm:$0xff]
  %v139 = vld [vmem:[%s1 + $0x1c8] sm:$0xff]
  %v140 = vld [vmem:[%s1 + $0x1d0] sm:$0xff]
  %v141 = vld [vmem:[%s1 + $0x1d8] sm:$0xff]
  %v142 = vld [vmem:[%s1 + $0x1e0] sm:$0xff]
  %v143 = vld [vmem:[%s1 + $0x1e8] sm:$0xff]
  %v144 = vld [vmem:[%s1 + $0x1f0] sm:$0xff]
  %v145 = vld [vmem:[%s1 + $0x1f8] sm:$0xff]
  %v146 = vld [vmem:[%s3] sm:$0x3]
  %v148 = vlaneseq
  %v149 = vshrl.u32 %v148, 7
  %v150 = vsub.s32 0, %v149
  %v151 = vrot.slane %v146, %v150
  %v152 = vlaneseq
  %v153 = vshrl.u32 %v152, 7
  %v154 = vsub.s32 1, %v153
  %v155 = vrot.slane %v146, %v154
  %v174 = vunpack.c.l.b16 %v66
  %v175 = vunpack.c.h.b16 %v66
  %v176 = vunpack.c.l.b16 %v67
  %v177 = vunpack.c.h.b16 %v67
  %v178 = vunpack.c.l.b16 %v68
  %v179 = vunpack.c.h.b16 %v68
  %v180 = vunpack.c.l.b16 %v69
  %v181 = vunpack.c.h.b16 %v69
  %v182 = vunpack.c.l.b16 %v70
  %v183 = vunpack.c.h.b16 %v70
  %v184 = vunpack.c.l.b16 %v71
  %v185 = vunpack.c.h.b16 %v71
  %v186 = vunpack.c.l.b16 %v72
  %v187 = vunpack.c.h.b16 %v72
  %v188 = vunpack.c.l.b16 %v73
  %v189 = vunpack.c.h.b16 %v73
  %v190 = vunpack.c.l.b16 %v74
  %v191 = vunpack.c.h.b16 %v74
  %v192 = vunpack.c.l.b16 %v75
  %v193 = vunpack.c.h.b16 %v75
  %v194 = vunpack.c.l.b16 %v76
  %v195 = vunpack.c.h.b16 %v76
  %v196 = vunpack.c.l.b16 %v77
  %v197 = vunpack.c.h.b16 %v77
  %v198 = vunpack.c.l.b16 %v78
  %v199 = vunpack.c.h.b16 %v78
  %v200 = vunpack.c.l.b16 %v79
  %v201 = vunpack.c.h.b16 %v79
  %v202 = vunpack.c.l.b16 %v80
  %v203 = vunpack.c.h.b16 %v80
  %v204 = vunpack.c.l.b16 %v81
  %v205 = vunpack.c.h.b16 %v81
  %v206 = vpack.c.b16 %v178, %v174
  %v207 = vpack.c.b16 %v179, %v175
  %v208 = vpack.c.b16 %v180, %v176
  %v209 = vpack.c.b16 %v181, %v177
  %v210 = vpack.c.b16 %v186, %v182
  %v211 = vpack.c.b16 %v187, %v183
  %v212 = vpack.c.b16 %v188, %v184
  %v213 = vpack.c.b16 %v189, %v185
  %v214 = vpack.c.b16 %v194, %v190
  %v215 = vpack.c.b16 %v195, %v191
  %v216 = vpack.c.b16 %v196, %v192
  %v217 = vpack.c.b16 %v197, %v193
  %v218 = vpack.c.b16 %v202, %v198
  %v219 = vpack.c.b16 %v203, %v199
  %v220 = vpack.c.b16 %v204, %v200
  %v221 = vpack.c.b16 %v205, %v201
  %v302 = vunpack.c.l.b16 %v82
  %v303 = vunpack.c.h.b16 %v82
  %v304 = vunpack.c.l.b16 %v83
  %v305 = vunpack.c.h.b16 %v83
  %v306 = vunpack.c.l.b16 %v84
  %v307 = vunpack.c.h.b16 %v84
  %v308 = vunpack.c.l.b16 %v85
  %v309 = vunpack.c.h.b16 %v85
  %v310 = vunpack.c.l.b16 %v86
  %v311 = vunpack.c.h.b16 %v86
  %v312 = vunpack.c.l.b16 %v87
  %v313 = vunpack.c.h.b16 %v87
  %v314 = vunpack.c.l.b16 %v88
  %v315 = vunpack.c.h.b16 %v88
  %v316 = vunpack.c.l.b16 %v89
  %v317 = vunpack.c.h.b16 %v89
  %v318 = vunpack.c.l.b16 %v90
  %v319 = vunpack.c.h.b16 %v90
  %v320 = vunpack.c.l.b16 %v91
  %v321 = vunpack.c.h.b16 %v91
  %v322 = vunpack.c.l.b16 %v92
  %v323 = vunpack.c.h.b16 %v92
  %v324 = vunpack.c.l.b16 %v93
  %v325 = vunpack.c.h.b16 %v93
  %v326 = vunpack.c.l.b16 %v94
  %v327 = vunpack.c.h.b16 %v94
  %v328 = vunpack.c.l.b16 %v95
  %v329 = vunpack.c.h.b16 %v95
  %v330 = vunpack.c.l.b16 %v96
  %v331 = vunpack.c.h.b16 %v96
  %v332 = vunpack.c.l.b16 %v97
  %v333 = vunpack.c.h.b16 %v97
  %v334 = vunpack.c.l.b16 %v98
  %v335 = vunpack.c.h.b16 %v98
  %v336 = vunpack.c.l.b16 %v99
  %v337 = vunpack.c.h.b16 %v99
  %v338 = vunpack.c.l.b16 %v100
  %v339 = vunpack.c.h.b16 %v100
  %v340 = vunpack.c.l.b16 %v101
  %v341 = vunpack.c.h.b16 %v101
  %v342 = vunpack.c.l.b16 %v102
  %v343 = vunpack.c.h.b16 %v102
  %v344 = vunpack.c.l.b16 %v103
  %v345 = vunpack.c.h.b16 %v103
  %v346 = vunpack.c.l.b16 %v104
  %v347 = vunpack.c.h.b16 %v104
  %v348 = vunpack.c.l.b16 %v105
  %v349 = vunpack.c.h.b16 %v105
  %v350 = vunpack.c.l.b16 %v106
  %v351 = vunpack.c.h.b16 %v106
  %v352 = vunpack.c.l.b16 %v107
  %v353 = vunpack.c.h.b16 %v107
  %v354 = vunpack.c.l.b16 %v108
  %v355 = vunpack.c.h.b16 %v108
  %v356 = vunpack.c.l.b16 %v109
  %v357 = vunpack.c.h.b16 %v109
  %v358 = vunpack.c.l.b16 %v110
  %v359 = vunpack.c.h.b16 %v110
  %v360 = vunpack.c.l.b16 %v111
  %v361 = vunpack.c.h.b16 %v111
  %v362 = vunpack.c.l.b16 %v112
  %v363 = vunpack.c.h.b16 %v112
  %v364 = vunpack.c.l.b16 %v113
  %v365 = vunpack.c.h.b16 %v113
  %v366 = vunpack.c.l.b16 %v114
  %v367 = vunpack.c.h.b16 %v114
  %v368 = vunpack.c.l.b16 %v115
  %v369 = vunpack.c.h.b16 %v115
  %v370 = vunpack.c.l.b16 %v116
  %v371 = vunpack.c.h.b16 %v116
  %v372 = vunpack.c.l.b16 %v117
  %v373 = vunpack.c.h.b16 %v117
  %v374 = vunpack.c.l.b16 %v118
  %v375 = vunpack.c.h.b16 %v118
  %v376 = vunpack.c.l.b16 %v119
  %v377 = vunpack.c.h.b16 %v119
  %v378 = vunpack.c.l.b16 %v120
  %v379 = vunpack.c.h.b16 %v120
  %v380 = vunpack.c.l.b16 %v121
  %v381 = vunpack.c.h.b16 %v121
  %v382 = vunpack.c.l.b16 %v122
  %v383 = vunpack.c.h.b16 %v122
  %v384 = vunpack.c.l.b16 %v123
  %v385 = vunpack.c.h.b16 %v123
  %v386 = vunpack.c.l.b16 %v124
  %v387 = vunpack.c.h.b16 %v124
  %v388 = vunpack.c.l.b16 %v125
  %v389 = vunpack.c.h.b16 %v125
  %v390 = vunpack.c.l.b16 %v126
  %v391 = vunpack.c.h.b16 %v126
  %v392 = vunpack.c.l.b16 %v127
  %v393 = vunpack.c.h.b16 %v127
  %v394 = vunpack.c.l.b16 %v128
  %v395 = vunpack.c.h.b16 %v128
  %v396 = vunpack.c.l.b16 %v129
  %v397 = vunpack.c.h.b16 %v129
  %v398 = vunpack.c.l.b16 %v130
  %v399 = vunpack.c.h.b16 %v130
  %v400 = vunpack.c.l.b16 %v131
  %v401 = vunpack.c.h.b16 %v131
  %v402 = vunpack.c.l.b16 %v132
  %v403 = vunpack.c.h.b16 %v132
  %v404 = vunpack.c.l.b16 %v133
  %v405 = vunpack.c.h.b16 %v133
  %v406 = vunpack.c.l.b16 %v134
  %v407 = vunpack.c.h.b16 %v134
  %v408 = vunpack.c.l.b16 %v135
  %v409 = vunpack.c.h.b16 %v135
  %v410 = vunpack.c.l.b16 %v136
  %v411 = vunpack.c.h.b16 %v136
  %v412 = vunpack.c.l.b16 %v137
  %v413 = vunpack.c.h.b16 %v137
  %v414 = vunpack.c.l.b16 %v138
  %v415 = vunpack.c.h.b16 %v138
  %v416 = vunpack.c.l.b16 %v139
  %v417 = vunpack.c.h.b16 %v139
  %v418 = vunpack.c.l.b16 %v140
  %v419 = vunpack.c.h.b16 %v140
  %v420 = vunpack.c.l.b16 %v141
  %v421 = vunpack.c.h.b16 %v141
  %v422 = vunpack.c.l.b16 %v142
  %v423 = vunpack.c.h.b16 %v142
  %v424 = vunpack.c.l.b16 %v143
  %v425 = vunpack.c.h.b16 %v143
  %v426 = vunpack.c.l.b16 %v144
  %v427 = vunpack.c.h.b16 %v144
  %v428 = vunpack.c.l.b16 %v145
  %v429 = vunpack.c.h.b16 %v145
  %v430 = vpack.c.b16 %v304, %v302
  %v431 = vpack.c.b16 %v305, %v303
  %v432 = vpack.c.b16 %v308, %v306
  %v433 = vpack.c.b16 %v309, %v307
  %v434 = vpack.c.b16 %v312, %v310
  %v435 = vpack.c.b16 %v313, %v311
  %v436 = vpack.c.b16 %v316, %v314
  %v437 = vpack.c.b16 %v317, %v315
  %v438 = vpack.c.b16 %v320, %v318
  %v439 = vpack.c.b16 %v321, %v319
  %v440 = vpack.c.b16 %v324, %v322
  %v441 = vpack.c.b16 %v325, %v323
  %v442 = vpack.c.b16 %v328, %v326
  %v443 = vpack.c.b16 %v329, %v327
  %v444 = vpack.c.b16 %v332, %v330
  %v445 = vpack.c.b16 %v333, %v331
  %v446 = vpack.c.b16 %v336, %v334
  %v447 = vpack.c.b16 %v337, %v335
  %v448 = vpack.c.b16 %v340, %v338
  %v449 = vpack.c.b16 %v341, %v339
  %v450 = vpack.c.b16 %v344, %v342
  %v451 = vpack.c.b16 %v345, %v343
  %v452 = vpack.c.b16 %v348, %v346
  %v453 = vpack.c.b16 %v349, %v347
  %v454 = vpack.c.b16 %v352, %v350
  %v455 = vpack.c.b16 %v353, %v351
  %v456 = vpack.c.b16 %v356, %v354
  %v457 = vpack.c.b16 %v357, %v355
  %v458 = vpack.c.b16 %v360, %v358
  %v459 = vpack.c.b16 %v361, %v359
  %v460 = vpack.c.b16 %v364, %v362
  %v461 = vpack.c.b16 %v365, %v363
  %v462 = vpack.c.b16 %v368, %v366
  %v463 = vpack.c.b16 %v369, %v367
  %v464 = vpack.c.b16 %v372, %v370
  %v465 = vpack.c.b16 %v373, %v371
  %v466 = vpack.c.b16 %v376, %v374
  %v467 = vpack.c.b16 %v377, %v375
  %v468 = vpack.c.b16 %v380, %v378
  %v469 = vpack.c.b16 %v381, %v379
  %v470 = vpack.c.b16 %v384, %v382
  %v471 = vpack.c.b16 %v385, %v383
  %v472 = vpack.c.b16 %v388, %v386
  %v473 = vpack.c.b16 %v389, %v387
  %v474 = vpack.c.b16 %v392, %v390
  %v475 = vpack.c.b16 %v393, %v391
  %v476 = vpack.c.b16 %v396, %v394
  %v477 = vpack.c.b16 %v397, %v395
  %v478 = vpack.c.b16 %v400, %v398
  %v479 = vpack.c.b16 %v401, %v399
  %v480 = vpack.c.b16 %v404, %v402
  %v481 = vpack.c.b16 %v405, %v403
  %v482 = vpack.c.b16 %v408, %v406
  %v483 = vpack.c.b16 %v409, %v407
  %v484 = vpack.c.b16 %v412, %v410
  %v485 = vpack.c.b16 %v413, %v411
  %v486 = vpack.c.b16 %v416, %v414
  %v487 = vpack.c.b16 %v417, %v415
  %v488 = vpack.c.b16 %v420, %v418
  %v489 = vpack.c.b16 %v421, %v419
  %v490 = vpack.c.b16 %v424, %v422
  %v491 = vpack.c.b16 %v425, %v423
  %v492 = vpack.c.b16 %v428, %v426
  %v493 = vpack.c.b16 %v429, %v427
  %558 = vmatprep.subr.bf16.mxu0 %v431
  %559 = vmatpush1.bf16.msra.mxu0 %v430
  %560 = vmatprep.subr.bf16.mxu0 %v433
  %561 = vmatpush1.bf16.msra.mxu0 %v432
  %562 = vmatprep.subr.bf16.mxu0 %v435
  %563 = vmatpush1.bf16.msra.mxu0 %v434
  %564 = vmatprep.subr.bf16.mxu0 %v437
  %565 = vmatpush1.bf16.msra.mxu0 %v436
  %566 = vmatprep.subr.bf16.mxu0 %v439
  %567 = vmatpush1.bf16.msra.mxu0 %v438
  %568 = vmatprep.subr.bf16.mxu0 %v441
  %569 = vmatpush1.bf16.msra.mxu0 %v440
  %570 = vmatprep.subr.bf16.mxu0 %v443
  %571 = vmatpush1.bf16.msra.mxu0 %v442
  %572 = vmatprep.subr.bf16.mxu0 %v445
  %573 = vmatpush1.bf16.msra.mxu0 %v444
  %574 = vmatprep.subr.bf16.mxu0 %v447
  %575 = vmatpush1.bf16.msra.mxu0 %v446
  %576 = vmatprep.subr.bf16.mxu0 %v449
  %577 = vmatpush1.bf16.msra.mxu0 %v448
  %578 = vmatprep.subr.bf16.mxu0 %v451
  %579 = vmatpush1.bf16.msra.mxu0 %v450
  %580 = vmatprep.subr.bf16.mxu0 %v453
  %581 = vmatpush1.bf16.msra.mxu0 %v452
  %582 = vmatprep.subr.bf16.mxu0 %v455
  %583 = vmatpush1.bf16.msra.mxu0 %v454
  %584 = vmatprep.subr.bf16.mxu0 %v457
  %585 = vmatpush1.bf16.msra.mxu0 %v456
  %586 = vmatprep.subr.bf16.mxu0 %v459
  %587 = vmatpush1.bf16.msra.mxu0 %v458
  %588 = vmatprep.subr.bf16.mxu0 %v461
  %589 = vmatpush1.bf16.msra.mxu0 %v460
  %590 = vmatprep.mubr.bf16.mxu0 %v207
  %591 = vmatmul.mubr.bf16.gmra.mrb[0].mxu0 %v206
  %v592 = vpop.f32.mrb[0].mxu0
  %v593 = vadd.f32 %v151, %v592
  %v594 = vpop.f32.mrb[0].mxu0
  %v595 = vadd.f32 %v155, %v594
  %v596 = vpop.f32.mrb[0].mxu0
  %v597 = vadd.f32 %v151, %v596
  %v598 = vpop.f32.mrb[0].mxu0
  %v599 = vadd.f32 %v155, %v598
  %600 = vmatprep.mubr.bf16.mxu0 %v211
  %601 = vmatmul.mubr.bf16.gmra.mrb[0].mxu0 %v210
  %v602 = vpop.f32.mrb[0].mxu0
  %v603 = vadd.f32 %v151, %v602
  %v604 = vpop.f32.mrb[0].mxu0
  %v605 = vadd.f32 %v155, %v604
  %v606 = vpop.f32.mrb[0].mxu0
  %v607 = vadd.f32 %v151, %v606
  %v608 = vpop.f32.mrb[0].mxu0
  %v609 = vadd.f32 %v155, %v608
  %610 = vmatprep.mubr.bf16.mxu0 %v215
  %611 = vmatmul.mubr.bf16.gmra.mrb[0].mxu0 %v214
  %v612 = vpop.f32.mrb[0].mxu0
  %v613 = vadd.f32 %v151, %v612
  %v614 = vpop.f32.mrb[0].mxu0
  %v615 = vadd.f32 %v155, %v614
  %v616 = vpop.f32.mrb[0].mxu0
  %v617 = vadd.f32 %v151, %v616
  %v618 = vpop.f32.mrb[0].mxu0
  %v619 = vadd.f32 %v155, %v618
  %620 = vmatprep.mubr.bf16.mxu0 %v219
  %621 = vmatmul.mubr.bf16.gmra.mrb[0].mxu0 %v218
  %v622 = vpop.f32.mrb[0].mxu0
  %v623 = vadd.f32 %v151, %v622
  %v624 = vpop.f32.mrb[0].mxu0
  %v625 = vadd.f32 %v155, %v624
  %v626 = vpop.f32.mrb[0].mxu0
  %v627 = vadd.f32 %v151, %v626
  %v628 = vpop.f32.mrb[0].mxu0
  %v629 = vadd.f32 %v155, %v628
  %630 = vdwg.mxu0
  %631 = vmatprep.subr.bf16.mxu0 %v463
  %632 = vmatpush1.bf16.msra.mxu0 %v462
  %633 = vmatprep.subr.bf16.mxu0 %v465
  %634 = vmatpush1.bf16.msra.mxu0 %v464
  %635 = vmatprep.subr.bf16.mxu0 %v467
  %636 = vmatpush1.bf16.msra.mxu0 %v466
  %637 = vmatprep.subr.bf16.mxu0 %v469
  %638 = vmatpush1.bf16.msra.mxu0 %v468
  %639 = vmatprep.subr.bf16.mxu0 %v471
  %640 = vmatpush1.bf16.msra.mxu0 %v470
  %641 = vmatprep.subr.bf16.mxu0 %v473
  %642 = vmatpush1.bf16.msra.mxu0 %v472
  %643 = vmatprep.subr.bf16.mxu0 %v475
  %644 = vmatpush1.bf16.msra.mxu0 %v474
  %645 = vmatprep.subr.bf16.mxu0 %v477
  %646 = vmatpush1.bf16.msra.mxu0 %v476
  %647 = vmatprep.subr.bf16.mxu0 %v479
  %648 = vmatpush1.bf16.msra.mxu0 %v478
  %649 = vmatprep.subr.bf16.mxu0 %v481
  %650 = vmatpush1.bf16.msra.mxu0 %v480
  %651 = vmatprep.subr.bf16.mxu0 %v483
  %652 = vmatpush1.bf16.msra.mxu0 %v482
  %653 = vmatprep.subr.bf16.mxu0 %v485
  %654 = vmatpush1.bf16.msra.mxu0 %v484
  %655 = vmatprep.subr.bf16.mxu0 %v487
  %656 = vmatpush1.bf16.msra.mxu0 %v486
  %657 = vmatprep.subr.bf16.mxu0 %v489
  %658 = vmatpush1.bf16.msra.mxu0 %v488
  %659 = vmatprep.subr.bf16.mxu0 %v491
  %660 = vmatpush1.bf16.msra.mxu0 %v490
  %661 = vmatprep.subr.bf16.mxu0 %v493
  %662 = vmatpush1.bf16.msra.mxu0 %v492
  %663 = vmatprep.mubr.bf16.mxu0 %v209
  %664 = vmatmul.mubr.bf16.gmra.mrb[0].mxu0 %v208
  %v665 = vpop.f32.mrb[0].mxu0
  %v666 = vadd.f32 %v593, %v665
  %v667 = vpop.f32.mrb[0].mxu0
  %v668 = vadd.f32 %v595, %v667
  %v669 = vpop.f32.mrb[0].mxu0
  %v670 = vadd.f32 %v597, %v669
  %v671 = vpop.f32.mrb[0].mxu0
  %v672 = vadd.f32 %v599, %v671
  %673 = vmatprep.mubr.bf16.mxu0 %v213
  %674 = vmatmul.mubr.bf16.gmra.mrb[0].mxu0 %v212
  %v675 = vpop.f32.mrb[0].mxu0
  %v676 = vadd.f32 %v603, %v675
  %v677 = vpop.f32.mrb[0].mxu0
  %v678 = vadd.f32 %v605, %v677
  %v679 = vpop.f32.mrb[0].mxu0
  %v680 = vadd.f32 %v607, %v679
  %v681 = vpop.f32.mrb[0].mxu0
  %v682 = vadd.f32 %v609, %v681
  %683 = vmatprep.mubr.bf16.mxu0 %v217
  %684 = vmatmul.mubr.bf16.gmra.mrb[0].mxu0 %v216
  %v685 = vpop.f32.mrb[0].mxu0
  %v686 = vadd.f32 %v613, %v685
  %v687 = vpop.f32.mrb[0].mxu0
  %v688 = vadd.f32 %v615, %v687
  %v689 = vpop.f32.mrb[0].mxu0
  %v690 = vadd.f32 %v617, %v689
  %v691 = vpop.f32.mrb[0].mxu0
  %v692 = vadd.f32 %v619, %v691
  %693 = vmatprep.mubr.bf16.mxu0 %v221
  %694 = vmatmul.mubr.bf16.gmra.mrb[0].mxu0 %v220
  %v695 = vpop.f32.mrb[0].mxu0
  %v696 = vadd.f32 %v623, %v695
  %v697 = vpop.f32.mrb[0].mxu0
  %v698 = vadd.f32 %v625, %v697
  %v699 = vpop.f32.mrb[0].mxu0
  %v700 = vadd.f32 %v627, %v699
  %v701 = vpop.f32.mrb[0].mxu0
  %v702 = vadd.f32 %v629, %v701
  %703 = vdwg.mxu0
  %v704 = vld [vmem:[%s2] sm:$0xff]
  %v705 = vld [vmem:[%s2 + $0x8] sm:$0xff]
  %v706 = vld [vmem:[%s2 + $0x10] sm:$0xff]
  %v707 = vld [vmem:[%s2 + $0x18] sm:$0xff]
  %v708 = vld [vmem:[%s2 + $0x20] sm:$0xff]
  %v709 = vld [vmem:[%s2 + $0x28] sm:$0xff]
  %v710 = vld [vmem:[%s2 + $0x30] sm:$0xff]
  %v711 = vld [vmem:[%s2 + $0x38] sm:$0xff]
  %v712 = vld [vmem:[%s4] sm:$0x1]
  %v721 = vunpack.c.l.b16 %v704
  %v722 = vunpack.c.h.b16 %v704
  %v723 = vunpack.c.l.b16 %v705
  %v724 = vunpack.c.h.b16 %v705
  %v725 = vunpack.c.l.b16 %v706
  %v726 = vunpack.c.h.b16 %v706
  %v727 = vunpack.c.l.b16 %v707
  %v728 = vunpack.c.h.b16 %v707
  %v729 = vunpack.c.l.b16 %v708
  %v730 = vunpack.c.h.b16 %v708
  %v731 = vunpack.c.l.b16 %v709
  %v732 = vunpack.c.h.b16 %v709
  %v733 = vunpack.c.l.b16 %v710
  %v734 = vunpack.c.h.b16 %v710
  %v735 = vunpack.c.l.b16 %v711
  %v736 = vunpack.c.h.b16 %v711
  %v737 = vpack.c.b16 %v723, %v721
  %v738 = vpack.c.b16 %v724, %v722
  %v739 = vpack.c.b16 %v727, %v725
  %v740 = vpack.c.b16 %v728, %v726
  %v741 = vpack.c.b16 %v731, %v729
  %v742 = vpack.c.b16 %v732, %v730
  %v743 = vpack.c.b16 %v735, %v733
  %v744 = vpack.c.b16 %v736, %v734
  %vm753 = vcmask 523264
  %v755 = vsel %vm753, 0, 0
  %757 = vmatprep.subr.bf16.mxu0 %v738
  %758 = vmatpush1.bf16.msra.mxu0 %v737
  %759 = vmatprep.subr.bf16.mxu0 %v740
  %760 = vmatpush1.bf16.msra.mxu0 %v739
  %761 = vmatprep.subr.bf16.mxu0 %v742
  %762 = vmatpush1.bf16.msra.mxu0 %v741
  %763 = vmatprep.subr.bf16.mxu0 %v744
  %764 = vmatpush1.bf16.msra.mxu0 %v743
  %765 = vmatprep.subr.bf16.mxu0 0
  %766 = vmatpush1.bf16.msra.mxu0 0
  %767 = vmatprep.subr.bf16.mxu0 0
  %768 = vmatpush1.bf16.msra.mxu0 0
  %769 = vmatprep.subr.bf16.mxu0 0
  %770 = vmatpush1.bf16.msra.mxu0 0
  %771 = vmatprep.subr.bf16.mxu0 0
  %772 = vmatpush1.bf16.msra.mxu0 0
  %773 = vmatprep.subr.bf16.mxu0 0
  %774 = vmatpush1.bf16.msra.mxu0 0
  %775 = vmatprep.subr.bf16.mxu0 0
  %776 = vmatpush1.bf16.msra.mxu0 0
  %777 = vmatprep.subr.bf16.mxu0 0
  %778 = vmatpush1.bf16.msra.mxu0 0
  %779 = vmatprep.subr.bf16.mxu0 0
  %780 = vmatpush1.bf16.msra.mxu0 0
  %781 = vmatprep.subr.bf16.mxu0 0
  %782 = vmatpush1.bf16.msra.mxu0 0
  %783 = vmatprep.subr.bf16.mxu0 0
  %784 = vmatpush1.bf16.msra.mxu0 0
  %785 = vmatprep.subr.bf16.mxu0 0
  %786 = vmatpush1.bf16.msra.mxu0 0
  %787 = vmatprep.subr.bf16.mxu0 0
  %788 = vmatpush1.bf16.msra.mxu0 0
  %789 = vmatprep.mubr.bf16.mxu0 0
  %790 = vmatmul.mubr.bf16.gmra.mrb[0].mxu0 %v755
  %v791 = vpop.f32.mrb[0].mxu0
  %v792 = vadd.f32 0.0, %v791
  %v793 = vpop.f32.mrb[0].mxu0
  %v794 = vadd.f32 0.0, %v793
  %v795 = vpop.f32.mrb[0].mxu0
  %v796 = vpop.f32.mrb[0].mxu0
  %797 = vdwg.mxu0
  %v798 = vadd.f32 %v666, %v792
  %v799 = vxor.u32 %v798, 2147483648
  %v800 = vmul.f32 %v799, 1.442695
  %v801 = vpow.pop %v800
  %v802 = vadd.f32 %v801, 1.0
  %v803 = vrcp.pop %v802
  %v804 = vmul.f32 1.0, %v803
  %v806 = vlaneseq
  %v807 = vshrl.u32 %v806, 7
  %v808 = vsub.s32 0, %v807
  %v809 = vrot.slane %v712, %v808
  %v811 = vadd.f32 %v794, %v809
  %v812 = vmul.f32 %v804, %v811
  %v813 = vadd.f32 %v668, %v812
  %v814 = vtanh.pop %v813
  %v815 = vsub.f32 1.0, %v804
  %817 = vrot.lane.b32.xlu0 %v814, 64
  %v818 = vpop.permute.xlu0 %817
  %v820 = vmul.f32 %v815, %v818
  %v821 = vmul.f32 %v804, 0.0
  %v822 = vadd.f32 %v820, %v821
  %824 = vrot.lane.b32.xlu0 %v822, 64
  %v825 = vpop.permute.xlu0 %824
  %827 = vst.msk [vmem:[#allocation2] sm:$0xff] %vm753, %v825
  %vm828 = vcmask 1048064
  %829 = vst.msk [vmem:[#allocation2 + $0x38] sm:$0xff] %vm828, %v822
  %v830 = vpack.c.bf16 %v822, %v822
  %832 = vrot.lane.b32.xlu0 %v830, 64
  %v833 = vpop.permute.xlu0 %832
  %v835 = vsel %vm753, %v833, 0
  %837 = vmatprep.subr.bf16.mxu0 %v738
  %838 = vmatpush1.bf16.msra.mxu0 %v737
  %839 = vmatprep.subr.bf16.mxu0 %v740
  %840 = vmatpush1.bf16.msra.mxu0 %v739
  %841 = vmatprep.subr.bf16.mxu0 %v742
  %842 = vmatpush1.bf16.msra.mxu0 %v741
  %843 = vmatprep.subr.bf16.mxu0 %v744
  %844 = vmatpush1.bf16.msra.mxu0 %v743
  %845 = vmatprep.subr.bf16.mxu0 0
  %846 = vmatpush1.bf16.msra.mxu0 0
  %847 = vmatprep.subr.bf16.mxu0 0
  %848 = vmatpush1.bf16.msra.mxu0 0
  %849 = vmatprep.subr.bf16.mxu0 0
  %850 = vmatpush1.bf16.msra.mxu0 0
  %851 = vmatprep.subr.bf16.mxu0 0
  %852 = vmatpush1.bf16.msra.mxu0 0
  %853 = vmatprep.subr.bf16.mxu0 0
  %854 = vmatpush1.bf16.msra.mxu0 0
  %855 = vmatprep.subr.bf16.mxu0 0
  %856 = vmatpush1.bf16.msra.mxu0 0
  %857 = vmatprep.subr.bf16.mxu0 0
  %858 = vmatpush1.bf16.msra.mxu0 0
  %859 = vmatprep.subr.bf16.mxu0 0
  %860 = vmatpush1.bf16.msra.mxu0 0
  %861 = vmatprep.subr.bf16.mxu0 0
  %862 = vmatpush1.bf16.msra.mxu0 0
  %863 = vmatprep.subr.bf16.mxu0 0
  %864 = vmatpush1.bf16.msra.mxu0 0
  %865 = vmatprep.subr.bf16.mxu0 0
  %866 = vmatpush1.bf16.msra.mxu0 0
  %867 = vmatprep.subr.bf16.mxu0 0
  %868 = vmatpush1.bf16.msra.mxu0 0
  %869 = vmatprep.mubr.bf16.mxu0 0
  %870 = vmatmul.mubr.bf16.gmra.mrb[0].mxu0 %v835
  %v871 = vpop.f32.mrb[0].mxu0
  %v872 = vadd.f32 0.0, %v871
  %v873 = vpop.f32.mrb[0].mxu0
  %v874 = vadd.f32 0.0, %v873
  %v875 = vpop.f32.mrb[0].mxu0
  %v876 = vpop.f32.mrb[0].mxu0
  %877 = vdwg.mxu0
  %v878 = vadd.f32 %v670, %v872
  %v879 = vxor.u32 %v878, 2147483648
  %v880 = vmul.f32 %v879, 1.442695
  %v881 = vpow.pop %v880
  %v882 = vadd.f32 %v881, 1.0
  %v883 = vrcp.pop %v882
  %v884 = vmul.f32 1.0, %v883
  %v885 = vadd.f32 %v874, %v809
  %v886 = vmul.f32 %v884, %v885
  %v887 = vadd.f32 %v672, %v886
  %v888 = vtanh.pop %v887
  %v889 = vsub.f32 1.0, %v884
  %891 = vrot.lane.b32.xlu0 %v888, 64
  %v892 = vpop.permute.xlu0 %891
  %v894 = vmul.f32 %v889, %v892
  %v895 = vmul.f32 %v884, %v822
  %v896 = vadd.f32 %v894, %v895
  %898 = vrot.lane.b32.xlu0 %v896, 64
  %v899 = vpop.permute.xlu0 %898
  %901 = vst.msk [vmem:[#allocation2 + $0x8] sm:$0xff] %vm753, %v899
  %902 = vst.msk [vmem:[#allocation2 + $0x30] sm:$0xff] %vm828, %v896
  %v903 = vpack.c.bf16 %v896, %v896
  %905 = vrot.lane.b32.xlu0 %v903, 64
  %v906 = vpop.permute.xlu0 %905
  %v908 = vsel %vm753, %v906, 0
  %910 = vmatprep.subr.bf16.mxu0 %v738
  %911 = vmatpush1.bf16.msra.mxu0 %v737
  %912 = vmatprep.subr.bf16.mxu0 %v740
  %913 = vmatpush1.bf16.msra.mxu0 %v739
  %914 = vmatprep.subr.bf16.mxu0 %v742
  %915 = vmatpush1.bf16.msra.mxu0 %v741
  %916 = vmatprep.subr.bf16.mxu0 %v744
  %917 = vmatpush1.bf16.msra.mxu0 %v743
  %918 = vmatprep.subr.bf16.mxu0 0
  %919 = vmatpush1.bf16.msra.mxu0 0
  %920 = vmatprep.subr.bf16.mxu0 0
  %921 = vmatpush1.bf16.msra.mxu0 0
  %922 = vmatprep.subr.bf16.mxu0 0
  %923 = vmatpush1.bf16.msra.mxu0 0
  %924 = vmatprep.subr.bf16.mxu0 0
  %925 = vmatpush1.bf16.msra.mxu0 0
  %926 = vmatprep.subr.bf16.mxu0 0
  %927 = vmatpush1.bf16.msra.mxu0 0
  %928 = vmatprep.subr.bf16.mxu0 0
  %929 = vmatpush1.bf16.msra.mxu0 0
  %930 = vmatprep.subr.bf16.mxu0 0
  %931 = vmatpush1.bf16.msra.mxu0 0
  %932 = vmatprep.subr.bf16.mxu0 0
  %933 = vmatpush1.bf16.msra.mxu0 0
  %934 = vmatprep.subr.bf16.mxu0 0
  %935 = vmatpush1.bf16.msra.mxu0 0
  %936 = vmatprep.subr.bf16.mxu0 0
  %937 = vmatpush1.bf16.msra.mxu0 0
  %938 = vmatprep.subr.bf16.mxu0 0
  %939 = vmatpush1.bf16.msra.mxu0 0
  %940 = vmatprep.subr.bf16.mxu0 0
  %941 = vmatpush1.bf16.msra.mxu0 0
  %942 = vmatprep.mubr.bf16.mxu0 0
  %943 = vmatmul.mubr.bf16.gmra.mrb[0].mxu0 %v908
  %v944 = vpop.f32.mrb[0].mxu0
  %v945 = vadd.f32 0.0, %v944
  %v946 = vpop.f32.mrb[0].mxu0
  %v947 = vadd.f32 0.0, %v946
  %v948 = vpop.f32.mrb[0].mxu0
  %v949 = vpop.f32.mrb[0].mxu0
  %950 = vdwg.mxu0
  %v951 = vadd.f32 %v676, %v945
  %v952 = vxor.u32 %v951, 2147483648
  %v953 = vmul.f32 %v952, 1.442695
  %v954 = vpow.pop %v953
  %v955 = vadd.f32 %v954, 1.0
  %v956 = vrcp.pop %v955
  %v957 = vmul.f32 1.0, %v956
  %v958 = vadd.f32 %v947, %v809
  %v959 = vmul.f32 %v957, %v958
  %v960 = vadd.f32 %v678, %v959
  %v961 = vtanh.pop %v960
  %v962 = vsub.f32 1.0, %v957
  %964 = vrot.lane.b32.xlu0 %v961, 64
  %v965 = vpop.permute.xlu0 %964
  %v967 = vmul.f32 %v962, %v965
  %v968 = vmul.f32 %v957, %v896
  %v969 = vadd.f32 %v967, %v968
  %971 = vrot.lane.b32.xlu0 %v969, 64
  %v972 = vpop.permute.xlu0 %971
  %974 = vst.msk [vmem:[#allocation2 + $0x10] sm:$0xff] %vm753, %v972
  %975 = vst.msk [vmem:[#allocation2 + $0x28] sm:$0xff] %vm828, %v969
  %v976 = vpack.c.bf16 %v969, %v969
  %978 = vrot.lane.b32.xlu0 %v976, 64
  %v979 = vpop.permute.xlu0 %978
  %v981 = vsel %vm753, %v979, 0
  %983 = vmatprep.subr.bf16.mxu0 %v738
  %984 = vmatpush1.bf16.msra.mxu0 %v737
  %985 = vmatprep.subr.bf16.mxu0 %v740
  %986 = vmatpush1.bf16.msra.mxu0 %v739
  %987 = vmatprep.subr.bf16.mxu0 %v742
  %988 = vmatpush1.bf16.msra.mxu0 %v741
  %989 = vmatprep.subr.bf16.mxu0 %v744
  %990 = vmatpush1.bf16.msra.mxu0 %v743
  %991 = vmatprep.subr.bf16.mxu0 0
  %992 = vmatpush1.bf16.msra.mxu0 0
  %993 = vmatprep.subr.bf16.mxu0 0
  %994 = vmatpush1.bf16.msra.mxu0 0
  %995 = vmatprep.subr.bf16.mxu0 0
  %996 = vmatpush1.bf16.msra.mxu0 0
  %997 = vmatprep.subr.bf16.mxu0 0
  %998 = vmatpush1.bf16.msra.mxu0 0
  %999 = vmatprep.subr.bf16.mxu0 0
  %1000 = vmatpush1.bf16.msra.mxu0 0
  %1001 = vmatprep.subr.bf16.mxu0 0
  %1002 = vmatpush1.bf16.msra.mxu0 0
  %1003 = vmatprep.subr.bf16.mxu0 0
  %1004 = vmatpush1.bf16.msra.mxu0 0
  %1005 = vmatprep.subr.bf16.mxu0 0
  %1006 = vmatpush1.bf16.msra.mxu0 0
  %1007 = vmatprep.subr.bf16.mxu0 0
  %1008 = vmatpush1.bf16.msra.mxu0 0
  %1009 = vmatprep.subr.bf16.mxu0 0
  %1010 = vmatpush1.bf16.msra.mxu0 0
  %1011 = vmatprep.subr.bf16.mxu0 0
  %1012 = vmatpush1.bf16.msra.mxu0 0
  %1013 = vmatprep.subr.bf16.mxu0 0
  %1014 = vmatpush1.bf16.msra.mxu0 0
  %1015 = vmatprep.mubr.bf16.mxu0 0
  %1016 = vmatmul.mubr.bf16.gmra.mrb[0].mxu0 %v981
  %v1017 = vpop.f32.mrb[0].mxu0
  %v1018 = vadd.f32 0.0, %v1017
  %v1019 = vpop.f32.mrb[0].mxu0
  %v1020 = vadd.f32 0.0, %v1019
  %v1021 = vpop.f32.mrb[0].mxu0
  %v1022 = vpop.f32.mrb[0].mxu0
  %1023 = vdwg.mxu0
  %v1024 = vadd.f32 %v680, %v1018
  %v1025 = vxor.u32 %v1024, 2147483648
  %v1026 = vmul.f32 %v1025, 1.442695
  %v1027 = vpow.pop %v1026
  %v1028 = vadd.f32 %v1027, 1.0
  %v1029 = vrcp.pop %v1028
  %v1030 = vmul.f32 1.0, %v1029
  %v1031 = vadd.f32 %v1020, %v809
  %v1032 = vmul.f32 %v1030, %v1031
  %v1033 = vadd.f32 %v682, %v1032
  %v1034 = vtanh.pop %v1033
  %v1035 = vsub.f32 1.0, %v1030
  %1037 = vrot.lane.b32.xlu0 %v1034, 64
  %v1038 = vpop.permute.xlu0 %1037
  %v1040 = vmul.f32 %v1035, %v1038
  %v1041 = vmul.f32 %v1030, %v969
  %v1042 = vadd.f32 %v1040, %v1041
  %1044 = vrot.lane.b32.xlu0 %v1042, 64
  %v1045 = vpop.permute.xlu0 %1044
  %1047 = vst.msk [vmem:[#allocation2 + $0x18] sm:$0xff] %vm753, %v1045
  %1048 = vst.msk [vmem:[#allocation2 + $0x20] sm:$0xff] %vm828, %v1042
  %v1049 = vpack.c.bf16 %v1042, %v1042
  %1051 = vrot.lane.b32.xlu0 %v1049, 64
  %v1052 = vpop.permute.xlu0 %1051
  %v1054 = vsel %vm753, %v1052, 0
  %1056 = vmatprep.subr.bf16.mxu0 %v738
  %1057 = vmatpush1.bf16.msra.mxu0 %v737
  %1058 = vmatprep.subr.bf16.mxu0 %v740
  %1059 = vmatpush1.bf16.msra.mxu0 %v739
  %1060 = vmatprep.subr.bf16.mxu0 %v742
  %1061 = vmatpush1.bf16.msra.mxu0 %v741
  %1062 = vmatprep.subr.bf16.mxu0 %v744
  %1063 = vmatpush1.bf16.msra.mxu0 %v743
  %1064 = vmatprep.subr.bf16.mxu0 0
  %1065 = vmatpush1.bf16.msra.mxu0 0
  %1066 = vmatprep.subr.bf16.mxu0 0
  %1067 = vmatpush1.bf16.msra.mxu0 0
  %1068 = vmatprep.subr.bf16.mxu0 0
  %1069 = vmatpush1.bf16.msra.mxu0 0
  %1070 = vmatprep.subr.bf16.mxu0 0
  %1071 = vmatpush1.bf16.msra.mxu0 0
  %1072 = vmatprep.subr.bf16.mxu0 0
  %1073 = vmatpush1.bf16.msra.mxu0 0
  %1074 = vmatprep.subr.bf16.mxu0 0
  %1075 = vmatpush1.bf16.msra.mxu0 0
  %1076 = vmatprep.subr.bf16.mxu0 0
  %1077 = vmatpush1.bf16.msra.mxu0 0
  %1078 = vmatprep.subr.bf16.mxu0 0
  %1079 = vmatpush1.bf16.msra.mxu0 0
  %1080 = vmatprep.subr.bf16.mxu0 0
  %1081 = vmatpush1.bf16.msra.mxu0 0
  %1082 = vmatprep.subr.bf16.mxu0 0
  %1083 = vmatpush1.bf16.msra.mxu0 0
  %1084 = vmatprep.subr.bf16.mxu0 0
  %1085 = vmatpush1.bf16.msra.mxu0 0
  %1086 = vmatprep.subr.bf16.mxu0 0
  %1087 = vmatpush1.bf16.msra.mxu0 0
  %1088 = vmatprep.mubr.bf16.mxu0 0
  %1089 = vmatmul.mubr.bf16.gmra.mrb[0].mxu0 %v1054
  %v1090 = vpop.f32.mrb[0].mxu0
  %v1091 = vadd.f32 0.0, %v1090
  %v1092 = vpop.f32.mrb[0].mxu0
  %v1093 = vadd.f32 0.0, %v1092
  %v1094 = vpop.f32.mrb[0].mxu0
  %v1095 = vpop.f32.mrb[0].mxu0
  %1096 = vdwg.mxu0
  %v1097 = vadd.f32 %v686, %v1091
  %v1098 = vxor.u32 %v1097, 2147483648
  %v1099 = vmul.f32 %v1098, 1.442695
  %v1100 = vpow.pop %v1099
  %v1101 = vadd.f32 %v1100, 1.0
  %v1102 = vrcp.pop %v1101
  %v1103 = vmul.f32 1.0, %v1102
  %v1104 = vadd.f32 %v1093, %v809
  %v1105 = vmul.f32 %v1103, %v1104
  %v1106 = vadd.f32 %v688, %v1105
  %v1107 = vtanh.pop %v1106
  %v1108 = vsub.f32 1.0, %v1103
  %1110 = vrot.lane.b32.xlu0 %v1107, 64
  %v1111 = vpop.permute.xlu0 %1110
  %v1113 = vmul.f32 %v1108, %v1111
  %v1114 = vmul.f32 %v1103, %v1042
  %v1115 = vadd.f32 %v1113, %v1114
  %1117 = vrot.lane.b32.xlu0 %v1115, 64
  %v1118 = vpop.permute.xlu0 %1117
  %1120 = vst.msk [vmem:[#allocation2 + $0x20] sm:$0xff] %vm753, %v1118
  %1121 = vst.msk [vmem:[#allocation2 + $0x18] sm:$0xff] %vm828, %v1115
  %v1122 = vpack.c.bf16 %v1115, %v1115
  %1124 = vrot.lane.b32.xlu0 %v1122, 64
  %v1125 = vpop.permute.xlu0 %1124
  %v1127 = vsel %vm753, %v1125, 0
  %1129 = vmatprep.subr.bf16.mxu0 %v738
  %1130 = vmatpush1.bf16.msra.mxu0 %v737
  %1131 = vmatprep.subr.bf16.mxu0 %v740
  %1132 = vmatpush1.bf16.msra.mxu0 %v739
  %1133 = vmatprep.subr.bf16.mxu0 %v742
  %1134 = vmatpush1.bf16.msra.mxu0 %v741
  %1135 = vmatprep.subr.bf16.mxu0 %v744
  %1136 = vmatpush1.bf16.msra.mxu0 %v743
  %1137 = vmatprep.subr.bf16.mxu0 0
  %1138 = vmatpush1.bf16.msra.mxu0 0
  %1139 = vmatprep.subr.bf16.mxu0 0
  %1140 = vmatpush1.bf16.msra.mxu0 0
  %1141 = vmatprep.subr.bf16.mxu0 0
  %1142 = vmatpush1.bf16.msra.mxu0 0
  %1143 = vmatprep.subr.bf16.mxu0 0
  %1144 = vmatpush1.bf16.msra.mxu0 0
  %1145 = vmatprep.subr.bf16.mxu0 0
  %1146 = vmatpush1.bf16.msra.mxu0 0
  %1147 = vmatprep.subr.bf16.mxu0 0
  %1148 = vmatpush1.bf16.msra.mxu0 0
  %1149 = vmatprep.subr.bf16.mxu0 0
  %1150 = vmatpush1.bf16.msra.mxu0 0
  %1151 = vmatprep.subr.bf16.mxu0 0
  %1152 = vmatpush1.bf16.msra.mxu0 0
  %1153 = vmatprep.subr.bf16.mxu0 0
  %1154 = vmatpush1.bf16.msra.mxu0 0
  %1155 = vmatprep.subr.bf16.mxu0 0
  %1156 = vmatpush1.bf16.msra.mxu0 0
  %1157 = vmatprep.subr.bf16.mxu0 0
  %1158 = vmatpush1.bf16.msra.mxu0 0
  %1159 = vmatprep.subr.bf16.mxu0 0
  %1160 = vmatpush1.bf16.msra.mxu0 0
  %1161 = vmatprep.mubr.bf16.mxu0 0
  %1162 = vmatmul.mubr.bf16.gmra.mrb[0].mxu0 %v1127
  %v1163 = vpop.f32.mrb[0].mxu0
  %v1164 = vadd.f32 0.0, %v1163
  %v1165 = vpop.f32.mrb[0].mxu0
  %v1166 = vadd.f32 0.0, %v1165
  %v1167 = vpop.f32.mrb[0].mxu0
  %v1168 = vpop.f32.mrb[0].mxu0
  %1169 = vdwg.mxu0
  %v1170 = vadd.f32 %v690, %v1164
  %v1171 = vxor.u32 %v1170, 2147483648
  %v1172 = vmul.f32 %v1171, 1.442695
  %v1173 = vpow.pop %v1172
  %v1174 = vadd.f32 %v1173, 1.0
  %v1175 = vrcp.pop %v1174
  %v1176 = vmul.f32 1.0, %v1175
  %v1177 = vadd.f32 %v1166, %v809
  %v1178 = vmul.f32 %v1176, %v1177
  %v1179 = vadd.f32 %v692, %v1178
  %v1180 = vtanh.pop %v1179
  %v1181 = vsub.f32 1.0, %v1176
  %1183 = vrot.lane.b32.xlu0 %v1180, 64
  %v1184 = vpop.permute.xlu0 %1183
  %v1186 = vmul.f32 %v1181, %v1184
  %v1187 = vmul.f32 %v1176, %v1115
  %v1188 = vadd.f32 %v1186, %v1187
  %1190 = vrot.lane.b32.xlu0 %v1188, 64
  %v1191 = vpop.permute.xlu0 %1190
  %1193 = vst.msk [vmem:[#allocation2 + $0x28] sm:$0xff] %vm753, %v1191
  %1194 = vst.msk [vmem:[#allocation2 + $0x10] sm:$0xff] %vm828, %v1188
  %v1195 = vpack.c.bf16 %v1188, %v1188
  %1197 = vrot.lane.b32.xlu0 %v1195, 64
  %v1198 = vpop.permute.xlu0 %1197
  %v1200 = vsel %vm753, %v1198, 0
  %1202 = vmatprep.subr.bf16.mxu0 %v738
  %1203 = vmatpush1.bf16.msra.mxu0 %v737
  %1204 = vmatprep.subr.bf16.mxu0 %v740
  %1205 = vmatpush1.bf16.msra.mxu0 %v739
  %1206 = vmatprep.subr.bf16.mxu0 %v742
  %1207 = vmatpush1.bf16.msra.mxu0 %v741
  %1208 = vmatprep.subr.bf16.mxu0 %v744
  %1209 = vmatpush1.bf16.msra.mxu0 %v743
  %1210 = vmatprep.subr.bf16.mxu0 0
  %1211 = vmatpush1.bf16.msra.mxu0 0
  %1212 = vmatprep.subr.bf16.mxu0 0
  %1213 = vmatpush1.bf16.msra.mxu0 0
  %1214 = vmatprep.subr.bf16.mxu0 0
  %1215 = vmatpush1.bf16.msra.mxu0 0
  %1216 = vmatprep.subr.bf16.mxu0 0
  %1217 = vmatpush1.bf16.msra.mxu0 0
  %1218 = vmatprep.subr.bf16.mxu0 0
  %1219 = vmatpush1.bf16.msra.mxu0 0
  %1220 = vmatprep.subr.bf16.mxu0 0
  %1221 = vmatpush1.bf16.msra.mxu0 0
  %1222 = vmatprep.subr.bf16.mxu0 0
  %1223 = vmatpush1.bf16.msra.mxu0 0
  %1224 = vmatprep.subr.bf16.mxu0 0
  %1225 = vmatpush1.bf16.msra.mxu0 0
  %1226 = vmatprep.subr.bf16.mxu0 0
  %1227 = vmatpush1.bf16.msra.mxu0 0
  %1228 = vmatprep.subr.bf16.mxu0 0
  %1229 = vmatpush1.bf16.msra.mxu0 0
  %1230 = vmatprep.subr.bf16.mxu0 0
  %1231 = vmatpush1.bf16.msra.mxu0 0
  %1232 = vmatprep.subr.bf16.mxu0 0
  %1233 = vmatpush1.bf16.msra.mxu0 0
  %1234 = vmatprep.mubr.bf16.mxu0 0
  %1235 = vmatmul.mubr.bf16.gmra.mrb[0].mxu0 %v1200
  %v1236 = vpop.f32.mrb[0].mxu0
  %v1237 = vadd.f32 0.0, %v1236
  %v1238 = vpop.f32.mrb[0].mxu0
  %v1239 = vadd.f32 0.0, %v1238
  %v1240 = vpop.f32.mrb[0].mxu0
  %v1241 = vpop.f32.mrb[0].mxu0
  %1242 = vdwg.mxu0
  %v1243 = vadd.f32 %v696, %v1237
  %v1244 = vxor.u32 %v1243, 2147483648
  %v1245 = vmul.f32 %v1244, 1.442695
  %v1246 = vpow.pop %v1245
  %v1247 = vadd.f32 %v1246, 1.0
  %v1248 = vrcp.pop %v1247
  %v1249 = vmul.f32 1.0, %v1248
  %v1250 = vadd.f32 %v1239, %v809
  %v1251 = vmul.f32 %v1249, %v1250
  %v1252 = vadd.f32 %v698, %v1251
  %v1253 = vtanh.pop %v1252
  %v1254 = vsub.f32 1.0, %v1249
  %1256 = vrot.lane.b32.xlu0 %v1253, 64
  %v1257 = vpop.permute.xlu0 %1256
  %v1259 = vmul.f32 %v1254, %v1257
  %v1260 = vmul.f32 %v1249, %v1188
  %v1261 = vadd.f32 %v1259, %v1260
  %1263 = vrot.lane.b32.xlu0 %v1261, 64
  %v1264 = vpop.permute.xlu0 %1263
  %1266 = vst.msk [vmem:[#allocation2 + $0x30] sm:$0xff] %vm753, %v1264
  %1267 = vst.msk [vmem:[#allocation2 + $0x8] sm:$0xff] %vm828, %v1261
  %v1268 = vpack.c.bf16 %v1261, %v1261
  %1270 = vrot.lane.b32.xlu0 %v1268, 64
  %v1271 = vpop.permute.xlu0 %1270
  %v1273 = vsel %vm753, %v1271, 0
  %1275 = vmatprep.subr.bf16.mxu0 %v738
  %1276 = vmatpush1.bf16.msra.mxu0 %v737
  %1277 = vmatprep.subr.bf16.mxu0 %v740
  %1278 = vmatpush1.bf16.msra.mxu0 %v739
  %1279 = vmatprep.subr.bf16.mxu0 %v742
  %1280 = vmatpush1.bf16.msra.mxu0 %v741
  %1281 = vmatprep.subr.bf16.mxu0 %v744
  %1282 = vmatpush1.bf16.msra.mxu0 %v743
  %1283 = vmatprep.subr.bf16.mxu0 0
  %1284 = vmatpush1.bf16.msra.mxu0 0
  %1285 = vmatprep.subr.bf16.mxu0 0
  %1286 = vmatpush1.bf16.msra.mxu0 0
  %1287 = vmatprep.subr.bf16.mxu0 0
  %1288 = vmatpush1.bf16.msra.mxu0 0
  %1289 = vmatprep.subr.bf16.mxu0 0
  %1290 = vmatpush1.bf16.msra.mxu0 0
  %1291 = vmatprep.subr.bf16.mxu0 0
  %1292 = vmatpush1.bf16.msra.mxu0 0
  %1293 = vmatprep.subr.bf16.mxu0 0
  %1294 = vmatpush1.bf16.msra.mxu0 0
  %1295 = vmatprep.subr.bf16.mxu0 0
  %1296 = vmatpush1.bf16.msra.mxu0 0
  %1297 = vmatprep.subr.bf16.mxu0 0
  %1298 = vmatpush1.bf16.msra.mxu0 0
  %1299 = vmatprep.subr.bf16.mxu0 0
  %1300 = vmatpush1.bf16.msra.mxu0 0
  %1301 = vmatprep.subr.bf16.mxu0 0
  %1302 = vmatpush1.bf16.msra.mxu0 0
  %1303 = vmatprep.subr.bf16.mxu0 0
  %1304 = vmatpush1.bf16.msra.mxu0 0
  %1305 = vmatprep.subr.bf16.mxu0 0
  %1306 = vmatpush1.bf16.msra.mxu0 0
  %1307 = vmatprep.mubr.bf16.mxu0 0
  %1308 = vmatmul.mubr.bf16.gmra.mrb[0].mxu0 %v1273
  %v1309 = vpop.f32.mrb[0].mxu0
  %v1310 = vadd.f32 0.0, %v1309
  %v1311 = vpop.f32.mrb[0].mxu0
  %v1312 = vadd.f32 0.0, %v1311
  %v1313 = vpop.f32.mrb[0].mxu0
  %v1314 = vpop.f32.mrb[0].mxu0
  %1315 = vdwg.mxu0
  %v1316 = vadd.f32 %v700, %v1310
  %v1317 = vxor.u32 %v1316, 2147483648
  %v1318 = vmul.f32 %v1317, 1.442695
  %v1319 = vpow.pop %v1318
  %v1320 = vadd.f32 %v1319, 1.0
  %v1321 = vrcp.pop %v1320
  %v1322 = vmul.f32 1.0, %v1321
  %v1323 = vadd.f32 %v1312, %v809
  %v1324 = vmul.f32 %v1322, %v1323
  %v1325 = vadd.f32 %v702, %v1324
  %v1326 = vtanh.pop %v1325
  %v1327 = vsub.f32 1.0, %v1322
  %1329 = vrot.lane.b32.xlu0 %v1326, 64
  %v1330 = vpop.permute.xlu0 %1329
  %v1332 = vmul.f32 %v1327, %v1330
  %v1333 = vmul.f32 %v1322, %v1261
  %v1334 = vadd.f32 %v1332, %v1333
  %1336 = vrot.lane.b32.xlu0 %v1334, 64
  %v1337 = vpop.permute.xlu0 %1336
  %1339 = vst.msk [vmem:[#allocation2 + $0x38] sm:$0xff] %vm753, %v1337
  %1340 = vst.msk [vmem:[#allocation2] sm:$0xff] %vm828, %v1334
  %v1341 = vld [vmem:[#allocation2] sm:$0xff]
  %v1342 = vld [vmem:[#allocation2 + $0x8] sm:$0xff]
  %v1343 = vld [vmem:[#allocation2 + $0x10] sm:$0xff]
  %v1344 = vld [vmem:[#allocation2 + $0x18] sm:$0xff]
  %v1345 = vld [vmem:[#allocation2 + $0x20] sm:$0xff]
  %v1346 = vld [vmem:[#allocation2 + $0x28] sm:$0xff]
  %v1347 = vld [vmem:[#allocation2 + $0x30] sm:$0xff]
  %v1348 = vld [vmem:[#allocation2 + $0x38] sm:$0xff]
  %v1349 = vpack.c.bf16 %v1342, %v1341
  %v1350 = vpack.c.bf16 %v1344, %v1343
  %v1351 = vpack.c.bf16 %v1346, %v1345
  %v1352 = vpack.c.bf16 %v1348, %v1347
  %v1353 = vld [vmem:[%s5] sm:$0xff]
  %v1354 = vld [vmem:[%s5 + $0x8] sm:$0xff]
  %v1355 = vld [vmem:[%s5 + $0x10] sm:$0xff]
  %v1356 = vld [vmem:[%s5 + $0x18] sm:$0xff]
  %v1357 = vld [vmem:[%s5 + $0x20] sm:$0xff]
  %v1358 = vld [vmem:[%s5 + $0x28] sm:$0xff]
  %v1359 = vld [vmem:[%s5 + $0x30] sm:$0xff]
  %v1360 = vld [vmem:[%s5 + $0x38] sm:$0xff]
  %v1361 = vld [vmem:[%s5 + $0x40] sm:$0xff]
  %v1362 = vld [vmem:[%s5 + $0x48] sm:$0xff]
  %v1363 = vld [vmem:[%s5 + $0x50] sm:$0xff]
  %v1364 = vld [vmem:[%s5 + $0x58] sm:$0xff]
  %v1365 = vld [vmem:[%s5 + $0x60] sm:$0xff]
  %v1366 = vld [vmem:[%s5 + $0x68] sm:$0xff]
  %v1367 = vld [vmem:[%s5 + $0x70] sm:$0xff]
  %v1368 = vld [vmem:[%s5 + $0x78] sm:$0xff]
  %v1369 = vld [vmem:[%s7] sm:$0x3]
  %v1371 = vlaneseq
  %v1372 = vshrl.u32 %v1371, 7
  %v1373 = vsub.s32 0, %v1372
  %v1374 = vrot.slane %v1369, %v1373
  %v1375 = vlaneseq
  %v1376 = vshrl.u32 %v1375, 7
  %v1377 = vsub.s32 1, %v1376
  %v1378 = vrot.slane %v1369, %v1377
  %v1397 = vunpack.c.l.b16 %v1353
  %v1398 = vunpack.c.h.b16 %v1353
  %v1399 = vunpack.c.l.b16 %v1354
  %v1400 = vunpack.c.h.b16 %v1354
  %v1401 = vunpack.c.l.b16 %v1355
  %v1402 = vunpack.c.h.b16 %v1355
  %v1403 = vunpack.c.l.b16 %v1356
  %v1404 = vunpack.c.h.b16 %v1356
  %v1405 = vunpack.c.l.b16 %v1357
  %v1406 = vunpack.c.h.b16 %v1357
  %v1407 = vunpack.c.l.b16 %v1358
  %v1408 = vunpack.c.h.b16 %v1358
  %v1409 = vunpack.c.l.b16 %v1359
  %v1410 = vunpack.c.h.b16 %v1359
  %v1411 = vunpack.c.l.b16 %v1360
  %v1412 = vunpack.c.h.b16 %v1360
  %v1413 = vunpack.c.l.b16 %v1361
  %v1414 = vunpack.c.h.b16 %v1361
  %v1415 = vunpack.c.l.b16 %v1362
  %v1416 = vunpack.c.h.b16 %v1362
  %v1417 = vunpack.c.l.b16 %v1363
  %v1418 = vunpack.c.h.b16 %v1363
  %v1419 = vunpack.c.l.b16 %v1364
  %v1420 = vunpack.c.h.b16 %v1364
  %v1421 = vunpack.c.l.b16 %v1365
  %v1422 = vunpack.c.h.b16 %v1365
  %v1423 = vunpack.c.l.b16 %v1366
  %v1424 = vunpack.c.h.b16 %v1366
  %v1425 = vunpack.c.l.b16 %v1367
  %v1426 = vunpack.c.h.b16 %v1367
  %v1427 = vunpack.c.l.b16 %v1368
  %v1428 = vunpack.c.h.b16 %v1368
  %v1429 = vpack.c.b16 %v1399, %v1397
  %v1430 = vpack.c.b16 %v1400, %v1398
  %v1431 = vpack.c.b16 %v1403, %v1401
  %v1432 = vpack.c.b16 %v1404, %v1402
  %v1433 = vpack.c.b16 %v1407, %v1405
  %v1434 = vpack.c.b16 %v1408, %v1406
  %v1435 = vpack.c.b16 %v1411, %v1409
  %v1436 = vpack.c.b16 %v1412, %v1410
  %v1437 = vpack.c.b16 %v1415, %v1413
  %v1438 = vpack.c.b16 %v1416, %v1414
  %v1439 = vpack.c.b16 %v1419, %v1417
  %v1440 = vpack.c.b16 %v1420, %v1418
  %v1441 = vpack.c.b16 %v1423, %v1421
  %v1442 = vpack.c.b16 %v1424, %v1422
  %v1443 = vpack.c.b16 %v1427, %v1425
  %v1444 = vpack.c.b16 %v1428, %v1426
  %1461 = vmatprep.subr.bf16.mxu0 %v1430
  %1462 = vmatpush1.bf16.msra.mxu0 %v1429
  %1463 = vmatprep.subr.bf16.mxu0 %v1432
  %1464 = vmatpush1.bf16.msra.mxu0 %v1431
  %1465 = vmatprep.subr.bf16.mxu0 %v1434
  %1466 = vmatpush1.bf16.msra.mxu0 %v1433
  %1467 = vmatprep.subr.bf16.mxu0 %v1436
  %1468 = vmatpush1.bf16.msra.mxu0 %v1435
  %1469 = vmatprep.subr.bf16.mxu0 %v1438
  %1470 = vmatpush1.bf16.msra.mxu0 %v1437
  %1471 = vmatprep.subr.bf16.mxu0 %v1440
  %1472 = vmatpush1.bf16.msra.mxu0 %v1439
  %1473 = vmatprep.subr.bf16.mxu0 %v1442
  %1474 = vmatpush1.bf16.msra.mxu0 %v1441
  %1475 = vmatprep.subr.bf16.mxu0 %v1444
  %1476 = vmatpush1.bf16.msra.mxu0 %v1443
  %1477 = vmatprep.subr.bf16.mxu0 0
  %1478 = vmatpush1.bf16.msra.mxu0 0
  %1479 = vmatprep.subr.bf16.mxu0 0
  %1480 = vmatpush1.bf16.msra.mxu0 0
  %1481 = vmatprep.subr.bf16.mxu0 0
  %1482 = vmatpush1.bf16.msra.mxu0 0
  %1483 = vmatprep.subr.bf16.mxu0 0
  %1484 = vmatpush1.bf16.msra.mxu0 0
  %1485 = vmatprep.subr.bf16.mxu0 0
  %1486 = vmatpush1.bf16.msra.mxu0 0
  %1487 = vmatprep.subr.bf16.mxu0 0
  %1488 = vmatpush1.bf16.msra.mxu0 0
  %1489 = vmatprep.subr.bf16.mxu0 0
  %1490 = vmatpush1.bf16.msra.mxu0 0
  %1491 = vmatprep.subr.bf16.mxu0 0
  %1492 = vmatpush1.bf16.msra.mxu0 0
  %1493 = vmatprep.mubr.bf16.mxu0 0
  %1494 = vmatmul.mubr.bf16.gmra.mrb[0].mxu0 %v1349
  %v1495 = vpop.f32.mrb[0].mxu0
  %v1496 = vadd.f32 %v1374, %v1495
  %v1497 = vpop.f32.mrb[0].mxu0
  %v1498 = vadd.f32 %v1378, %v1497
  %v1499 = vpop.f32.mrb[0].mxu0
  %v1500 = vadd.f32 %v1374, %v1499
  %v1501 = vpop.f32.mrb[0].mxu0
  %v1502 = vadd.f32 %v1378, %v1501
  %1503 = vmatprep.mubr.bf16.mxu0 0
  %1504 = vmatmul.mubr.bf16.gmra.mrb[0].mxu0 %v1350
  %v1505 = vpop.f32.mrb[0].mxu0
  %v1506 = vadd.f32 %v1374, %v1505
  %v1507 = vpop.f32.mrb[0].mxu0
  %v1508 = vadd.f32 %v1378, %v1507
  %v1509 = vpop.f32.mrb[0].mxu0
  %v1510 = vadd.f32 %v1374, %v1509
  %v1511 = vpop.f32.mrb[0].mxu0
  %v1512 = vadd.f32 %v1378, %v1511
  %1513 = vmatprep.mubr.bf16.mxu0 0
  %1514 = vmatmul.mubr.bf16.gmra.mrb[0].mxu0 %v1351
  %v1515 = vpop.f32.mrb[0].mxu0
  %v1516 = vadd.f32 %v1374, %v1515
  %v1517 = vpop.f32.mrb[0].mxu0
  %v1518 = vadd.f32 %v1378, %v1517
  %v1519 = vpop.f32.mrb[0].mxu0
  %v1520 = vadd.f32 %v1374, %v1519
  %v1521 = vpop.f32.mrb[0].mxu0
  %v1522 = vadd.f32 %v1378, %v1521
  %1523 = vmatprep.mubr.bf16.mxu0 0
  %1524 = vmatmul.mubr.bf16.gmra.mrb[0].mxu0 %v1352
  %v1525 = vpop.f32.mrb[0].mxu0
  %v1526 = vadd.f32 %v1374, %v1525
  %v1527 = vpop.f32.mrb[0].mxu0
  %v1528 = vadd.f32 %v1378, %v1527
  %v1529 = vpop.f32.mrb[0].mxu0
  %v1530 = vadd.f32 %v1374, %v1529
  %v1531 = vpop.f32.mrb[0].mxu0
  %v1532 = vadd.f32 %v1378, %v1531
  %1533 = vdwg.mxu0
  %v1534 = vld [vmem:[%s6] sm:$0xff]
  %v1535 = vld [vmem:[%s6 + $0x8] sm:$0xff]
  %v1536 = vld [vmem:[%s6 + $0x10] sm:$0xff]
  %v1537 = vld [vmem:[%s6 + $0x18] sm:$0xff]
  %v1538 = vld [vmem:[%s6 + $0x20] sm:$0xff]
  %v1539 = vld [vmem:[%s6 + $0x28] sm:$0xff]
  %v1540 = vld [vmem:[%s6 + $0x30] sm:$0xff]
  %v1541 = vld [vmem:[%s6 + $0x38] sm:$0xff]
  %v1542 = vld [vmem:[%s8] sm:$0x1]
  %v1551 = vunpack.c.l.b16 %v1534
  %v1552 = vunpack.c.h.b16 %v1534
  %v1553 = vunpack.c.l.b16 %v1535
  %v1554 = vunpack.c.h.b16 %v1535
  %v1555 = vunpack.c.l.b16 %v1536
  %v1556 = vunpack.c.h.b16 %v1536
  %v1557 = vunpack.c.l.b16 %v1537
  %v1558 = vunpack.c.h.b16 %v1537
  %v1559 = vunpack.c.l.b16 %v1538
  %v1560 = vunpack.c.h.b16 %v1538
  %v1561 = vunpack.c.l.b16 %v1539
  %v1562 = vunpack.c.h.b16 %v1539
  %v1563 = vunpack.c.l.b16 %v1540
  %v1564 = vunpack.c.h.b16 %v1540
  %v1565 = vunpack.c.l.b16 %v1541
  %v1566 = vunpack.c.h.b16 %v1541
  %v1567 = vpack.c.b16 %v1553, %v1551
  %v1568 = vpack.c.b16 %v1554, %v1552
  %v1569 = vpack.c.b16 %v1557, %v1555
  %v1570 = vpack.c.b16 %v1558, %v1556
  %v1571 = vpack.c.b16 %v1561, %v1559
  %v1572 = vpack.c.b16 %v1562, %v1560
  %v1573 = vpack.c.b16 %v1565, %v1563
  %v1574 = vpack.c.b16 %v1566, %v1564
  %1583 = vmatprep.subr.bf16.mxu0 %v1568
  %1584 = vmatpush1.bf16.msra.mxu0 %v1567
  %1585 = vmatprep.subr.bf16.mxu0 %v1570
  %1586 = vmatpush1.bf16.msra.mxu0 %v1569
  %1587 = vmatprep.subr.bf16.mxu0 %v1572
  %1588 = vmatpush1.bf16.msra.mxu0 %v1571
  %1589 = vmatprep.subr.bf16.mxu0 %v1574
  %1590 = vmatpush1.bf16.msra.mxu0 %v1573
  %1591 = vmatprep.subr.bf16.mxu0 0
  %1592 = vmatpush1.bf16.msra.mxu0 0
  %1593 = vmatprep.subr.bf16.mxu0 0
  %1594 = vmatpush1.bf16.msra.mxu0 0
  %1595 = vmatprep.subr.bf16.mxu0 0
  %1596 = vmatpush1.bf16.msra.mxu0 0
  %1597 = vmatprep.subr.bf16.mxu0 0
  %1598 = vmatpush1.bf16.msra.mxu0 0
  %1599 = vmatprep.subr.bf16.mxu0 0
  %1600 = vmatpush1.bf16.msra.mxu0 0
  %1601 = vmatprep.subr.bf16.mxu0 0
  %1602 = vmatpush1.bf16.msra.mxu0 0
  %1603 = vmatprep.subr.bf16.mxu0 0
  %1604 = vmatpush1.bf16.msra.mxu0 0
  %1605 = vmatprep.subr.bf16.mxu0 0
  %1606 = vmatpush1.bf16.msra.mxu0 0
  %1607 = vmatprep.subr.bf16.mxu0 0
  %1608 = vmatpush1.bf16.msra.mxu0 0
  %1609 = vmatprep.subr.bf16.mxu0 0
  %1610 = vmatpush1.bf16.msra.mxu0 0
  %1611 = vmatprep.subr.bf16.mxu0 0
  %1612 = vmatpush1.bf16.msra.mxu0 0
  %1613 = vmatprep.subr.bf16.mxu0 0
  %1614 = vmatpush1.bf16.msra.mxu0 0
  %1615 = vmatprep.mubr.bf16.mxu0 0
  %1616 = vmatmul.mubr.bf16.gmra.mrb[0].mxu0 %v755
  %v1617 = vpop.f32.mrb[0].mxu0
  %v1618 = vadd.f32 0.0, %v1617
  %v1619 = vpop.f32.mrb[0].mxu0
  %v1620 = vadd.f32 0.0, %v1619
  %v1621 = vpop.f32.mrb[0].mxu0
  %v1622 = vpop.f32.mrb[0].mxu0
  %1623 = vdwg.mxu0
  %v1624 = vadd.f32 %v1496, %v1618
  %v1625 = vxor.u32 %v1624, 2147483648
  %v1626 = vmul.f32 %v1625, 1.442695
  %v1627 = vpow.pop %v1626
  %v1628 = vadd.f32 %v1627, 1.0
  %v1629 = vrcp.pop %v1628
  %v1630 = vmul.f32 1.0, %v1629
  %v1632 = vlaneseq
  %v1633 = vshrl.u32 %v1632, 7
  %v1634 = vsub.s32 0, %v1633
  %v1635 = vrot.slane %v1542, %v1634
  %v1637 = vadd.f32 %v1620, %v1635
  %v1638 = vmul.f32 %v1630, %v1637
  %v1639 = vadd.f32 %v1498, %v1638
  %v1640 = vtanh.pop %v1639
  %v1641 = vsub.f32 1.0, %v1630
  %1643 = vrot.lane.b32.xlu0 %v1640, 64
  %v1644 = vpop.permute.xlu0 %1643
  %v1646 = vmul.f32 %v1641, %v1644
  %v1647 = vmul.f32 %v1630, 0.0
  %v1648 = vadd.f32 %v1646, %v1647
  %1650 = vrot.lane.b32.xlu0 %v1648, 64
  %v1651 = vpop.permute.xlu0 %1650
  %vm1653 = vcmask 261120
  %1654 = vst.msk [vmem:[#allocation3] sm:$0xff] %vm1653, %v1651
  %vm1655 = vcmask 523520
  %1656 = vst.msk [vmem:[#allocation3 + $0x38] sm:$0xff] %vm1655, %v1651
  %v1657 = vpack.c.bf16 %v1648, %v1648
  %1659 = vrot.lane.b32.xlu0 %v1657, 64
  %v1660 = vpop.permute.xlu0 %1659
  %v1662 = vsel %vm753, %v1660, 0
  %1664 = vmatprep.subr.bf16.mxu0 %v1568
  %1665 = vmatpush1.bf16.msra.mxu0 %v1567
  %1666 = vmatprep.subr.bf16.mxu0 %v1570
  %1667 = vmatpush1.bf16.msra.mxu0 %v1569
  %1668 = vmatprep.subr.bf16.mxu0 %v1572
  %1669 = vmatpush1.bf16.msra.mxu0 %v1571
  %1670 = vmatprep.subr.bf16.mxu0 %v1574
  %1671 = vmatpush1.bf16.msra.mxu0 %v1573
  %1672 = vmatprep.subr.bf16.mxu0 0
  %1673 = vmatpush1.bf16.msra.mxu0 0
  %1674 = vmatprep.subr.bf16.mxu0 0
  %1675 = vmatpush1.bf16.msra.mxu0 0
  %1676 = vmatprep.subr.bf16.mxu0 0
  %1677 = vmatpush1.bf16.msra.mxu0 0
  %1678 = vmatprep.subr.bf16.mxu0 0
  %1679 = vmatpush1.bf16.msra.mxu0 0
  %1680 = vmatprep.subr.bf16.mxu0 0
  %1681 = vmatpush1.bf16.msra.mxu0 0
  %1682 = vmatprep.subr.bf16.mxu0 0
  %1683 = vmatpush1.bf16.msra.mxu0 0
  %1684 = vmatprep.subr.bf16.mxu0 0
  %1685 = vmatpush1.bf16.msra.mxu0 0
  %1686 = vmatprep.subr.bf16.mxu0 0
  %1687 = vmatpush1.bf16.msra.mxu0 0
  %1688 = vmatprep.subr.bf16.mxu0 0
  %1689 = vmatpush1.bf16.msra.mxu0 0
  %1690 = vmatprep.subr.bf16.mxu0 0
  %1691 = vmatpush1.bf16.msra.mxu0 0
  %1692 = vmatprep.subr.bf16.mxu0 0
  %1693 = vmatpush1.bf16.msra.mxu0 0
  %1694 = vmatprep.subr.bf16.mxu0 0
  %1695 = vmatpush1.bf16.msra.mxu0 0
  %1696 = vmatprep.mubr.bf16.mxu0 0
  %1697 = vmatmul.mubr.bf16.gmra.mrb[0].mxu0 %v1662
  %v1698 = vpop.f32.mrb[0].mxu0
  %v1699 = vadd.f32 0.0, %v1698
  %v1700 = vpop.f32.mrb[0].mxu0
  %v1701 = vadd.f32 0.0, %v1700
  %v1702 = vpop.f32.mrb[0].mxu0
  %v1703 = vpop.f32.mrb[0].mxu0
  %1704 = vdwg.mxu0
  %v1705 = vadd.f32 %v1500, %v1699
  %v1706 = vxor.u32 %v1705, 2147483648
  %v1707 = vmul.f32 %v1706, 1.442695
  %v1708 = vpow.pop %v1707
  %v1709 = vadd.f32 %v1708, 1.0
  %v1710 = vrcp.pop %v1709
  %v1711 = vmul.f32 1.0, %v1710
  %v1712 = vadd.f32 %v1701, %v1635
  %v1713 = vmul.f32 %v1711, %v1712
  %v1714 = vadd.f32 %v1502, %v1713
  %v1715 = vtanh.pop %v1714
  %v1716 = vsub.f32 1.0, %v1711
  %1718 = vrot.lane.b32.xlu0 %v1715, 64
  %v1719 = vpop.permute.xlu0 %1718
  %v1721 = vmul.f32 %v1716, %v1719
  %v1722 = vmul.f32 %v1711, %v1648
  %v1723 = vadd.f32 %v1721, %v1722
  %1725 = vrot.lane.b32.xlu0 %v1723, 64
  %v1726 = vpop.permute.xlu0 %1725
  %1728 = vst.msk [vmem:[#allocation3 + $0x8] sm:$0xff] %vm1653, %v1726
  %1729 = vst.msk [vmem:[#allocation3 + $0x30] sm:$0xff] %vm1655, %v1726
  %v1730 = vpack.c.bf16 %v1723, %v1723
  %1732 = vrot.lane.b32.xlu0 %v1730, 64
  %v1733 = vpop.permute.xlu0 %1732
  %v1735 = vsel %vm753, %v1733, 0
  %1737 = vmatprep.subr.bf16.mxu0 %v1568
  %1738 = vmatpush1.bf16.msra.mxu0 %v1567
  %1739 = vmatprep.subr.bf16.mxu0 %v1570
  %1740 = vmatpush1.bf16.msra.mxu0 %v1569
  %1741 = vmatprep.subr.bf16.mxu0 %v1572
  %1742 = vmatpush1.bf16.msra.mxu0 %v1571
  %1743 = vmatprep.subr.bf16.mxu0 %v1574
  %1744 = vmatpush1.bf16.msra.mxu0 %v1573
  %1745 = vmatprep.subr.bf16.mxu0 0
  %1746 = vmatpush1.bf16.msra.mxu0 0
  %1747 = vmatprep.subr.bf16.mxu0 0
  %1748 = vmatpush1.bf16.msra.mxu0 0
  %1749 = vmatprep.subr.bf16.mxu0 0
  %1750 = vmatpush1.bf16.msra.mxu0 0
  %1751 = vmatprep.subr.bf16.mxu0 0
  %1752 = vmatpush1.bf16.msra.mxu0 0
  %1753 = vmatprep.subr.bf16.mxu0 0
  %1754 = vmatpush1.bf16.msra.mxu0 0
  %1755 = vmatprep.subr.bf16.mxu0 0
  %1756 = vmatpush1.bf16.msra.mxu0 0
  %1757 = vmatprep.subr.bf16.mxu0 0
  %1758 = vmatpush1.bf16.msra.mxu0 0
  %1759 = vmatprep.subr.bf16.mxu0 0
  %1760 = vmatpush1.bf16.msra.mxu0 0
  %1761 = vmatprep.subr.bf16.mxu0 0
  %1762 = vmatpush1.bf16.msra.mxu0 0
  %1763 = vmatprep.subr.bf16.mxu0 0
  %1764 = vmatpush1.bf16.msra.mxu0 0
  %1765 = vmatprep.subr.bf16.mxu0 0
  %1766 = vmatpush1.bf16.msra.mxu0 0
  %1767 = vmatprep.subr.bf16.mxu0 0
  %1768 = vmatpush1.bf16.msra.mxu0 0
  %1769 = vmatprep.mubr.bf16.mxu0 0
  %1770 = vmatmul.mubr.bf16.gmra.mrb[0].mxu0 %v1735
  %v1771 = vpop.f32.mrb[0].mxu0
  %v1772 = vadd.f32 0.0, %v1771
  %v1773 = vpop.f32.mrb[0].mxu0
  %v1774 = vadd.f32 0.0, %v1773
  %v1775 = vpop.f32.mrb[0].mxu0
  %v1776 = vpop.f32.mrb[0].mxu0
  %1777 = vdwg.mxu0
  %v1778 = vadd.f32 %v1506, %v1772
  %v1779 = vxor.u32 %v1778, 2147483648
  %v1780 = vmul.f32 %v1779, 1.442695
  %v1781 = vpow.pop %v1780
  %v1782 = vadd.f32 %v1781, 1.0
  %v1783 = vrcp.pop %v1782
  %v1784 = vmul.f32 1.0, %v1783
  %v1785 = vadd.f32 %v1774, %v1635
  %v1786 = vmul.f32 %v1784, %v1785
  %v1787 = vadd.f32 %v1508, %v1786
  %v1788 = vtanh.pop %v1787
  %v1789 = vsub.f32 1.0, %v1784
  %1791 = vrot.lane.b32.xlu0 %v1788, 64
  %v1792 = vpop.permute.xlu0 %1791
  %v1794 = vmul.f32 %v1789, %v1792
  %v1795 = vmul.f32 %v1784, %v1723
  %v1796 = vadd.f32 %v1794, %v1795
  %1798 = vrot.lane.b32.xlu0 %v1796, 64
  %v1799 = vpop.permute.xlu0 %1798
  %1801 = vst.msk [vmem:[#allocation3 + $0x10] sm:$0xff] %vm1653, %v1799
  %1802 = vst.msk [vmem:[#allocation3 + $0x28] sm:$0xff] %vm1655, %v1799
  %v1803 = vpack.c.bf16 %v1796, %v1796
  %1805 = vrot.lane.b32.xlu0 %v1803, 64
  %v1806 = vpop.permute.xlu0 %1805
  %v1808 = vsel %vm753, %v1806, 0
  %1810 = vmatprep.subr.bf16.mxu0 %v1568
  %1811 = vmatpush1.bf16.msra.mxu0 %v1567
  %1812 = vmatprep.subr.bf16.mxu0 %v1570
  %1813 = vmatpush1.bf16.msra.mxu0 %v1569
  %1814 = vmatprep.subr.bf16.mxu0 %v1572
  %1815 = vmatpush1.bf16.msra.mxu0 %v1571
  %1816 = vmatprep.subr.bf16.mxu0 %v1574
  %1817 = vmatpush1.bf16.msra.mxu0 %v1573
  %1818 = vmatprep.subr.bf16.mxu0 0
  %1819 = vmatpush1.bf16.msra.mxu0 0
  %1820 = vmatprep.subr.bf16.mxu0 0
  %1821 = vmatpush1.bf16.msra.mxu0 0
  %1822 = vmatprep.subr.bf16.mxu0 0
  %1823 = vmatpush1.bf16.msra.mxu0 0
  %1824 = vmatprep.subr.bf16.mxu0 0
  %1825 = vmatpush1.bf16.msra.mxu0 0
  %1826 = vmatprep.subr.bf16.mxu0 0
  %1827 = vmatpush1.bf16.msra.mxu0 0
  %1828 = vmatprep.subr.bf16.mxu0 0
  %1829 = vmatpush1.bf16.msra.mxu0 0
  %1830 = vmatprep.subr.bf16.mxu0 0
  %1831 = vmatpush1.bf16.msra.mxu0 0
  %1832 = vmatprep.subr.bf16.mxu0 0
  %1833 = vmatpush1.bf16.msra.mxu0 0
  %1834 = vmatprep.subr.bf16.mxu0 0
  %1835 = vmatpush1.bf16.msra.mxu0 0
  %1836 = vmatprep.subr.bf16.mxu0 0
  %1837 = vmatpush1.bf16.msra.mxu0 0
  %1838 = vmatprep.subr.bf16.mxu0 0
  %1839 = vmatpush1.bf16.msra.mxu0 0
  %1840 = vmatprep.subr.bf16.mxu0 0
  %1841 = vmatpush1.bf16.msra.mxu0 0
  %1842 = vmatprep.mubr.bf16.mxu0 0
  %1843 = vmatmul.mubr.bf16.gmra.mrb[0].mxu0 %v1808
  %v1844 = vpop.f32.mrb[0].mxu0
  %v1845 = vadd.f32 0.0, %v1844
  %v1846 = vpop.f32.mrb[0].mxu0
  %v1847 = vadd.f32 0.0, %v1846
  %v1848 = vpop.f32.mrb[0].mxu0
  %v1849 = vpop.f32.mrb[0].mxu0
  %1850 = vdwg.mxu0
  %v1851 = vadd.f32 %v1510, %v1845
  %v1852 = vxor.u32 %v1851, 2147483648
  %v1853 = vmul.f32 %v1852, 1.442695
  %v1854 = vpow.pop %v1853
  %v1855 = vadd.f32 %v1854, 1.0
  %v1856 = vrcp.pop %v1855
  %v1857 = vmul.f32 1.0, %v1856
  %v1858 = vadd.f32 %v1847, %v1635
  %v1859 = vmul.f32 %v1857, %v1858
  %v1860 = vadd.f32 %v1512, %v1859
  %v1861 = vtanh.pop %v1860
  %v1862 = vsub.f32 1.0, %v1857
  %1864 = vrot.lane.b32.xlu0 %v1861, 64
  %v1865 = vpop.permute.xlu0 %1864
  %v1867 = vmul.f32 %v1862, %v1865
  %v1868 = vmul.f32 %v1857, %v1796
  %v1869 = vadd.f32 %v1867, %v1868
  %1871 = vrot.lane.b32.xlu0 %v1869, 64
  %v1872 = vpop.permute.xlu0 %1871
  %1874 = vst.msk [vmem:[#allocation3 + $0x18] sm:$0xff] %vm1653, %v1872
  %1875 = vst.msk [vmem:[#allocation3 + $0x20] sm:$0xff] %vm1655, %v1872
  %v1876 = vpack.c.bf16 %v1869, %v1869
  %1878 = vrot.lane.b32.xlu0 %v1876, 64
  %v1879 = vpop.permute.xlu0 %1878
  %v1881 = vsel %vm753, %v1879, 0
  %1883 = vmatprep.subr.bf16.mxu0 %v1568
  %1884 = vmatpush1.bf16.msra.mxu0 %v1567
  %1885 = vmatprep.subr.bf16.mxu0 %v1570
  %1886 = vmatpush1.bf16.msra.mxu0 %v1569
  %1887 = vmatprep.subr.bf16.mxu0 %v1572
  %1888 = vmatpush1.bf16.msra.mxu0 %v1571
  %1889 = vmatprep.subr.bf16.mxu0 %v1574
  %1890 = vmatpush1.bf16.msra.mxu0 %v1573
  %1891 = vmatprep.subr.bf16.mxu0 0
  %1892 = vmatpush1.bf16.msra.mxu0 0
  %1893 = vmatprep.subr.bf16.mxu0 0
  %1894 = vmatpush1.bf16.msra.mxu0 0
  %1895 = vmatprep.subr.bf16.mxu0 0
  %1896 = vmatpush1.bf16.msra.mxu0 0
  %1897 = vmatprep.subr.bf16.mxu0 0
  %1898 = vmatpush1.bf16.msra.mxu0 0
  %1899 = vmatprep.subr.bf16.mxu0 0
  %1900 = vmatpush1.bf16.msra.mxu0 0
  %1901 = vmatprep.subr.bf16.mxu0 0
  %1902 = vmatpush1.bf16.msra.mxu0 0
  %1903 = vmatprep.subr.bf16.mxu0 0
  %1904 = vmatpush1.bf16.msra.mxu0 0
  %1905 = vmatprep.subr.bf16.mxu0 0
  %1906 = vmatpush1.bf16.msra.mxu0 0
  %1907 = vmatprep.subr.bf16.mxu0 0
  %1908 = vmatpush1.bf16.msra.mxu0 0
  %1909 = vmatprep.subr.bf16.mxu0 0
  %1910 = vmatpush1.bf16.msra.mxu0 0
  %1911 = vmatprep.subr.bf16.mxu0 0
  %1912 = vmatpush1.bf16.msra.mxu0 0
  %1913 = vmatprep.subr.bf16.mxu0 0
  %1914 = vmatpush1.bf16.msra.mxu0 0
  %1915 = vmatprep.mubr.bf16.mxu0 0
  %1916 = vmatmul.mubr.bf16.gmra.mrb[0].mxu0 %v1881
  %v1917 = vpop.f32.mrb[0].mxu0
  %v1918 = vadd.f32 0.0, %v1917
  %v1919 = vpop.f32.mrb[0].mxu0
  %v1920 = vadd.f32 0.0, %v1919
  %v1921 = vpop.f32.mrb[0].mxu0
  %v1922 = vpop.f32.mrb[0].mxu0
  %1923 = vdwg.mxu0
  %v1924 = vadd.f32 %v1516, %v1918
  %v1925 = vxor.u32 %v1924, 2147483648
  %v1926 = vmul.f32 %v1925, 1.442695
  %v1927 = vpow.pop %v1926
  %v1928 = vadd.f32 %v1927, 1.0
  %v1929 = vrcp.pop %v1928
  %v1930 = vmul.f32 1.0, %v1929
  %v1931 = vadd.f32 %v1920, %v1635
  %v1932 = vmul.f32 %v1930, %v1931
  %v1933 = vadd.f32 %v1518, %v1932
  %v1934 = vtanh.pop %v1933
  %v1935 = vsub.f32 1.0, %v1930
  %1937 = vrot.lane.b32.xlu0 %v1934, 64
  %v1938 = vpop.permute.xlu0 %1937
  %v1940 = vmul.f32 %v1935, %v1938
  %v1941 = vmul.f32 %v1930, %v1869
  %v1942 = vadd.f32 %v1940, %v1941
  %1944 = vrot.lane.b32.xlu0 %v1942, 64
  %v1945 = vpop.permute.xlu0 %1944
  %1947 = vst.msk [vmem:[#allocation3 + $0x20] sm:$0xff] %vm1653, %v1945
  %1948 = vst.msk [vmem:[#allocation3 + $0x18] sm:$0xff] %vm1655, %v1945
  %v1949 = vpack.c.bf16 %v1942, %v1942
  %1951 = vrot.lane.b32.xlu0 %v1949, 64
  %v1952 = vpop.permute.xlu0 %1951
  %v1954 = vsel %vm753, %v1952, 0
  %1956 = vmatprep.subr.bf16.mxu0 %v1568
  %1957 = vmatpush1.bf16.msra.mxu0 %v1567
  %1958 = vmatprep.subr.bf16.mxu0 %v1570
  %1959 = vmatpush1.bf16.msra.mxu0 %v1569
  %1960 = vmatprep.subr.bf16.mxu0 %v1572
  %1961 = vmatpush1.bf16.msra.mxu0 %v1571
  %1962 = vmatprep.subr.bf16.mxu0 %v1574
  %1963 = vmatpush1.bf16.msra.mxu0 %v1573
  %1964 = vmatprep.subr.bf16.mxu0 0
  %1965 = vmatpush1.bf16.msra.mxu0 0
  %1966 = vmatprep.subr.bf16.mxu0 0
  %1967 = vmatpush1.bf16.msra.mxu0 0
  %1968 = vmatprep.subr.bf16.mxu0 0
  %1969 = vmatpush1.bf16.msra.mxu0 0
  %1970 = vmatprep.subr.bf16.mxu0 0
  %1971 = vmatpush1.bf16.msra.mxu0 0
  %1972 = vmatprep.subr.bf16.mxu0 0
  %1973 = vmatpush1.bf16.msra.mxu0 0
  %1974 = vmatprep.subr.bf16.mxu0 0
  %1975 = vmatpush1.bf16.msra.mxu0 0
  %1976 = vmatprep.subr.bf16.mxu0 0
  %1977 = vmatpush1.bf16.msra.mxu0 0
  %1978 = vmatprep.subr.bf16.mxu0 0
  %1979 = vmatpush1.bf16.msra.mxu0 0
  %1980 = vmatprep.subr.bf16.mxu0 0
  %1981 = vmatpush1.bf16.msra.mxu0 0
  %1982 = vmatprep.subr.bf16.mxu0 0
  %1983 = vmatpush1.bf16.msra.mxu0 0
  %1984 = vmatprep.subr.bf16.mxu0 0
  %1985 = vmatpush1.bf16.msra.mxu0 0
  %1986 = vmatprep.subr.bf16.mxu0 0
  %1987 = vmatpush1.bf16.msra.mxu0 0
  %1988 = vmatprep.mubr.bf16.mxu0 0
  %1989 = vmatmul.mubr.bf16.gmra.mrb[0].mxu0 %v1954
  %v1990 = vpop.f32.mrb[0].mxu0
  %v1991 = vadd.f32 0.0, %v1990
  %v1992 = vpop.f32.mrb[0].mxu0
  %v1993 = vadd.f32 0.0, %v1992
  %v1994 = vpop.f32.mrb[0].mxu0
  %v1995 = vpop.f32.mrb[0].mxu0
  %1996 = vdwg.mxu0
  %v1997 = vadd.f32 %v1520, %v1991
  %v1998 = vxor.u32 %v1997, 2147483648
  %v1999 = vmul.f32 %v1998, 1.442695
  %v2000 = vpow.pop %v1999
  %v2001 = vadd.f32 %v2000, 1.0
  %v2002 = vrcp.pop %v2001
  %v2003 = vmul.f32 1.0, %v2002
  %v2004 = vadd.f32 %v1993, %v1635
  %v2005 = vmul.f32 %v2003, %v2004
  %v2006 = vadd.f32 %v1522, %v2005
  %v2007 = vtanh.pop %v2006
  %v2008 = vsub.f32 1.0, %v2003
  %2010 = vrot.lane.b32.xlu0 %v2007, 64
  %v2011 = vpop.permute.xlu0 %2010
  %v2013 = vmul.f32 %v2008, %v2011
  %v2014 = vmul.f32 %v2003, %v1942
  %v2015 = vadd.f32 %v2013, %v2014
  %2017 = vrot.lane.b32.xlu0 %v2015, 64
  %v2018 = vpop.permute.xlu0 %2017
  %2020 = vst.msk [vmem:[#allocation3 + $0x28] sm:$0xff] %vm1653, %v2018
  %2021 = vst.msk [vmem:[#allocation3 + $0x10] sm:$0xff] %vm1655, %v2018
  %v2022 = vpack.c.bf16 %v2015, %v2015
  %2024 = vrot.lane.b32.xlu0 %v2022, 64
  %v2025 = vpop.permute.xlu0 %2024
  %v2027 = vsel %vm753, %v2025, 0
  %2029 = vmatprep.subr.bf16.mxu0 %v1568
  %2030 = vmatpush1.bf16.msra.mxu0 %v1567
  %2031 = vmatprep.subr.bf16.mxu0 %v1570
  %2032 = vmatpush1.bf16.msra.mxu0 %v1569
  %2033 = vmatprep.subr.bf16.mxu0 %v1572
  %2034 = vmatpush1.bf16.msra.mxu0 %v1571
  %2035 = vmatprep.subr.bf16.mxu0 %v1574
  %2036 = vmatpush1.bf16.msra.mxu0 %v1573
  %2037 = vmatprep.subr.bf16.mxu0 0
  %2038 = vmatpush1.bf16.msra.mxu0 0
  %2039 = vmatprep.subr.bf16.mxu0 0
  %2040 = vmatpush1.bf16.msra.mxu0 0
  %2041 = vmatprep.subr.bf16.mxu0 0
  %2042 = vmatpush1.bf16.msra.mxu0 0
  %2043 = vmatprep.subr.bf16.mxu0 0
  %2044 = vmatpush1.bf16.msra.mxu0 0
  %2045 = vmatprep.subr.bf16.mxu0 0
  %2046 = vmatpush1.bf16.msra.mxu0 0
  %2047 = vmatprep.subr.bf16.mxu0 0
  %2048 = vmatpush1.bf16.msra.mxu0 0
  %2049 = vmatprep.subr.bf16.mxu0 0
  %2050 = vmatpush1.bf16.msra.mxu0 0
  %2051 = vmatprep.subr.bf16.mxu0 0
  %2052 = vmatpush1.bf16.msra.mxu0 0
  %2053 = vmatprep.subr.bf16.mxu0 0
  %2054 = vmatpush1.bf16.msra.mxu0 0
  %2055 = vmatprep.subr.bf16.mxu0 0
  %2056 = vmatpush1.bf16.msra.mxu0 0
  %2057 = vmatprep.subr.bf16.mxu0 0
  %2058 = vmatpush1.bf16.msra.mxu0 0
  %2059 = vmatprep.subr.bf16.mxu0 0
  %2060 = vmatpush1.bf16.msra.mxu0 0
  %2061 = vmatprep.mubr.bf16.mxu0 0
  %2062 = vmatmul.mubr.bf16.gmra.mrb[0].mxu0 %v2027
  %v2063 = vpop.f32.mrb[0].mxu0
  %v2064 = vadd.f32 0.0, %v2063
  %v2065 = vpop.f32.mrb[0].mxu0
  %v2066 = vadd.f32 0.0, %v2065
  %v2067 = vpop.f32.mrb[0].mxu0
  %v2068 = vpop.f32.mrb[0].mxu0
  %2069 = vdwg.mxu0
  %v2070 = vadd.f32 %v1526, %v2064
  %v2071 = vxor.u32 %v2070, 2147483648
  %v2072 = vmul.f32 %v2071, 1.442695
  %v2073 = vpow.pop %v2072
  %v2074 = vadd.f32 %v2073, 1.0
  %v2075 = vrcp.pop %v2074
  %v2076 = vmul.f32 1.0, %v2075
  %v2077 = vadd.f32 %v2066, %v1635
  %v2078 = vmul.f32 %v2076, %v2077
  %v2079 = vadd.f32 %v1528, %v2078
  %v2080 = vtanh.pop %v2079
  %v2081 = vsub.f32 1.0, %v2076
  %2083 = vrot.lane.b32.xlu0 %v2080, 64
  %v2084 = vpop.permute.xlu0 %2083
  %v2086 = vmul.f32 %v2081, %v2084
  %v2087 = vmul.f32 %v2076, %v2015
  %v2088 = vadd.f32 %v2086, %v2087
  %2090 = vrot.lane.b32.xlu0 %v2088, 64
  %v2091 = vpop.permute.xlu0 %2090
  %2093 = vst.msk [vmem:[#allocation3 + $0x30] sm:$0xff] %vm1653, %v2091
  %2094 = vst.msk [vmem:[#allocation3 + $0x8] sm:$0xff] %vm1655, %v2091
  %v2095 = vpack.c.bf16 %v2088, %v2088
  %2097 = vrot.lane.b32.xlu0 %v2095, 64
  %v2098 = vpop.permute.xlu0 %2097
  %v2100 = vsel %vm753, %v2098, 0
  %2102 = vmatprep.subr.bf16.mxu0 %v1568
  %2103 = vmatpush1.bf16.msra.mxu0 %v1567
  %2104 = vmatprep.subr.bf16.mxu0 %v1570
  %2105 = vmatpush1.bf16.msra.mxu0 %v1569
  %2106 = vmatprep.subr.bf16.mxu0 %v1572
  %2107 = vmatpush1.bf16.msra.mxu0 %v1571
  %2108 = vmatprep.subr.bf16.mxu0 %v1574
  %2109 = vmatpush1.bf16.msra.mxu0 %v1573
  %2110 = vmatprep.subr.bf16.mxu0 0
  %2111 = vmatpush1.bf16.msra.mxu0 0
  %2112 = vmatprep.subr.bf16.mxu0 0
  %2113 = vmatpush1.bf16.msra.mxu0 0
  %2114 = vmatprep.subr.bf16.mxu0 0
  %2115 = vmatpush1.bf16.msra.mxu0 0
  %2116 = vmatprep.subr.bf16.mxu0 0
  %2117 = vmatpush1.bf16.msra.mxu0 0
  %2118 = vmatprep.subr.bf16.mxu0 0
  %2119 = vmatpush1.bf16.msra.mxu0 0
  %2120 = vmatprep.subr.bf16.mxu0 0
  %2121 = vmatpush1.bf16.msra.mxu0 0
  %2122 = vmatprep.subr.bf16.mxu0 0
  %2123 = vmatpush1.bf16.msra.mxu0 0
  %2124 = vmatprep.subr.bf16.mxu0 0
  %2125 = vmatpush1.bf16.msra.mxu0 0
  %2126 = vmatprep.subr.bf16.mxu0 0
  %2127 = vmatpush1.bf16.msra.mxu0 0
  %2128 = vmatprep.subr.bf16.mxu0 0
  %2129 = vmatpush1.bf16.msra.mxu0 0
  %2130 = vmatprep.subr.bf16.mxu0 0
  %2131 = vmatpush1.bf16.msra.mxu0 0
  %2132 = vmatprep.subr.bf16.mxu0 0
  %2133 = vmatpush1.bf16.msra.mxu0 0
  %2134 = vmatprep.mubr.bf16.mxu0 0
  %2135 = vmatmul.mubr.bf16.gmra.mrb[0].mxu0 %v2100
  %v2136 = vpop.f32.mrb[0].mxu0
  %v2137 = vadd.f32 0.0, %v2136
  %v2138 = vpop.f32.mrb[0].mxu0
  %v2139 = vadd.f32 0.0, %v2138
  %v2140 = vpop.f32.mrb[0].mxu0
  %v2141 = vpop.f32.mrb[0].mxu0
  %2142 = vdwg.mxu0
  %v2143 = vadd.f32 %v1530, %v2137
  %v2144 = vxor.u32 %v2143, 2147483648
  %v2145 = vmul.f32 %v2144, 1.442695
  %v2146 = vpow.pop %v2145
  %v2147 = vadd.f32 %v2146, 1.0
  %v2148 = vrcp.pop %v2147
  %v2149 = vmul.f32 1.0, %v2148
  %v2150 = vadd.f32 %v2139, %v1635
  %v2151 = vmul.f32 %v2149, %v2150
  %v2152 = vadd.f32 %v1532, %v2151
  %v2153 = vtanh.pop %v2152
  %v2154 = vsub.f32 1.0, %v2149
  %2156 = vrot.lane.b32.xlu0 %v2153, 64
  %v2157 = vpop.permute.xlu0 %2156
  %v2159 = vmul.f32 %v2154, %v2157
  %v2160 = vmul.f32 %v2149, %v2088
  %v2161 = vadd.f32 %v2159, %v2160
  %2163 = vrot.lane.b32.xlu0 %v2161, 64
  %v2164 = vpop.permute.xlu0 %2163
  %2166 = vst.msk [vmem:[#allocation3 + $0x38] sm:$0xff] %vm1653, %v2164
  %2167 = vst.msk [vmem:[#allocation3] sm:$0xff] %vm1655, %v2164
  %v2168 = vld [vmem:[%s9] sm:$0x1]
  %v2169 = vld [vmem:[#allocation3] sm:$0xff]
  %v2170 = vld [vmem:[#allocation3 + $0x8] sm:$0xff]
  %v2171 = vld [vmem:[#allocation3 + $0x10] sm:$0xff]
  %v2172 = vld [vmem:[#allocation3 + $0x18] sm:$0xff]
  %v2173 = vld [vmem:[#allocation3 + $0x20] sm:$0xff]
  %v2174 = vld [vmem:[#allocation3 + $0x28] sm:$0xff]
  %v2175 = vld [vmem:[#allocation3 + $0x30] sm:$0xff]
  %v2176 = vld [vmem:[#allocation3 + $0x38] sm:$0xff]
  %v2178 = vlaneseq
  %v2179 = vshrl.u32 %v2178, 7
  %v2180 = vsub.s32 0, %v2179
  %v2181 = vrot.slane %v2168, %v2180
  %v2183 = vmul.f32 %v2169, %v2181
  %v2184 = vsel %vm753, %v2183, 0.0
  %2185 = vadd.xlane.f32.xlu0 %v2184
  %v2186 = vpop.xlane.xlu0 %2185
  %v2187 = vmul.f32 %v2170, %v2181
  %v2188 = vsel %vm753, %v2187, 0.0
  %2189 = vadd.xlane.f32.xlu0 %v2188
  %v2190 = vpop.xlane.xlu0 %2189
  %v2191 = vmul.f32 %v2171, %v2181
  %v2192 = vsel %vm753, %v2191, 0.0
  %2193 = vadd.xlane.f32.xlu0 %v2192
  %v2194 = vpop.xlane.xlu0 %2193
  %v2195 = vmul.f32 %v2172, %v2181
  %v2196 = vsel %vm753, %v2195, 0.0
  %2197 = vadd.xlane.f32.xlu0 %v2196
  %v2198 = vpop.xlane.xlu0 %2197
  %v2199 = vmul.f32 %v2173, %v2181
  %v2200 = vsel %vm753, %v2199, 0.0
  %2201 = vadd.xlane.f32.xlu0 %v2200
  %v2202 = vpop.xlane.xlu0 %2201
  %v2203 = vmul.f32 %v2174, %v2181
  %v2204 = vsel %vm753, %v2203, 0.0
  %2205 = vadd.xlane.f32.xlu0 %v2204
  %v2206 = vpop.xlane.xlu0 %2205
  %v2207 = vmul.f32 %v2175, %v2181
  %v2208 = vsel %vm753, %v2207, 0.0
  %2209 = vadd.xlane.f32.xlu0 %v2208
  %v2210 = vpop.xlane.xlu0 %2209
  %v2211 = vmul.f32 %v2176, %v2181
  %v2212 = vsel %vm753, %v2211, 0.0
  %2213 = vadd.xlane.f32.xlu0 %v2212
  %v2214 = vpop.xlane.xlu0 %2213
  %vm2215 = vcmask 7168
  %v2216 = vsel %vm2215, %v2186, %v2190
  %vm2217 = vcmask 15360
  %v2218 = vsel %vm2217, %v2216, %v2194
  %vm2219 = vcmask 23552
  %v2220 = vsel %vm2219, %v2218, %v2198
  %vm2221 = vcmask 31744
  %v2222 = vsel %vm2221, %v2220, %v2202
  %vm2223 = vcmask 39936
  %v2224 = vsel %vm2223, %v2222, %v2206
  %vm2225 = vcmask 48128
  %v2226 = vsel %vm2225, %v2224, %v2210
  %vm2227 = vcmask 56320
  %v2228 = vsel %vm2227, %v2226, %v2214
  %v2229 = vld [vmem:[%s10] sm:$0x1]
  %v2231 = vlaneseq
  %v2232 = vshrl.u32 %v2231, 7
  %v2233 = vsub.s32 0, %v2232
  %v2234 = vrot.slane %v2229, %v2233
  %v2236 = vadd.f32 %v2228, %v2234
  %v2237 = vtanh.pop %v2236
  %v2238 = vmul.f32 %v2237, 1.442695
  %v2239 = vpow.pop %v2238
  %vm2240 = vcmask 64512
  %v2241 = vsel %vm2240, %v2239, 0.0
  %2242 = vadd.xlane.f32.xlu0 %v2241
  %v2243 = vpop.xlane.xlu0 %2242
  %v2244 = vrcp.pop %v2243
  %v2245 = vmul.f32 %v2239, %v2244
  %v2246 = vadd.f32 %v2245, 1e-10
  %v2247 = vsel %vm753, %v2169, 0.0
  %2248 = vadd.xlane.f32.xlu0 %v2247
  %v2249 = vpop.xlane.xlu0 %2248
  %v2250 = vsel %vm753, %v2170, 0.0
  %2251 = vadd.xlane.f32.xlu0 %v2250
  %v2252 = vpop.xlane.xlu0 %2251
  %v2253 = vsel %vm753, %v2171, 0.0
  %2254 = vadd.xlane.f32.xlu0 %v2253
  %v2255 = vpop.xlane.xlu0 %2254
  %v2256 = vsel %vm753, %v2172, 0.0
  %2257 = vadd.xlane.f32.xlu0 %v2256
  %v2258 = vpop.xlane.xlu0 %2257
  %v2259 = vsel %vm753, %v2173, 0.0
  %2260 = vadd.xlane.f32.xlu0 %v2259
  %v2261 = vpop.xlane.xlu0 %2260
  %v2262 = vsel %vm753, %v2174, 0.0
  %2263 = vadd.xlane.f32.xlu0 %v2262
  %v2264 = vpop.xlane.xlu0 %2263
  %v2265 = vsel %vm753, %v2175, 0.0
  %2266 = vadd.xlane.f32.xlu0 %v2265
  %v2267 = vpop.xlane.xlu0 %2266
  %v2268 = vsel %vm753, %v2176, 0.0
  %2269 = vadd.xlane.f32.xlu0 %v2268
  %v2270 = vpop.xlane.xlu0 %2269
  %v2271 = vsel %vm2215, %v2249, %v2252
  %v2272 = vsel %vm2217, %v2271, %v2255
  %v2273 = vsel %vm2219, %v2272, %v2258
  %v2274 = vsel %vm2221, %v2273, %v2261
  %v2275 = vsel %vm2223, %v2274, %v2264
  %v2276 = vsel %vm2225, %v2275, %v2267
  %v2277 = vsel %vm2227, %v2276, %v2270
  %v2278 = vmul.f32 %v2246, %v2277
  %v2279 = vsel %vm2240, %v2278, 0.0
  %2280 = vadd.xlane.f32.xlu0 %v2279
  %v2281 = vpop.xlane.xlu0 %2280
  %v2282 = vadd.f32 %v2169, %v2170
  %v2283 = vmax.f32 %v2169, %v2170
  %v2284 = vadd.f32 %v2282, %v2171
  %v2285 = vmax.f32 %v2283, %v2171
  %v2286 = vadd.f32 %v2284, %v2172
  %v2287 = vmax.f32 %v2285, %v2172
  %v2288 = vadd.f32 %v2286, %v2173
  %v2289 = vmax.f32 %v2287, %v2173
  %v2290 = vadd.f32 %v2288, %v2174
  %v2291 = vmax.f32 %v2289, %v2174
  %v2292 = vadd.f32 %v2290, %v2175
  %v2293 = vmax.f32 %v2291, %v2175
  %v2294 = vadd.f32 %v2292, %v2176
  %v2295 = vmax.f32 %v2293, %v2176
  %v2296 = vmul.f32 %v2294, 0.125
  %v2297 = vld [vmem:[%s11] sm:$0xff]
  %v2298 = vld [vmem:[%s11 + $0x8] sm:$0xff]
  %v2299 = vld [vmem:[%s11 + $0x10] sm:$0xff]
  %v2300 = vld [vmem:[%s11 + $0x18] sm:$0xff]
  %v2301 = vld [vmem:[%s11 + $0x20] sm:$0xff]
  %v2302 = vld [vmem:[%s11 + $0x28] sm:$0xff]
  %v2303 = vld [vmem:[%s11 + $0x30] sm:$0xff]
  %v2304 = vld [vmem:[%s11 + $0x38] sm:$0xff]
  %v2305 = vld [vmem:[%s12] sm:$0x1]
  %v2307 = vlaneseq
  %v2308 = vshrl.u32 %v2307, 7
  %v2309 = vsub.s32 0, %v2308
  %v2310 = vrot.slane %v2305, %v2309
  %v2312 = vmul.f32 %v2281, %v2310
  %v2314 = vsel %vm753, %v2176, 0
  %2316 = vmatprep.subr.mxu0 0.0
  %2317 = vmatpush1.msra.mxu0 %v2297
  %2318 = vmatprep.subr.mxu0 0.0
  %2319 = vmatpush1.msra.mxu0 %v2298
  %2320 = vmatprep.subr.mxu0 0.0
  %2321 = vmatpush1.msra.mxu0 %v2299
  %2322 = vmatprep.subr.mxu0 0.0
  %2323 = vmatpush1.msra.mxu0 %v2300
  %2324 = vmatprep.subr.mxu0 0.0
  %2325 = vmatpush1.msra.mxu0 %v2301
  %2326 = vmatprep.subr.mxu0 0.0
  %2327 = vmatpush1.msra.mxu0 %v2302
  %2328 = vmatprep.subr.mxu0 0.0
  %2329 = vmatpush1.msra.mxu0 %v2303
  %2330 = vmatprep.subr.mxu0 0.0
  %2331 = vmatpush1.msra.mxu0 %v2304
  %2332 = vmatprep.subr.mxu0 0.0
  %2333 = vmatpush1.msra.mxu0 0.0
  %2334 = vmatprep.subr.mxu0 0.0
  %2335 = vmatpush1.msra.mxu0 0.0
  %2336 = vmatprep.subr.mxu0 0.0
  %2337 = vmatpush1.msra.mxu0 0.0
  %2338 = vmatprep.subr.mxu0 0.0
  %2339 = vmatpush1.msra.mxu0 0.0
  %2340 = vmatprep.subr.mxu0 0.0
  %2341 = vmatpush1.msra.mxu0 0.0
  %2342 = vmatprep.subr.mxu0 0.0
  %2343 = vmatpush1.msra.mxu0 0.0
  %2344 = vmatprep.subr.mxu0 0.0
  %2345 = vmatpush1.msra.mxu0 0.0
  %2346 = vmatprep.subr.mxu0 0.0
  %2347 = vmatpush1.msra.mxu0 0.0
  %2348 = vmatprep.subr.mxu0 0.0
  %2349 = vmatpush1.msra.mxu0 0.0
  %2350 = vmatprep.subr.mxu0 0.0
  %2351 = vmatpush1.msra.mxu0 0.0
  %2352 = vmatprep.subr.mxu0 0.0
  %2353 = vmatpush1.msra.mxu0 0.0
  %2354 = vmatprep.subr.mxu0 0.0
  %2355 = vmatpush1.msra.mxu0 0.0
  %2356 = vmatprep.subr.mxu0 0.0
  %2357 = vmatpush1.msra.mxu0 0.0
  %2358 = vmatprep.subr.mxu0 0.0
  %2359 = vmatpush1.msra.mxu0 0.0
  %2360 = vmatprep.subr.mxu0 0.0
  %2361 = vmatpush1.msra.mxu0 0.0
  %2362 = vmatprep.subr.mxu0 0.0
  %2363 = vmatpush1.msra.mxu0 0.0
  %2364 = vmatprep.subr.mxu0 0.0
  %2365 = vmatpush1.msra.mxu0 0.0
  %2366 = vmatprep.subr.mxu0 0.0
  %2367 = vmatpush1.msra.mxu0 0.0
  %2368 = vmatprep.subr.mxu0 0.0
  %2369 = vmatpush1.msra.mxu0 0.0
  %2370 = vmatprep.subr.mxu0 0.0
  %2371 = vmatpush1.msra.mxu0 0.0
  %2372 = vmatprep.subr.mxu0 0.0
  %2373 = vmatpush1.msra.mxu0 0.0
  %2374 = vmatprep.subr.mxu0 0.0
  %2375 = vmatpush1.msra.mxu0 0.0
  %2376 = vmatprep.subr.mxu0 0.0
  %2377 = vmatpush1.msra.mxu0 0.0
  %2378 = vmatprep.subr.mxu0 0.0
  %2379 = vmatpush1.msra.mxu0 0.0
  %2380 = vmatprep.mubr.f32.mxu0 0.0
  %2381 = vmatmul.mubr.f32.gmra.mrb[0].mxu0 %v2314
  %v2382 = vpop.f32.mrb[0].mxu0
  %v2383 = vadd.f32 %v2312, %v2382
  %v2384 = vpop.f32.mrb[0].mxu0
  %2385 = vdwg.mxu0
  %v2386 = vld [vmem:[%s13] sm:$0xff]
  %v2387 = vld [vmem:[%s13 + $0x8] sm:$0xff]
  %v2388 = vld [vmem:[%s13 + $0x10] sm:$0xff]
  %v2389 = vld [vmem:[%s13 + $0x18] sm:$0xff]
  %v2390 = vld [vmem:[%s13 + $0x20] sm:$0xff]
  %v2391 = vld [vmem:[%s13 + $0x28] sm:$0xff]
  %v2392 = vld [vmem:[%s13 + $0x30] sm:$0xff]
  %v2393 = vld [vmem:[%s13 + $0x38] sm:$0xff]
  %v2395 = vsel %vm753, %v2296, 0
  %2397 = vmatprep.subr.mxu0 0.0
  %2398 = vmatpush1.msra.mxu0 %v2386
  %2399 = vmatprep.subr.mxu0 0.0
  %2400 = vmatpush1.msra.mxu0 %v2387
  %2401 = vmatprep.subr.mxu0 0.0
  %2402 = vmatpush1.msra.mxu0 %v2388
  %2403 = vmatprep.subr.mxu0 0.0
  %2404 = vmatpush1.msra.mxu0 %v2389
  %2405 = vmatprep.subr.mxu0 0.0
  %2406 = vmatpush1.msra.mxu0 %v2390
  %2407 = vmatprep.subr.mxu0 0.0
  %2408 = vmatpush1.msra.mxu0 %v2391
  %2409 = vmatprep.subr.mxu0 0.0
  %2410 = vmatpush1.msra.mxu0 %v2392
  %2411 = vmatprep.subr.mxu0 0.0
  %2412 = vmatpush1.msra.mxu0 %v2393
  %2413 = vmatprep.subr.mxu0 0.0
  %2414 = vmatpush1.msra.mxu0 0.0
  %2415 = vmatprep.subr.mxu0 0.0
  %2416 = vmatpush1.msra.mxu0 0.0
  %2417 = vmatprep.subr.mxu0 0.0
  %2418 = vmatpush1.msra.mxu0 0.0
  %2419 = vmatprep.subr.mxu0 0.0
  %2420 = vmatpush1.msra.mxu0 0.0
  %2421 = vmatprep.subr.mxu0 0.0
  %2422 = vmatpush1.msra.mxu0 0.0
  %2423 = vmatprep.subr.mxu0 0.0
  %2424 = vmatpush1.msra.mxu0 0.0
  %2425 = vmatprep.subr.mxu0 0.0
  %2426 = vmatpush1.msra.mxu0 0.0
  %2427 = vmatprep.subr.mxu0 0.0
  %2428 = vmatpush1.msra.mxu0 0.0
  %2429 = vmatprep.subr.mxu0 0.0
  %2430 = vmatpush1.msra.mxu0 0.0
  %2431 = vmatprep.subr.mxu0 0.0
  %2432 = vmatpush1.msra.mxu0 0.0
  %2433 = vmatprep.subr.mxu0 0.0
  %2434 = vmatpush1.msra.mxu0 0.0
  %2435 = vmatprep.subr.mxu0 0.0
  %2436 = vmatpush1.msra.mxu0 0.0
  %2437 = vmatprep.subr.mxu0 0.0
  %2438 = vmatpush1.msra.mxu0 0.0
  %2439 = vmatprep.subr.mxu0 0.0
  %2440 = vmatpush1.msra.mxu0 0.0
  %2441 = vmatprep.subr.mxu0 0.0
  %2442 = vmatpush1.msra.mxu0 0.0
  %2443 = vmatprep.subr.mxu0 0.0
  %2444 = vmatpush1.msra.mxu0 0.0
  %2445 = vmatprep.subr.mxu0 0.0
  %2446 = vmatpush1.msra.mxu0 0.0
  %2447 = vmatprep.subr.mxu0 0.0
  %2448 = vmatpush1.msra.mxu0 0.0
  %2449 = vmatprep.subr.mxu0 0.0
  %2450 = vmatpush1.msra.mxu0 0.0
  %2451 = vmatprep.subr.mxu0 0.0
  %2452 = vmatpush1.msra.mxu0 0.0
  %2453 = vmatprep.subr.mxu0 0.0
  %2454 = vmatpush1.msra.mxu0 0.0
  %2455 = vmatprep.subr.mxu0 0.0
  %2456 = vmatpush1.msra.mxu0 0.0
  %2457 = vmatprep.subr.mxu0 0.0
  %2458 = vmatpush1.msra.mxu0 0.0
  %2459 = vmatprep.subr.mxu0 0.0
  %2460 = vmatpush1.msra.mxu0 0.0
  %2461 = vmatprep.mubr.f32.mxu0 0.0
  %2462 = vmatmul.mubr.f32.gmra.mrb[0].mxu0 %v2395
  %v2463 = vpop.f32.mrb[0].mxu0
  %v2464 = vadd.f32 0.0, %v2463
  %v2465 = vpop.f32.mrb[0].mxu0
  %2466 = vdwg.mxu0
  %v2467 = vadd.f32 %v2383, %v2464
  %v2468 = vld [vmem:[%s14] sm:$0xff]
  %v2469 = vld [vmem:[%s14 + $0x8] sm:$0xff]
  %v2470 = vld [vmem:[%s14 + $0x10] sm:$0xff]
  %v2471 = vld [vmem:[%s14 + $0x18] sm:$0xff]
  %v2472 = vld [vmem:[%s14 + $0x20] sm:$0xff]
  %v2473 = vld [vmem:[%s14 + $0x28] sm:$0xff]
  %v2474 = vld [vmem:[%s14 + $0x30] sm:$0xff]
  %v2475 = vld [vmem:[%s14 + $0x38] sm:$0xff]
  %v2477 = vsel %vm753, %v2295, 0
  %2479 = vmatprep.subr.mxu0 0.0
  %2480 = vmatpush1.msra.mxu0 %v2468
  %2481 = vmatprep.subr.mxu0 0.0
  %2482 = vmatpush1.msra.mxu0 %v2469
  %2483 = vmatprep.subr.mxu0 0.0
  %2484 = vmatpush1.msra.mxu0 %v2470
  %2485 = vmatprep.subr.mxu0 0.0
  %2486 = vmatpush1.msra.mxu0 %v2471
  %2487 = vmatprep.subr.mxu0 0.0
  %2488 = vmatpush1.msra.mxu0 %v2472
  %2489 = vmatprep.subr.mxu0 0.0
  %2490 = vmatpush1.msra.mxu0 %v2473
  %2491 = vmatprep.subr.mxu0 0.0
  %2492 = vmatpush1.msra.mxu0 %v2474
  %2493 = vmatprep.subr.mxu0 0.0
  %2494 = vmatpush1.msra.mxu0 %v2475
  %2495 = vmatprep.subr.mxu0 0.0
  %2496 = vmatpush1.msra.mxu0 0.0
  %2497 = vmatprep.subr.mxu0 0.0
  %2498 = vmatpush1.msra.mxu0 0.0
  %2499 = vmatprep.subr.mxu0 0.0
  %2500 = vmatpush1.msra.mxu0 0.0
  %2501 = vmatprep.subr.mxu0 0.0
  %2502 = vmatpush1.msra.mxu0 0.0
  %2503 = vmatprep.subr.mxu0 0.0
  %2504 = vmatpush1.msra.mxu0 0.0
  %2505 = vmatprep.subr.mxu0 0.0
  %2506 = vmatpush1.msra.mxu0 0.0
  %2507 = vmatprep.subr.mxu0 0.0
  %2508 = vmatpush1.msra.mxu0 0.0
  %2509 = vmatprep.subr.mxu0 0.0
  %2510 = vmatpush1.msra.mxu0 0.0
  %2511 = vmatprep.subr.mxu0 0.0
  %2512 = vmatpush1.msra.mxu0 0.0
  %2513 = vmatprep.subr.mxu0 0.0
  %2514 = vmatpush1.msra.mxu0 0.0
  %2515 = vmatprep.subr.mxu0 0.0
  %2516 = vmatpush1.msra.mxu0 0.0
  %2517 = vmatprep.subr.mxu0 0.0
  %2518 = vmatpush1.msra.mxu0 0.0
  %2519 = vmatprep.subr.mxu0 0.0
  %2520 = vmatpush1.msra.mxu0 0.0
  %2521 = vmatprep.subr.mxu0 0.0
  %2522 = vmatpush1.msra.mxu0 0.0
  %2523 = vmatprep.subr.mxu0 0.0
  %2524 = vmatpush1.msra.mxu0 0.0
  %2525 = vmatprep.subr.mxu0 0.0
  %2526 = vmatpush1.msra.mxu0 0.0
  %2527 = vmatprep.subr.mxu0 0.0
  %2528 = vmatpush1.msra.mxu0 0.0
  %2529 = vmatprep.subr.mxu0 0.0
  %2530 = vmatpush1.msra.mxu0 0.0
  %2531 = vmatprep.subr.mxu0 0.0
  %2532 = vmatpush1.msra.mxu0 0.0
  %2533 = vmatprep.subr.mxu0 0.0
  %2534 = vmatpush1.msra.mxu0 0.0
  %2535 = vmatprep.subr.mxu0 0.0
  %2536 = vmatpush1.msra.mxu0 0.0
  %2537 = vmatprep.subr.mxu0 0.0
  %2538 = vmatpush1.msra.mxu0 0.0
  %2539 = vmatprep.subr.mxu0 0.0
  %2540 = vmatpush1.msra.mxu0 0.0
  %2541 = vmatprep.subr.mxu0 0.0
  %2542 = vmatpush1.msra.mxu0 0.0
  %2543 = vmatprep.mubr.f32.mxu0 0.0
  %2544 = vmatmul.mubr.f32.gmra.mrb[0].mxu0 %v2477
  %v2545 = vpop.f32.mrb[0].mxu0
  %v2546 = vadd.f32 0.0, %v2545
  %v2547 = vpop.f32.mrb[0].mxu0
  %2548 = vdwg.mxu0
  %v2549 = vadd.f32 %v2467, %v2546
  %v2550 = vld [vmem:[%s15] sm:$0x1]
  %v2552 = vlaneseq
  %v2553 = vshrl.u32 %v2552, 7
  %v2554 = vsub.s32 0, %v2553
  %v2555 = vrot.slane %v2550, %v2554
  %v2557 = vadd.f32 %v2549, %v2555
  %v2558 = vmax.f32 %v2557, 0.0
  %v2559 = vld [vmem:[%s19] sm:$0x1]
  %v2560 = vadd.f32 %v2559, 1e-05
  %v2561 = vrsqrt.pop %v2560
  %v2562 = vld [vmem:[%s18] sm:$0x1]
  %v2564 = vlaneseq
  %v2565 = vshrl.u32 %v2564, 7
  %v2566 = vsub.s32 0, %v2565
  %v2567 = vrot.slane %v2562, %v2566
  %v2569 = vsub.f32 %v2558, %v2567
  %v2571 = vlaneseq
  %v2572 = vshrl.u32 %v2571, 7
  %v2573 = vsub.s32 0, %v2572
  %v2574 = vrot.slane %v2561, %v2573
  %v2576 = vmul.f32 %v2569, %v2574
  %v2577 = vld [vmem:[%s16] sm:$0x1]
  %v2579 = vlaneseq
  %v2580 = vshrl.u32 %v2579, 7
  %v2581 = vsub.s32 0, %v2580
  %v2582 = vrot.slane %v2577, %v2581
  %v2584 = vmul.f32 %v2576, %v2582
  %v2585 = vld [vmem:[%s17] sm:$0x1]
  %v2587 = vlaneseq
  %v2588 = vshrl.u32 %v2587, 7
  %v2589 = vsub.s32 0, %v2588
  %v2590 = vrot.slane %v2585, %v2589
  %v2592 = vadd.f32 %v2584, %v2590
  %vm2593 = vcmask 130048
  %2594 = vst.msk [vmem:[%s20] sm:$0xff] %vm2593, %v2592
  // Predicated region
  $region82: #{gru0_forward.1} parent=0 // pred_check
    _
  $region83: #{gru0_forward.1} parent=0 // pred_check_branch
    %2596 = sbr.rel (0) target = $region85
  $region84: #{gru0_forward.1} parent=0 // pred_region
    _
  $region85: #{gru0_forward.1} parent=0 // pred_fallthru
    _
  // Predicated region
  $region86: #{gru0_forward.1} parent=0 // pred_check
    _
  $region87: #{gru0_forward.1} parent=0 // pred_check_branch
    %2598 = sbr.rel (0) target = $region89
  $region88: #{gru0_forward.1} parent=0 // pred_region
    _
  $region89: #{gru0_forward.1} parent=0 // pred_fallthru
    _

</llo_original>
